<compile_context>
chip_gen: v6e
topology: v6e:2x2x1
jax: 0.10.0
libtpu: 0.0.40
codegen_flags: <defaults>
</compile_context>

<pallas_src>
import functools
import math

import jax
import jax.numpy as jnp
from jax.experimental import pallas as pl
from jax.experimental.pallas import tpu as pltpu


# ----------------------------- in-kernel helpers -----------------------------

def _adain_lrelu(x, s_row, wg, bg, wb, bb, *, eps, slope):
    """InstanceNorm (per channel, over HW) + style modulation + LeakyReLU on (C, HW)."""
    wg = wg.astype(jnp.float32)
    wb = wb.astype(jnp.float32)
    # fc(s) as an exact VPU/XLU reduction (S is tiny); results are (C, 1) columns
    gamma = jnp.sum(wg * s_row, axis=1, keepdims=True) + bg.astype(jnp.float32)
    beta = jnp.sum(wb * s_row, axis=1, keepdims=True) + bb.astype(jnp.float32)
    mean = jnp.mean(x, axis=1, keepdims=True)
    var = jnp.mean(jnp.square(x - mean), axis=1, keepdims=True)   # biased, like InstanceNorm2d
    y = (x - mean) * jax.lax.rsqrt(var + eps)
    y = (1.0 + gamma) * y + beta
    return jnp.where(y > 0, y, slope * y)                         # LeakyReLU(slope)


def _conv3x3(y, w_ref, bias, mask_ref, *, width, hw):
    """3x3 'same' conv on a (Cin, HW) tile -> (Cout, HW).

    Spatial shifts = lane rotations of the flattened H*W axis (pltpu.roll / XLU),
    with precomputed per-tap validity masks standing in for the zero padding.
    """
    c_out = w_ref.shape[1]
    acc = jnp.zeros((c_out, hw), jnp.float32)
    t = 0
    for oi in (-1, 0, 1):
        for oj in (-1, 0, 1):
            delta = oi * width + oj
            shifted = y if delta == 0 else pltpu.roll(y, (-delta) % hw, axis=1)
            shifted = shifted * mask_ref[t]                        # (1, HW) mask
            acc = acc + jnp.dot(w_ref[t].astype(jnp.float32), shifted,
                                preferred_element_type=jnp.float32)
            t += 1
    return acc + bias.astype(jnp.float32)


def _adain_resblk_kernel(x_ref, s_ref,
                         wg1_ref, bg1_ref, wb1_ref, bb1_ref, w1_ref, b1_ref,
                         wg2_ref, bg2_ref, wb2_ref, bb2_ref, w2_ref, b2_ref,
                         wsc_ref, mask_ref, o_ref,
                         *, width, eps, slope, learned_sc, add_shortcut):
    hw = x_ref.shape[2]
    x = x_ref[0].astype(jnp.float32)            # (Cin, HW)
    s_row = s_ref[0].astype(jnp.float32)        # (1, S)

    # residual branch: AdaIN1 -> LReLU -> conv1 -> AdaIN2 -> LReLU -> conv2
    h = _adain_lrelu(x, s_row, wg1_ref[...], bg1_ref[...], wb1_ref[...], bb1_ref[...],
                     eps=eps, slope=slope)
    h = _conv3x3(h, w1_ref, b1_ref[...], mask_ref, width=width, hw=hw)
    h = _adain_lrelu(h, s_row, wg2_ref[...], bg2_ref[...], wb2_ref[...], bb2_ref[...],
                     eps=eps, slope=slope)
    h = _conv3x3(h, w2_ref, b2_ref[...], mask_ref, width=width, hw=hw)

    if add_shortcut:                            # w_hpf == 0 path of the module
        if learned_sc:
            sc = jnp.dot(wsc_ref[...].astype(jnp.float32), x,
                         preferred_element_type=jnp.float32)
        else:
            sc = x
        h = (h + sc) * (1.0 / math.sqrt(2.0))

    o_ref[0] = h.astype(o_ref.dtype)


# --------------------------------- wrapper -----------------------------------

def _build_tap_masks(H, W):
    """(9, 1, H*W) float masks: 1 where the shifted neighbor is inside the image."""
    hh = jnp.arange(H).reshape(H, 1)
    ww = jnp.arange(W).reshape(1, W)
    masks = []
    for oi in (-1, 0, 1):
        for oj in (-1, 0, 1):
            m = ((hh + oi >= 0) & (hh + oi < H) &
                 (ww + oj >= 0) & (ww + oj < W))
            masks.append(m.reshape(1, H * W))
    return jnp.stack(masks, axis=0).astype(jnp.float32)


def adain_resblk(x, s, params, *, w_hpf=0.0, upsample=False, slope=0.2, eps=1e-5):
    """Forward of AdainResBlk for NCHW `x` and style codes `s` (N, style_dim)."""
    if upsample:
        # TODO(synk): nearest-2x upsample (inside residual and shortcut) is not
        # implemented in the fused kernel.
        raise NotImplementedError("upsample=True is not supported")

    N, c_in, H, W = x.shape
    S = s.shape[1]
    hw = H * W
    c_out = params["conv1_w"].shape[0]
    learned_sc = "conv1x1_w" in params

    # ---- parameter re-packing (tiny, outside the kernel) ----
    fc1_w, fc1_b = params["fc1_w"], params["fc1_b"]          # (2*Cin, S), (2*Cin,)
    wg1, wb1 = fc1_w[:c_in], fc1_w[c_in:]
    bg1, bb1 = fc1_b[:c_in].reshape(c_in, 1), fc1_b[c_in:].reshape(c_in, 1)
    fc2_w, fc2_b = params["fc2_w"], params["fc2_b"]          # (2*Cout, S), (2*Cout,)
    wg2, wb2 = fc2_w[:c_out], fc2_w[c_out:]
    bg2, bb2 = fc2_b[:c_out].reshape(c_out, 1), fc2_b[c_out:].reshape(c_out, 1)

    # conv weights tap-major: w_t[kh*3+kw] = W[:, :, kh, kw]  -> (9, Cout, Cin_prev)
    w1t = jnp.transpose(params["conv1_w"], (2, 3, 0, 1)).reshape(9, c_out, c_in)
    b1 = params["conv1_b"].reshape(c_out, 1)
    w2t = jnp.transpose(params["conv2_w"], (2, 3, 0, 1)).reshape(9, c_out, c_out)
    b2 = params["conv2_b"].reshape(c_out, 1)
    wsc = (params["conv1x1_w"].reshape(c_out, c_in) if learned_sc
           else jnp.eye(c_out, dtype=x.dtype))               # placeholder when unused

    mask = _build_tap_masks(H, W)                            # (9, 1, HW)

    xf = x.reshape(N, c_in, hw)        # lane-dense: H*W on the lane axis
    s3 = s.reshape(N, 1, S)

    kernel = functools.partial(
        _adain_resblk_kernel, width=W, eps=eps, slope=slope,
        learned_sc=learned_sc, add_shortcut=(w_hpf == 0))

    full2 = lambda n: (0, 0)
    full3 = lambda n: (0, 0, 0)
    out = pl.pallas_call(
        kernel,
        out_shape=jax.ShapeDtypeStruct((N, c_out, hw), x.dtype),
        grid=(N,),
        in_specs=[
            pl.BlockSpec((1, c_in, hw), lambda n: (n, 0, 0)),   # x   (one sample)
            pl.BlockSpec((1, 1, S), lambda n: (n, 0, 0)),       # s   (one sample)
            pl.BlockSpec(wg1.shape, full2), pl.BlockSpec(bg1.shape, full2),
            pl.BlockSpec(wb1.shape, full2), pl.BlockSpec(bb1.shape, full2),
            pl.BlockSpec(w1t.shape, full3), pl.BlockSpec(b1.shape, full2),
            pl.BlockSpec(wg2.shape, full2), pl.BlockSpec(bg2.shape, full2),
            pl.BlockSpec(wb2.shape, full2), pl.BlockSpec(bb2.shape, full2),
            pl.BlockSpec(w2t.shape, full3), pl.BlockSpec(b2.shape, full2),
            pl.BlockSpec(wsc.shape, full2),
            pl.BlockSpec(mask.shape, full3),
        ],
        out_specs=pl.BlockSpec((1, c_out, hw), lambda n: (n, 0, 0)),
        compiler_params=pltpu.CompilerParams(
            dimension_semantics=("parallel",)),
    )(xf, s3, wg1, bg1, wb1, bb1, w1t, b1,
      wg2, bg2, wb2, bb2, w2t, b2, wsc, mask)

    return out.reshape(N, c_out, H, W)


# ------------------------ plain-JAX reference (for check) --------------------

def _reference(x, s, params, *, w_hpf=0.0, slope=0.2, eps=1e-5):
    hi = jax.lax.Precision.HIGHEST

    def adain(v, fc_w, fc_b):
        h = jnp.dot(s, fc_w.T, precision=hi) + fc_b
        C = v.shape[1]
        gamma = h[:, :C][:, :, None, None]
        beta = h[:, C:][:, :, None, None]
        mean = jnp.mean(v, axis=(2, 3), keepdims=True)
        var = jnp.mean((v - mean) ** 2, axis=(2, 3), keepdims=True)
        vn = (v - mean) / jnp.sqrt(var + eps)
        return (1.0 + gamma) * vn + beta

    def lrelu(v):
        return jnp.where(v > 0, v, slope * v)

    def conv3(v, w, b):
        y = jax.lax.conv_general_dilated(
            v, w, (1, 1), ((1, 1), (1, 1)),
            dimension_numbers=("NCHW", "OIHW", "NCHW"), precision=hi)
        return y + b[None, :, None, None]

    h = lrelu(adain(x, params["fc1_w"], params["fc1_b"]))
    h = conv3(h, params["conv1_w"], params["conv1_b"])
    h = lrelu(adain(h, params["fc2_w"], params["fc2_b"]))
    h = conv3(h, params["conv2_w"], params["conv2_b"])
    if "conv1x1_w" in params:
        sc = jax.lax.conv_general_dilated(
            x, params["conv1x1_w"], (1, 1), ((0, 0), (0, 0)),
            dimension_numbers=("NCHW", "OIHW", "NCHW"), precision=hi)
    else:
        sc = x
    if w_hpf == 0:
        h = (h + sc) / jnp.sqrt(2.0)
    return h


# ----------------------------------- main -------------------------------------

if __name__ == "__main__":
    key = jax.random.PRNGKey(0)
    N, dim_in, dim_out, style_dim, H, W = 2, 4, 8, 32, 16, 16
    keys = jax.random.split(key, 11)
    sc = 0.1
    params = {
        "fc1_w": sc * jax.random.normal(keys[0], (2 * dim_in, style_dim), jnp.float32),
        "fc1_b": sc * jax.random.normal(keys[1], (2 * dim_in,), jnp.float32),
        "fc2_w": sc * jax.random.normal(keys[2], (2 * dim_out, style_dim), jnp.float32),
        "fc2_b": sc * jax.random.normal(keys[3], (2 * dim_out,), jnp.float32),
        "conv1_w": sc * jax.random.normal(keys[4], (dim_out, dim_in, 3, 3), jnp.float32),
        "conv1_b": sc * jax.random.normal(keys[5], (dim_out,), jnp.float32),
        "conv2_w": sc * jax.random.normal(keys[6], (dim_out, dim_out, 3, 3), jnp.float32),
        "conv2_b": sc * jax.random.normal(keys[7], (dim_out,), jnp.float32),
        "conv1x1_w": sc * jax.random.normal(keys[8], (dim_out, dim_in, 1, 1), jnp.float32),
    }
    x = jax.random.normal(keys[9], (N, dim_in, H, W), jnp.float32)
    s = jax.random.normal(keys[10], (N, style_dim), jnp.float32)

    y = adain_resblk(x, s, params, w_hpf=0.0, upsample=False)
    y = jax.block_until_ready(y)

    y_ref = _reference(x, s, params, w_hpf=0.0)
    assert y.shape == (N, dim_out, H, W)
    # Tolerance covers MXU default-precision matmul passes in-kernel vs the
    # HIGHEST-precision XLA reference; structural errors would be O(0.1+).
    assert jnp.allclose(y, y_ref, atol=1e-2, rtol=1e-2), float(jnp.max(jnp.abs(y - y_ref)))
    print("KERNEL_OK")
</pallas_src>

<mosaic_0001>
module attributes {stable_mosaic.version = 11 : i64} {
  func.func @_adain_resblk_kernel(%arg0: i32, %arg1: memref<1x4x256xf32, #tpu.memory_space<vmem>>, %arg2: memref<1x1x32xf32, #tpu.memory_space<vmem>>, %arg3: memref<4x32xf32, #tpu.memory_space<vmem>>, %arg4: memref<4x1xf32, #tpu.memory_space<vmem>>, %arg5: memref<4x32xf32, #tpu.memory_space<vmem>>, %arg6: memref<4x1xf32, #tpu.memory_space<vmem>>, %arg7: memref<9x8x4xf32, #tpu.memory_space<vmem>>, %arg8: memref<8x1xf32, #tpu.memory_space<vmem>>, %arg9: memref<8x32xf32, #tpu.memory_space<vmem>>, %arg10: memref<8x1xf32, #tpu.memory_space<vmem>>, %arg11: memref<8x32xf32, #tpu.memory_space<vmem>>, %arg12: memref<8x1xf32, #tpu.memory_space<vmem>>, %arg13: memref<9x8x8xf32, #tpu.memory_space<vmem>>, %arg14: memref<8x1xf32, #tpu.memory_space<vmem>>, %arg15: memref<8x4xf32, #tpu.memory_space<vmem>>, %arg16: memref<9x1x256xf32, #tpu.memory_space<vmem>>, %arg17: memref<1x8x256xf32, #tpu.memory_space<vmem>>) attributes {dimension_semantics = [#tpu.dimension_semantics<parallel>], iteration_bounds = array<i64: 2>, scalar_prefetch = 0 : i64, scratch_operands = 0 : i64, tpu.core_type = #tpu.core_type<tc>, window_params = [{transform_indices = @transform_0, window_bounds = array<i64: 1, 4, 256>}, {transform_indices = @transform_1, window_bounds = array<i64: 1, 1, 32>}, {pipeline_mode = #tpu.pipeline_mode<synchronous>, transform_indices = @transform_2, window_bounds = array<i64: 4, 32>}, {pipeline_mode = #tpu.pipeline_mode<synchronous>, transform_indices = @transform_3, window_bounds = array<i64: 4, 1>}, {pipeline_mode = #tpu.pipeline_mode<synchronous>, transform_indices = @transform_4, window_bounds = array<i64: 4, 32>}, {pipeline_mode = #tpu.pipeline_mode<synchronous>, transform_indices = @transform_5, window_bounds = array<i64: 4, 1>}, {pipeline_mode = #tpu.pipeline_mode<synchronous>, transform_indices = @transform_6, window_bounds = array<i64: 9, 8, 4>}, {pipeline_mode = #tpu.pipeline_mode<synchronous>, transform_indices = @transform_7, window_bounds = array<i64: 8, 1>}, {pipeline_mode = #tpu.pipeline_mode<synchronous>, transform_indices = @transform_8, window_bounds = array<i64: 8, 32>}, {pipeline_mode = #tpu.pipeline_mode<synchronous>, transform_indices = @transform_9, window_bounds = array<i64: 8, 1>}, {pipeline_mode = #tpu.pipeline_mode<synchronous>, transform_indices = @transform_10, window_bounds = array<i64: 8, 32>}, {pipeline_mode = #tpu.pipeline_mode<synchronous>, transform_indices = @transform_11, window_bounds = array<i64: 8, 1>}, {pipeline_mode = #tpu.pipeline_mode<synchronous>, transform_indices = @transform_12, window_bounds = array<i64: 9, 8, 8>}, {pipeline_mode = #tpu.pipeline_mode<synchronous>, transform_indices = @transform_13, window_bounds = array<i64: 8, 1>}, {pipeline_mode = #tpu.pipeline_mode<synchronous>, transform_indices = @transform_14, window_bounds = array<i64: 8, 4>}, {pipeline_mode = #tpu.pipeline_mode<synchronous>, transform_indices = @transform_15, window_bounds = array<i64: 9, 1, 256>}, {transform_indices = @transform_16, window_bounds = array<i64: 1, 8, 256>}]} {
    %c0 = arith.constant 0 : index
    %c0_0 = arith.constant 0 : index
    %c0_1 = arith.constant 0 : index
    %0 = vector.load %arg1[%c0, %c0_0, %c0_1] : memref<1x4x256xf32, #tpu.memory_space<vmem>>, vector<1x4x256xf32>
    %1 = vector.shape_cast %0 : vector<1x4x256xf32> to vector<4x256xf32>
    %c0_2 = arith.constant 0 : index
    %c0_3 = arith.constant 0 : index
    %c0_4 = arith.constant 0 : index
    %2 = vector.load %arg2[%c0_2, %c0_3, %c0_4] : memref<1x1x32xf32, #tpu.memory_space<vmem>>, vector<1x1x32xf32>
    %3 = vector.shape_cast %2 : vector<1x1x32xf32> to vector<1x32xf32>
    %c0_5 = arith.constant 0 : index
    %c0_6 = arith.constant 0 : index
    %4 = vector.load %arg3[%c0_5, %c0_6] : memref<4x32xf32, #tpu.memory_space<vmem>>, vector<4x32xf32>
    %c0_7 = arith.constant 0 : index
    %c0_8 = arith.constant 0 : index
    %5 = vector.load %arg4[%c0_7, %c0_8] : memref<4x1xf32, #tpu.memory_space<vmem>>, vector<4x1xf32>
    %c0_9 = arith.constant 0 : index
    %c0_10 = arith.constant 0 : index
    %6 = vector.load %arg5[%c0_9, %c0_10] : memref<4x32xf32, #tpu.memory_space<vmem>>, vector<4x32xf32>
    %c0_11 = arith.constant 0 : index
    %c0_12 = arith.constant 0 : index
    %7 = vector.load %arg6[%c0_11, %c0_12] : memref<4x1xf32, #tpu.memory_space<vmem>>, vector<4x1xf32>
    %8 = vector.broadcast %3 : vector<1x32xf32> to vector<4x32xf32>
    %9 = arith.mulf %4, %8 : vector<4x32xf32>
    %cst = arith.constant dense<0.000000e+00> : vector<4xf32>
    %10 = vector.multi_reduction <add>, %9, %cst [1] : vector<4x32xf32> to vector<4xf32>
    %11 = vector.shape_cast %10 : vector<4xf32> to vector<4x1xf32>
    %12 = arith.addf %11, %5 : vector<4x1xf32>
    %13 = vector.broadcast %3 : vector<1x32xf32> to vector<4x32xf32>
    %14 = arith.mulf %6, %13 : vector<4x32xf32>
    %cst_13 = arith.constant dense<0.000000e+00> : vector<4xf32>
    %15 = vector.multi_reduction <add>, %14, %cst_13 [1] : vector<4x32xf32> to vector<4xf32>
    %16 = vector.shape_cast %15 : vector<4xf32> to vector<4x1xf32>
    %17 = arith.addf %16, %7 : vector<4x1xf32>
    %cst_14 = arith.constant dense<0.000000e+00> : vector<4xf32>
    %18 = vector.multi_reduction <add>, %1, %cst_14 [1] : vector<4x256xf32> to vector<4xf32>
    %19 = vector.shape_cast %18 : vector<4xf32> to vector<4x1xf32>
    %cst_15 = arith.constant 2.560000e+02 : f32
    %20 = vector.broadcast %cst_15 : f32 to vector<4x1xf32>
    %21 = arith.divf %19, %20 : vector<4x1xf32>
    %22 = vector.broadcast %21 : vector<4x1xf32> to vector<4x256xf32>
    %23 = arith.subf %1, %22 : vector<4x256xf32>
    %24 = arith.mulf %23, %23 : vector<4x256xf32>
    %cst_16 = arith.constant dense<0.000000e+00> : vector<4xf32>
    %25 = vector.multi_reduction <add>, %24, %cst_16 [1] : vector<4x256xf32> to vector<4xf32>
    %26 = vector.shape_cast %25 : vector<4xf32> to vector<4x1xf32>
    %cst_17 = arith.constant 2.560000e+02 : f32
    %27 = vector.broadcast %cst_17 : f32 to vector<4x1xf32>
    %28 = arith.divf %26, %27 : vector<4x1xf32>
    %29 = vector.broadcast %21 : vector<4x1xf32> to vector<4x256xf32>
    %30 = arith.subf %1, %29 : vector<4x256xf32>
    %cst_18 = arith.constant 9.99999974E-6 : f32
    %31 = vector.broadcast %cst_18 : f32 to vector<4x1xf32>
    %32 = arith.addf %28, %31 : vector<4x1xf32>
    %33 = math.rsqrt %32 : vector<4x1xf32>
    %34 = vector.broadcast %33 : vector<4x1xf32> to vector<4x256xf32>
    %35 = arith.mulf %30, %34 : vector<4x256xf32>
    %cst_19 = arith.constant 1.000000e+00 : f32
    %36 = vector.broadcast %cst_19 : f32 to vector<4x1xf32>
    %37 = arith.addf %36, %12 : vector<4x1xf32>
    %38 = vector.broadcast %37 : vector<4x1xf32> to vector<4x256xf32>
    %39 = arith.mulf %38, %35 : vector<4x256xf32>
    %40 = vector.broadcast %17 : vector<4x1xf32> to vector<4x256xf32>
    %41 = arith.addf %39, %40 : vector<4x256xf32>
    %cst_20 = arith.constant 0.000000e+00 : f32
    %42 = vector.broadcast %cst_20 : f32 to vector<4x256xf32>
    %43 = arith.cmpf ogt, %41, %42 : vector<4x256xf32>
    %cst_21 = arith.constant 2.000000e-01 : f32
    %44 = vector.broadcast %cst_21 : f32 to vector<4x256xf32>
    %45 = arith.mulf %44, %41 : vector<4x256xf32>
    %46 = arith.select %43, %41, %45 : vector<4x256xi1>, vector<4x256xf32>
    %c0_22 = arith.constant 0 : index
    %c0_23 = arith.constant 0 : index
    %47 = vector.load %arg8[%c0_22, %c0_23] : memref<8x1xf32, #tpu.memory_space<vmem>>, vector<8x1xf32>
    %cst_24 = arith.constant 0.000000e+00 : f32
    %48 = vector.broadcast %cst_24 : f32 to vector<8x256xf32>
    %c17_i32 = arith.constant 17 : i32
    %49 = tpu.dynamic_rotate %46 by %c17_i32 dim 1 : vector<4x256xf32>, i32 -> vector<4x256xf32>
    %c0_25 = arith.constant 0 : index
    %c0_26 = arith.constant 0 : index
    %c0_27 = arith.constant 0 : index
    %50 = vector.load %arg16[%c0_25, %c0_26, %c0_27] : memref<9x1x256xf32, #tpu.memory_space<vmem>>, vector<1x1x256xf32>
    %51 = vector.shape_cast %50 : vector<1x1x256xf32> to vector<1x256xf32>
    %52 = vector.broadcast %51 : vector<1x256xf32> to vector<4x256xf32>
    %53 = arith.mulf %49, %52 : vector<4x256xf32>
    %c0_28 = arith.constant 0 : index
    %c0_29 = arith.constant 0 : index
    %c0_30 = arith.constant 0 : index
    %54 = vector.load %arg7[%c0_28, %c0_29, %c0_30] : memref<9x8x4xf32, #tpu.memory_space<vmem>>, vector<1x8x4xf32>
    %55 = vector.shape_cast %54 : vector<1x8x4xf32> to vector<8x4xf32>
    %cst_31 = arith.constant dense<0.000000e+00> : vector<8x256xf32>
    %56 = tpu.matmul %55, %53, %cst_31 {dimension_numbers = #tpu.dot_dimension_numbers<[1], [0], [0], [1], [0, 0, 1, 1], [], []>} : vector<8x4xf32>, vector<4x256xf32>, vector<8x256xf32> -> vector<8x256xf32>
    %57 = arith.addf %48, %56 : vector<8x256xf32>
    %c16_i32 = arith.constant 16 : i32
    %58 = tpu.dynamic_rotate %46 by %c16_i32 dim 1 : vector<4x256xf32>, i32 -> vector<4x256xf32>
    %c1 = arith.constant 1 : index
    %c0_32 = arith.constant 0 : index
    %c0_33 = arith.constant 0 : index
    %59 = vector.load %arg16[%c1, %c0_32, %c0_33] : memref<9x1x256xf32, #tpu.memory_space<vmem>>, vector<1x1x256xf32>
    %60 = vector.shape_cast %59 : vector<1x1x256xf32> to vector<1x256xf32>
    %61 = vector.broadcast %60 : vector<1x256xf32> to vector<4x256xf32>
    %62 = arith.mulf %58, %61 : vector<4x256xf32>
    %c1_34 = arith.constant 1 : index
    %c0_35 = arith.constant 0 : index
    %c0_36 = arith.constant 0 : index
    %63 = vector.load %arg7[%c1_34, %c0_35, %c0_36] : memref<9x8x4xf32, #tpu.memory_space<vmem>>, vector<1x8x4xf32>
    %64 = vector.shape_cast %63 : vector<1x8x4xf32> to vector<8x4xf32>
    %cst_37 = arith.constant dense<0.000000e+00> : vector<8x256xf32>
    %65 = tpu.matmul %64, %62, %cst_37 {dimension_numbers = #tpu.dot_dimension_numbers<[1], [0], [0], [1], [0, 0, 1, 1], [], []>} : vector<8x4xf32>, vector<4x256xf32>, vector<8x256xf32> -> vector<8x256xf32>
    %66 = arith.addf %57, %65 : vector<8x256xf32>
    %c15_i32 = arith.constant 15 : i32
    %67 = tpu.dynamic_rotate %46 by %c15_i32 dim 1 : vector<4x256xf32>, i32 -> vector<4x256xf32>
    %c2 = arith.constant 2 : index
    %c0_38 = arith.constant 0 : index
    %c0_39 = arith.constant 0 : index
    %68 = vector.load %arg16[%c2, %c0_38, %c0_39] : memref<9x1x256xf32, #tpu.memory_space<vmem>>, vector<1x1x256xf32>
    %69 = vector.shape_cast %68 : vector<1x1x256xf32> to vector<1x256xf32>
    %70 = vector.broadcast %69 : vector<1x256xf32> to vector<4x256xf32>
    %71 = arith.mulf %67, %70 : vector<4x256xf32>
    %c2_40 = arith.constant 2 : index
    %c0_41 = arith.constant 0 : index
    %c0_42 = arith.constant 0 : index
    %72 = vector.load %arg7[%c2_40, %c0_41, %c0_42] : memref<9x8x4xf32, #tpu.memory_space<vmem>>, vector<1x8x4xf32>
    %73 = vector.shape_cast %72 : vector<1x8x4xf32> to vector<8x4xf32>
    %cst_43 = arith.constant dense<0.000000e+00> : vector<8x256xf32>
    %74 = tpu.matmul %73, %71, %cst_43 {dimension_numbers = #tpu.dot_dimension_numbers<[1], [0], [0], [1], [0, 0, 1, 1], [], []>} : vector<8x4xf32>, vector<4x256xf32>, vector<8x256xf32> -> vector<8x256xf32>
    %75 = arith.addf %66, %74 : vector<8x256xf32>
    %c1_i32 = arith.constant 1 : i32
    %76 = tpu.dynamic_rotate %46 by %c1_i32 dim 1 : vector<4x256xf32>, i32 -> vector<4x256xf32>
    %c3 = arith.constant 3 : index
    %c0_44 = arith.constant 0 : index
    %c0_45 = arith.constant 0 : index
    %77 = vector.load %arg16[%c3, %c0_44, %c0_45] : memref<9x1x256xf32, #tpu.memory_space<vmem>>, vector<1x1x256xf32>
    %78 = vector.shape_cast %77 : vector<1x1x256xf32> to vector<1x256xf32>
    %79 = vector.broadcast %78 : vector<1x256xf32> to vector<4x256xf32>
    %80 = arith.mulf %76, %79 : vector<4x256xf32>
    %c3_46 = arith.constant 3 : index
    %c0_47 = arith.constant 0 : index
    %c0_48 = arith.constant 0 : index
    %81 = vector.load %arg7[%c3_46, %c0_47, %c0_48] : memref<9x8x4xf32, #tpu.memory_space<vmem>>, vector<1x8x4xf32>
    %82 = vector.shape_cast %81 : vector<1x8x4xf32> to vector<8x4xf32>
    %cst_49 = arith.constant dense<0.000000e+00> : vector<8x256xf32>
    %83 = tpu.matmul %82, %80, %cst_49 {dimension_numbers = #tpu.dot_dimension_numbers<[1], [0], [0], [1], [0, 0, 1, 1], [], []>} : vector<8x4xf32>, vector<4x256xf32>, vector<8x256xf32> -> vector<8x256xf32>
    %84 = arith.addf %75, %83 : vector<8x256xf32>
    %c4 = arith.constant 4 : index
    %c0_50 = arith.constant 0 : index
    %c0_51 = arith.constant 0 : index
    %85 = vector.load %arg16[%c4, %c0_50, %c0_51] : memref<9x1x256xf32, #tpu.memory_space<vmem>>, vector<1x1x256xf32>
    %86 = vector.shape_cast %85 : vector<1x1x256xf32> to vector<1x256xf32>
    %87 = vector.broadcast %86 : vector<1x256xf32> to vector<4x256xf32>
    %88 = arith.mulf %46, %87 : vector<4x256xf32>
    %c4_52 = arith.constant 4 : index
    %c0_53 = arith.constant 0 : index
    %c0_54 = arith.constant 0 : index
    %89 = vector.load %arg7[%c4_52, %c0_53, %c0_54] : memref<9x8x4xf32, #tpu.memory_space<vmem>>, vector<1x8x4xf32>
    %90 = vector.shape_cast %89 : vector<1x8x4xf32> to vector<8x4xf32>
    %cst_55 = arith.constant dense<0.000000e+00> : vector<8x256xf32>
    %91 = tpu.matmul %90, %88, %cst_55 {dimension_numbers = #tpu.dot_dimension_numbers<[1], [0], [0], [1], [0, 0, 1, 1], [], []>} : vector<8x4xf32>, vector<4x256xf32>, vector<8x256xf32> -> vector<8x256xf32>
    %92 = arith.addf %84, %91 : vector<8x256xf32>
    %c255_i32 = arith.constant 255 : i32
    %93 = tpu.dynamic_rotate %46 by %c255_i32 dim 1 : vector<4x256xf32>, i32 -> vector<4x256xf32>
    %c5 = arith.constant 5 : index
    %c0_56 = arith.constant 0 : index
    %c0_57 = arith.constant 0 : index
    %94 = vector.load %arg16[%c5, %c0_56, %c0_57] : memref<9x1x256xf32, #tpu.memory_space<vmem>>, vector<1x1x256xf32>
    %95 = vector.shape_cast %94 : vector<1x1x256xf32> to vector<1x256xf32>
    %96 = vector.broadcast %95 : vector<1x256xf32> to vector<4x256xf32>
    %97 = arith.mulf %93, %96 : vector<4x256xf32>
    %c5_58 = arith.constant 5 : index
    %c0_59 = arith.constant 0 : index
    %c0_60 = arith.constant 0 : index
    %98 = vector.load %arg7[%c5_58, %c0_59, %c0_60] : memref<9x8x4xf32, #tpu.memory_space<vmem>>, vector<1x8x4xf32>
    %99 = vector.shape_cast %98 : vector<1x8x4xf32> to vector<8x4xf32>
    %cst_61 = arith.constant dense<0.000000e+00> : vector<8x256xf32>
    %100 = tpu.matmul %99, %97, %cst_61 {dimension_numbers = #tpu.dot_dimension_numbers<[1], [0], [0], [1], [0, 0, 1, 1], [], []>} : vector<8x4xf32>, vector<4x256xf32>, vector<8x256xf32> -> vector<8x256xf32>
    %101 = arith.addf %92, %100 : vector<8x256xf32>
    %c241_i32 = arith.constant 241 : i32
    %102 = tpu.dynamic_rotate %46 by %c241_i32 dim 1 : vector<4x256xf32>, i32 -> vector<4x256xf32>
    %c6 = arith.constant 6 : index
    %c0_62 = arith.constant 0 : index
    %c0_63 = arith.constant 0 : index
    %103 = vector.load %arg16[%c6, %c0_62, %c0_63] : memref<9x1x256xf32, #tpu.memory_space<vmem>>, vector<1x1x256xf32>
    %104 = vector.shape_cast %103 : vector<1x1x256xf32> to vector<1x256xf32>
    %105 = vector.broadcast %104 : vector<1x256xf32> to vector<4x256xf32>
    %106 = arith.mulf %102, %105 : vector<4x256xf32>
    %c6_64 = arith.constant 6 : index
    %c0_65 = arith.constant 0 : index
    %c0_66 = arith.constant 0 : index
    %107 = vector.load %arg7[%c6_64, %c0_65, %c0_66] : memref<9x8x4xf32, #tpu.memory_space<vmem>>, vector<1x8x4xf32>
    %108 = vector.shape_cast %107 : vector<1x8x4xf32> to vector<8x4xf32>
    %cst_67 = arith.constant dense<0.000000e+00> : vector<8x256xf32>
    %109 = tpu.matmul %108, %106, %cst_67 {dimension_numbers = #tpu.dot_dimension_numbers<[1], [0], [0], [1], [0, 0, 1, 1], [], []>} : vector<8x4xf32>, vector<4x256xf32>, vector<8x256xf32> -> vector<8x256xf32>
    %110 = arith.addf %101, %109 : vector<8x256xf32>
    %c240_i32 = arith.constant 240 : i32
    %111 = tpu.dynamic_rotate %46 by %c240_i32 dim 1 : vector<4x256xf32>, i32 -> vector<4x256xf32>
    %c7 = arith.constant 7 : index
    %c0_68 = arith.constant 0 : index
    %c0_69 = arith.constant 0 : index
    %112 = vector.load %arg16[%c7, %c0_68, %c0_69] : memref<9x1x256xf32, #tpu.memory_space<vmem>>, vector<1x1x256xf32>
    %113 = vector.shape_cast %112 : vector<1x1x256xf32> to vector<1x256xf32>
    %114 = vector.broadcast %113 : vector<1x256xf32> to vector<4x256xf32>
    %115 = arith.mulf %111, %114 : vector<4x256xf32>
    %c7_70 = arith.constant 7 : index
    %c0_71 = arith.constant 0 : index
    %c0_72 = arith.constant 0 : index
    %116 = vector.load %arg7[%c7_70, %c0_71, %c0_72] : memref<9x8x4xf32, #tpu.memory_space<vmem>>, vector<1x8x4xf32>
    %117 = vector.shape_cast %116 : vector<1x8x4xf32> to vector<8x4xf32>
    %cst_73 = arith.constant dense<0.000000e+00> : vector<8x256xf32>
    %118 = tpu.matmul %117, %115, %cst_73 {dimension_numbers = #tpu.dot_dimension_numbers<[1], [0], [0], [1], [0, 0, 1, 1], [], []>} : vector<8x4xf32>, vector<4x256xf32>, vector<8x256xf32> -> vector<8x256xf32>
    %119 = arith.addf %110, %118 : vector<8x256xf32>
    %c239_i32 = arith.constant 239 : i32
    %120 = tpu.dynamic_rotate %46 by %c239_i32 dim 1 : vector<4x256xf32>, i32 -> vector<4x256xf32>
    %c8 = arith.constant 8 : index
    %c0_74 = arith.constant 0 : index
    %c0_75 = arith.constant 0 : index
    %121 = vector.load %arg16[%c8, %c0_74, %c0_75] : memref<9x1x256xf32, #tpu.memory_space<vmem>>, vector<1x1x256xf32>
    %122 = vector.shape_cast %121 : vector<1x1x256xf32> to vector<1x256xf32>
    %123 = vector.broadcast %122 : vector<1x256xf32> to vector<4x256xf32>
    %124 = arith.mulf %120, %123 : vector<4x256xf32>
    %c8_76 = arith.constant 8 : index
    %c0_77 = arith.constant 0 : index
    %c0_78 = arith.constant 0 : index
    %125 = vector.load %arg7[%c8_76, %c0_77, %c0_78] : memref<9x8x4xf32, #tpu.memory_space<vmem>>, vector<1x8x4xf32>
    %126 = vector.shape_cast %125 : vector<1x8x4xf32> to vector<8x4xf32>
    %cst_79 = arith.constant dense<0.000000e+00> : vector<8x256xf32>
    %127 = tpu.matmul %126, %124, %cst_79 {dimension_numbers = #tpu.dot_dimension_numbers<[1], [0], [0], [1], [0, 0, 1, 1], [], []>} : vector<8x4xf32>, vector<4x256xf32>, vector<8x256xf32> -> vector<8x256xf32>
    %128 = arith.addf %119, %127 : vector<8x256xf32>
    %129 = vector.broadcast %47 : vector<8x1xf32> to vector<8x256xf32>
    %130 = arith.addf %128, %129 : vector<8x256xf32>
    %c0_80 = arith.constant 0 : index
    %c0_81 = arith.constant 0 : index
    %131 = vector.load %arg9[%c0_80, %c0_81] : memref<8x32xf32, #tpu.memory_space<vmem>>, vector<8x32xf32>
    %c0_82 = arith.constant 0 : index
    %c0_83 = arith.constant 0 : index
    %132 = vector.load %arg10[%c0_82, %c0_83] : memref<8x1xf32, #tpu.memory_space<vmem>>, vector<8x1xf32>
    %c0_84 = arith.constant 0 : index
    %c0_85 = arith.constant 0 : index
    %133 = vector.load %arg11[%c0_84, %c0_85] : memref<8x32xf32, #tpu.memory_space<vmem>>, vector<8x32xf32>
    %c0_86 = arith.constant 0 : index
    %c0_87 = arith.constant 0 : index
    %134 = vector.load %arg12[%c0_86, %c0_87] : memref<8x1xf32, #tpu.memory_space<vmem>>, vector<8x1xf32>
    %135 = vector.broadcast %3 : vector<1x32xf32> to vector<8x32xf32>
    %136 = arith.mulf %131, %135 : vector<8x32xf32>
    %cst_88 = arith.constant dense<0.000000e+00> : vector<8xf32>
    %137 = vector.multi_reduction <add>, %136, %cst_88 [1] : vector<8x32xf32> to vector<8xf32>
    %138 = vector.shape_cast %137 : vector<8xf32> to vector<8x1xf32>
    %139 = arith.addf %138, %132 : vector<8x1xf32>
    %140 = vector.broadcast %3 : vector<1x32xf32> to vector<8x32xf32>
    %141 = arith.mulf %133, %140 : vector<8x32xf32>
    %cst_89 = arith.constant dense<0.000000e+00> : vector<8xf32>
    %142 = vector.multi_reduction <add>, %141, %cst_89 [1] : vector<8x32xf32> to vector<8xf32>
    %143 = vector.shape_cast %142 : vector<8xf32> to vector<8x1xf32>
    %144 = arith.addf %143, %134 : vector<8x1xf32>
    %cst_90 = arith.constant dense<0.000000e+00> : vector<8xf32>
    %145 = vector.multi_reduction <add>, %130, %cst_90 [1] : vector<8x256xf32> to vector<8xf32>
    %146 = vector.shape_cast %145 : vector<8xf32> to vector<8x1xf32>
    %cst_91 = arith.constant 2.560000e+02 : f32
    %147 = vector.broadcast %cst_91 : f32 to vector<8x1xf32>
    %148 = arith.divf %146, %147 : vector<8x1xf32>
    %149 = vector.broadcast %148 : vector<8x1xf32> to vector<8x256xf32>
    %150 = arith.subf %130, %149 : vector<8x256xf32>
    %151 = arith.mulf %150, %150 : vector<8x256xf32>
    %cst_92 = arith.constant dense<0.000000e+00> : vector<8xf32>
    %152 = vector.multi_reduction <add>, %151, %cst_92 [1] : vector<8x256xf32> to vector<8xf32>
    %153 = vector.shape_cast %152 : vector<8xf32> to vector<8x1xf32>
    %cst_93 = arith.constant 2.560000e+02 : f32
    %154 = vector.broadcast %cst_93 : f32 to vector<8x1xf32>
    %155 = arith.divf %153, %154 : vector<8x1xf32>
    %156 = vector.broadcast %148 : vector<8x1xf32> to vector<8x256xf32>
    %157 = arith.subf %130, %156 : vector<8x256xf32>
    %cst_94 = arith.constant 9.99999974E-6 : f32
    %158 = vector.broadcast %cst_94 : f32 to vector<8x1xf32>
    %159 = arith.addf %155, %158 : vector<8x1xf32>
    %160 = math.rsqrt %159 : vector<8x1xf32>
    %161 = vector.broadcast %160 : vector<8x1xf32> to vector<8x256xf32>
    %162 = arith.mulf %157, %161 : vector<8x256xf32>
    %cst_95 = arith.constant 1.000000e+00 : f32
    %163 = vector.broadcast %cst_95 : f32 to vector<8x1xf32>
    %164 = arith.addf %163, %139 : vector<8x1xf32>
    %165 = vector.broadcast %164 : vector<8x1xf32> to vector<8x256xf32>
    %166 = arith.mulf %165, %162 : vector<8x256xf32>
    %167 = vector.broadcast %144 : vector<8x1xf32> to vector<8x256xf32>
    %168 = arith.addf %166, %167 : vector<8x256xf32>
    %cst_96 = arith.constant 0.000000e+00 : f32
    %169 = vector.broadcast %cst_96 : f32 to vector<8x256xf32>
    %170 = arith.cmpf ogt, %168, %169 : vector<8x256xf32>
    %cst_97 = arith.constant 2.000000e-01 : f32
    %171 = vector.broadcast %cst_97 : f32 to vector<8x256xf32>
    %172 = arith.mulf %171, %168 : vector<8x256xf32>
    %173 = arith.select %170, %168, %172 : vector<8x256xi1>, vector<8x256xf32>
    %c0_98 = arith.constant 0 : index
    %c0_99 = arith.constant 0 : index
    %174 = vector.load %arg14[%c0_98, %c0_99] : memref<8x1xf32, #tpu.memory_space<vmem>>, vector<8x1xf32>
    %cst_100 = arith.constant 0.000000e+00 : f32
    %175 = vector.broadcast %cst_100 : f32 to vector<8x256xf32>
    %c17_i32_101 = arith.constant 17 : i32
    %176 = tpu.dynamic_rotate %173 by %c17_i32_101 dim 1 : vector<8x256xf32>, i32 -> vector<8x256xf32>
    %c0_102 = arith.constant 0 : index
    %c0_103 = arith.constant 0 : index
    %c0_104 = arith.constant 0 : index
    %177 = vector.load %arg16[%c0_102, %c0_103, %c0_104] : memref<9x1x256xf32, #tpu.memory_space<vmem>>, vector<1x1x256xf32>
    %178 = vector.shape_cast %177 : vector<1x1x256xf32> to vector<1x256xf32>
    %179 = vector.broadcast %178 : vector<1x256xf32> to vector<8x256xf32>
    %180 = arith.mulf %176, %179 : vector<8x256xf32>
    %c0_105 = arith.constant 0 : index
    %c0_106 = arith.constant 0 : index
    %c0_107 = arith.constant 0 : index
    %181 = vector.load %arg13[%c0_105, %c0_106, %c0_107] : memref<9x8x8xf32, #tpu.memory_space<vmem>>, vector<1x8x8xf32>
    %182 = vector.shape_cast %181 : vector<1x8x8xf32> to vector<8x8xf32>
    %cst_108 = arith.constant dense<0.000000e+00> : vector<8x256xf32>
    %183 = tpu.matmul %182, %180, %cst_108 {dimension_numbers = #tpu.dot_dimension_numbers<[1], [0], [0], [1], [0, 0, 1, 1], [], []>} : vector<8x8xf32>, vector<8x256xf32>, vector<8x256xf32> -> vector<8x256xf32>
    %184 = arith.addf %175, %183 : vector<8x256xf32>
    %c16_i32_109 = arith.constant 16 : i32
    %185 = tpu.dynamic_rotate %173 by %c16_i32_109 dim 1 : vector<8x256xf32>, i32 -> vector<8x256xf32>
    %c1_110 = arith.constant 1 : index
    %c0_111 = arith.constant 0 : index
    %c0_112 = arith.constant 0 : index
    %186 = vector.load %arg16[%c1_110, %c0_111, %c0_112] : memref<9x1x256xf32, #tpu.memory_space<vmem>>, vector<1x1x256xf32>
    %187 = vector.shape_cast %186 : vector<1x1x256xf32> to vector<1x256xf32>
    %188 = vector.broadcast %187 : vector<1x256xf32> to vector<8x256xf32>
    %189 = arith.mulf %185, %188 : vector<8x256xf32>
    %c1_113 = arith.constant 1 : index
    %c0_114 = arith.constant 0 : index
    %c0_115 = arith.constant 0 : index
    %190 = vector.load %arg13[%c1_113, %c0_114, %c0_115] : memref<9x8x8xf32, #tpu.memory_space<vmem>>, vector<1x8x8xf32>
    %191 = vector.shape_cast %190 : vector<1x8x8xf32> to vector<8x8xf32>
    %cst_116 = arith.constant dense<0.000000e+00> : vector<8x256xf32>
    %192 = tpu.matmul %191, %189, %cst_116 {dimension_numbers = #tpu.dot_dimension_numbers<[1], [0], [0], [1], [0, 0, 1, 1], [], []>} : vector<8x8xf32>, vector<8x256xf32>, vector<8x256xf32> -> vector<8x256xf32>
    %193 = arith.addf %184, %192 : vector<8x256xf32>
    %c15_i32_117 = arith.constant 15 : i32
    %194 = tpu.dynamic_rotate %173 by %c15_i32_117 dim 1 : vector<8x256xf32>, i32 -> vector<8x256xf32>
    %c2_118 = arith.constant 2 : index
    %c0_119 = arith.constant 0 : index
    %c0_120 = arith.constant 0 : index
    %195 = vector.load %arg16[%c2_118, %c0_119, %c0_120] : memref<9x1x256xf32, #tpu.memory_space<vmem>>, vector<1x1x256xf32>
    %196 = vector.shape_cast %195 : vector<1x1x256xf32> to vector<1x256xf32>
    %197 = vector.broadcast %196 : vector<1x256xf32> to vector<8x256xf32>
    %198 = arith.mulf %194, %197 : vector<8x256xf32>
    %c2_121 = arith.constant 2 : index
    %c0_122 = arith.constant 0 : index
    %c0_123 = arith.constant 0 : index
    %199 = vector.load %arg13[%c2_121, %c0_122, %c0_123] : memref<9x8x8xf32, #tpu.memory_space<vmem>>, vector<1x8x8xf32>
    %200 = vector.shape_cast %199 : vector<1x8x8xf32> to vector<8x8xf32>
    %cst_124 = arith.constant dense<0.000000e+00> : vector<8x256xf32>
    %201 = tpu.matmul %200, %198, %cst_124 {dimension_numbers = #tpu.dot_dimension_numbers<[1], [0], [0], [1], [0, 0, 1, 1], [], []>} : vector<8x8xf32>, vector<8x256xf32>, vector<8x256xf32> -> vector<8x256xf32>
    %202 = arith.addf %193, %201 : vector<8x256xf32>
    %c1_i32_125 = arith.constant 1 : i32
    %203 = tpu.dynamic_rotate %173 by %c1_i32_125 dim 1 : vector<8x256xf32>, i32 -> vector<8x256xf32>
    %c3_126 = arith.constant 3 : index
    %c0_127 = arith.constant 0 : index
    %c0_128 = arith.constant 0 : index
    %204 = vector.load %arg16[%c3_126, %c0_127, %c0_128] : memref<9x1x256xf32, #tpu.memory_space<vmem>>, vector<1x1x256xf32>
    %205 = vector.shape_cast %204 : vector<1x1x256xf32> to vector<1x256xf32>
    %206 = vector.broadcast %205 : vector<1x256xf32> to vector<8x256xf32>
    %207 = arith.mulf %203, %206 : vector<8x256xf32>
    %c3_129 = arith.constant 3 : index
    %c0_130 = arith.constant 0 : index
    %c0_131 = arith.constant 0 : index
    %208 = vector.load %arg13[%c3_129, %c0_130, %c0_131] : memref<9x8x8xf32, #tpu.memory_space<vmem>>, vector<1x8x8xf32>
    %209 = vector.shape_cast %208 : vector<1x8x8xf32> to vector<8x8xf32>
    %cst_132 = arith.constant dense<0.000000e+00> : vector<8x256xf32>
    %210 = tpu.matmul %209, %207, %cst_132 {dimension_numbers = #tpu.dot_dimension_numbers<[1], [0], [0], [1], [0, 0, 1, 1], [], []>} : vector<8x8xf32>, vector<8x256xf32>, vector<8x256xf32> -> vector<8x256xf32>
    %211 = arith.addf %202, %210 : vector<8x256xf32>
    %c4_133 = arith.constant 4 : index
    %c0_134 = arith.constant 0 : index
    %c0_135 = arith.constant 0 : index
    %212 = vector.load %arg16[%c4_133, %c0_134, %c0_135] : memref<9x1x256xf32, #tpu.memory_space<vmem>>, vector<1x1x256xf32>
    %213 = vector.shape_cast %212 : vector<1x1x256xf32> to vector<1x256xf32>
    %214 = vector.broadcast %213 : vector<1x256xf32> to vector<8x256xf32>
    %215 = arith.mulf %173, %214 : vector<8x256xf32>
    %c4_136 = arith.constant 4 : index
    %c0_137 = arith.constant 0 : index
    %c0_138 = arith.constant 0 : index
    %216 = vector.load %arg13[%c4_136, %c0_137, %c0_138] : memref<9x8x8xf32, #tpu.memory_space<vmem>>, vector<1x8x8xf32>
    %217 = vector.shape_cast %216 : vector<1x8x8xf32> to vector<8x8xf32>
    %cst_139 = arith.constant dense<0.000000e+00> : vector<8x256xf32>
    %218 = tpu.matmul %217, %215, %cst_139 {dimension_numbers = #tpu.dot_dimension_numbers<[1], [0], [0], [1], [0, 0, 1, 1], [], []>} : vector<8x8xf32>, vector<8x256xf32>, vector<8x256xf32> -> vector<8x256xf32>
    %219 = arith.addf %211, %218 : vector<8x256xf32>
    %c255_i32_140 = arith.constant 255 : i32
    %220 = tpu.dynamic_rotate %173 by %c255_i32_140 dim 1 : vector<8x256xf32>, i32 -> vector<8x256xf32>
    %c5_141 = arith.constant 5 : index
    %c0_142 = arith.constant 0 : index
    %c0_143 = arith.constant 0 : index
    %221 = vector.load %arg16[%c5_141, %c0_142, %c0_143] : memref<9x1x256xf32, #tpu.memory_space<vmem>>, vector<1x1x256xf32>
    %222 = vector.shape_cast %221 : vector<1x1x256xf32> to vector<1x256xf32>
    %223 = vector.broadcast %222 : vector<1x256xf32> to vector<8x256xf32>
    %224 = arith.mulf %220, %223 : vector<8x256xf32>
    %c5_144 = arith.constant 5 : index
    %c0_145 = arith.constant 0 : index
    %c0_146 = arith.constant 0 : index
    %225 = vector.load %arg13[%c5_144, %c0_145, %c0_146] : memref<9x8x8xf32, #tpu.memory_space<vmem>>, vector<1x8x8xf32>
    %226 = vector.shape_cast %225 : vector<1x8x8xf32> to vector<8x8xf32>
    %cst_147 = arith.constant dense<0.000000e+00> : vector<8x256xf32>
    %227 = tpu.matmul %226, %224, %cst_147 {dimension_numbers = #tpu.dot_dimension_numbers<[1], [0], [0], [1], [0, 0, 1, 1], [], []>} : vector<8x8xf32>, vector<8x256xf32>, vector<8x256xf32> -> vector<8x256xf32>
    %228 = arith.addf %219, %227 : vector<8x256xf32>
    %c241_i32_148 = arith.constant 241 : i32
    %229 = tpu.dynamic_rotate %173 by %c241_i32_148 dim 1 : vector<8x256xf32>, i32 -> vector<8x256xf32>
    %c6_149 = arith.constant 6 : index
    %c0_150 = arith.constant 0 : index
    %c0_151 = arith.constant 0 : index
    %230 = vector.load %arg16[%c6_149, %c0_150, %c0_151] : memref<9x1x256xf32, #tpu.memory_space<vmem>>, vector<1x1x256xf32>
    %231 = vector.shape_cast %230 : vector<1x1x256xf32> to vector<1x256xf32>
    %232 = vector.broadcast %231 : vector<1x256xf32> to vector<8x256xf32>
    %233 = arith.mulf %229, %232 : vector<8x256xf32>
    %c6_152 = arith.constant 6 : index
    %c0_153 = arith.constant 0 : index
    %c0_154 = arith.constant 0 : index
    %234 = vector.load %arg13[%c6_152, %c0_153, %c0_154] : memref<9x8x8xf32, #tpu.memory_space<vmem>>, vector<1x8x8xf32>
    %235 = vector.shape_cast %234 : vector<1x8x8xf32> to vector<8x8xf32>
    %cst_155 = arith.constant dense<0.000000e+00> : vector<8x256xf32>
    %236 = tpu.matmul %235, %233, %cst_155 {dimension_numbers = #tpu.dot_dimension_numbers<[1], [0], [0], [1], [0, 0, 1, 1], [], []>} : vector<8x8xf32>, vector<8x256xf32>, vector<8x256xf32> -> vector<8x256xf32>
    %237 = arith.addf %228, %236 : vector<8x256xf32>
    %c240_i32_156 = arith.constant 240 : i32
    %238 = tpu.dynamic_rotate %173 by %c240_i32_156 dim 1 : vector<8x256xf32>, i32 -> vector<8x256xf32>
    %c7_157 = arith.constant 7 : index
    %c0_158 = arith.constant 0 : index
    %c0_159 = arith.constant 0 : index
    %239 = vector.load %arg16[%c7_157, %c0_158, %c0_159] : memref<9x1x256xf32, #tpu.memory_space<vmem>>, vector<1x1x256xf32>
    %240 = vector.shape_cast %239 : vector<1x1x256xf32> to vector<1x256xf32>
    %241 = vector.broadcast %240 : vector<1x256xf32> to vector<8x256xf32>
    %242 = arith.mulf %238, %241 : vector<8x256xf32>
    %c7_160 = arith.constant 7 : index
    %c0_161 = arith.constant 0 : index
    %c0_162 = arith.constant 0 : index
    %243 = vector.load %arg13[%c7_160, %c0_161, %c0_162] : memref<9x8x8xf32, #tpu.memory_space<vmem>>, vector<1x8x8xf32>
    %244 = vector.shape_cast %243 : vector<1x8x8xf32> to vector<8x8xf32>
    %cst_163 = arith.constant dense<0.000000e+00> : vector<8x256xf32>
    %245 = tpu.matmul %244, %242, %cst_163 {dimension_numbers = #tpu.dot_dimension_numbers<[1], [0], [0], [1], [0, 0, 1, 1], [], []>} : vector<8x8xf32>, vector<8x256xf32>, vector<8x256xf32> -> vector<8x256xf32>
    %246 = arith.addf %237, %245 : vector<8x256xf32>
    %c239_i32_164 = arith.constant 239 : i32
    %247 = tpu.dynamic_rotate %173 by %c239_i32_164 dim 1 : vector<8x256xf32>, i32 -> vector<8x256xf32>
    %c8_165 = arith.constant 8 : index
    %c0_166 = arith.constant 0 : index
    %c0_167 = arith.constant 0 : index
    %248 = vector.load %arg16[%c8_165, %c0_166, %c0_167] : memref<9x1x256xf32, #tpu.memory_space<vmem>>, vector<1x1x256xf32>
    %249 = vector.shape_cast %248 : vector<1x1x256xf32> to vector<1x256xf32>
    %250 = vector.broadcast %249 : vector<1x256xf32> to vector<8x256xf32>
    %251 = arith.mulf %247, %250 : vector<8x256xf32>
    %c8_168 = arith.constant 8 : index
    %c0_169 = arith.constant 0 : index
    %c0_170 = arith.constant 0 : index
    %252 = vector.load %arg13[%c8_168, %c0_169, %c0_170] : memref<9x8x8xf32, #tpu.memory_space<vmem>>, vector<1x8x8xf32>
    %253 = vector.shape_cast %252 : vector<1x8x8xf32> to vector<8x8xf32>
    %cst_171 = arith.constant dense<0.000000e+00> : vector<8x256xf32>
    %254 = tpu.matmul %253, %251, %cst_171 {dimension_numbers = #tpu.dot_dimension_numbers<[1], [0], [0], [1], [0, 0, 1, 1], [], []>} : vector<8x8xf32>, vector<8x256xf32>, vector<8x256xf32> -> vector<8x256xf32>
    %255 = arith.addf %246, %254 : vector<8x256xf32>
    %256 = vector.broadcast %174 : vector<8x1xf32> to vector<8x256xf32>
    %257 = arith.addf %255, %256 : vector<8x256xf32>
    %c0_172 = arith.constant 0 : index
    %c0_173 = arith.constant 0 : index
    %258 = vector.load %arg15[%c0_172, %c0_173] : memref<8x4xf32, #tpu.memory_space<vmem>>, vector<8x4xf32>
    %cst_174 = arith.constant dense<0.000000e+00> : vector<8x256xf32>
    %259 = tpu.matmul %258, %1, %cst_174 {dimension_numbers = #tpu.dot_dimension_numbers<[1], [0], [0], [1], [0, 0, 1, 1], [], []>} : vector<8x4xf32>, vector<4x256xf32>, vector<8x256xf32> -> vector<8x256xf32>
    %260 = arith.addf %257, %259 : vector<8x256xf32>
    %cst_175 = arith.constant 0.707106769 : f32
    %261 = vector.broadcast %cst_175 : f32 to vector<8x256xf32>
    %262 = arith.mulf %260, %261 : vector<8x256xf32>
    %c0_176 = arith.constant 0 : index
    %c0_177 = arith.constant 0 : index
    %c0_178 = arith.constant 0 : index
    %263 = vector.load %arg17[%c0_176, %c0_177, %c0_178] : memref<1x8x256xf32, #tpu.memory_space<vmem>>, vector<1x8x256xf32>
    %264 = vector.shape_cast %263 : vector<1x8x256xf32> to vector<8x256xf32>
    %265 = vector.shape_cast %262 : vector<8x256xf32> to vector<1x8x256xf32>
    tpu.vector_store %arg17[%c0_176, %c0_177, %c0_178], %265 {strides = array<i32>} : memref<1x8x256xf32, #tpu.memory_space<vmem>>, vector<1x8x256xf32>,
    return
  }
  func.func @transform_0(%arg0: i32) -> (i32, i32, i32) {
    %c0_i32 = arith.constant 0 : i32
    %c0_i32_0 = arith.constant 0 : i32
    %c0_i32_1 = arith.constant 0 : i32
    return %arg0, %c0_i32, %c0_i32_0 : i32, i32, i32
  }
  func.func @transform_1(%arg0: i32) -> (i32, i32, i32) {
    %c0_i32 = arith.constant 0 : i32
    %c0_i32_0 = arith.constant 0 : i32
    %c0_i32_1 = arith.constant 0 : i32
    return %arg0, %c0_i32, %c0_i32_0 : i32, i32, i32
  }
  func.func @transform_2(%arg0: i32) -> (i32, i32) {
    %c0_i32 = arith.constant 0 : i32
    %c0_i32_0 = arith.constant 0 : i32
    %c0_i32_1 = arith.constant 0 : i32
    return %c0_i32, %c0_i32_0 : i32, i32
  }
  func.func @transform_3(%arg0: i32) -> (i32, i32) {
    %c0_i32 = arith.constant 0 : i32
    %c0_i32_0 = arith.constant 0 : i32
    %c0_i32_1 = arith.constant 0 : i32
    return %c0_i32, %c0_i32_0 : i32, i32
  }
  func.func @transform_4(%arg0: i32) -> (i32, i32) {
    %c0_i32 = arith.constant 0 : i32
    %c0_i32_0 = arith.constant 0 : i32
    %c0_i32_1 = arith.constant 0 : i32
    return %c0_i32, %c0_i32_0 : i32, i32
  }
  func.func @transform_5(%arg0: i32) -> (i32, i32) {
    %c0_i32 = arith.constant 0 : i32
    %c0_i32_0 = arith.constant 0 : i32
    %c0_i32_1 = arith.constant 0 : i32
    return %c0_i32, %c0_i32_0 : i32, i32
  }
  func.func @transform_6(%arg0: i32) -> (i32, i32, i32) {
    %c0_i32 = arith.constant 0 : i32
    %c0_i32_0 = arith.constant 0 : i32
    %c0_i32_1 = arith.constant 0 : i32
    %c0_i32_2 = arith.constant 0 : i32
    return %c0_i32, %c0_i32_0, %c0_i32_1 : i32, i32, i32
  }
  func.func @transform_7(%arg0: i32) -> (i32, i32) {
    %c0_i32 = arith.constant 0 : i32
    %c0_i32_0 = arith.constant 0 : i32
    %c0_i32_1 = arith.constant 0 : i32
    return %c0_i32, %c0_i32_0 : i32, i32
  }
  func.func @transform_8(%arg0: i32) -> (i32, i32) {
    %c0_i32 = arith.constant 0 : i32
    %c0_i32_0 = arith.constant 0 : i32
    %c0_i32_1 = arith.constant 0 : i32
    return %c0_i32, %c0_i32_0 : i32, i32
  }
  func.func @transform_9(%arg0: i32) -> (i32, i32) {
    %c0_i32 = arith.constant 0 : i32
    %c0_i32_0 = arith.constant 0 : i32
    %c0_i32_1 = arith.constant 0 : i32
    return %c0_i32, %c0_i32_0 : i32, i32
  }
  func.func @transform_10(%arg0: i32) -> (i32, i32) {
    %c0_i32 = arith.constant 0 : i32
    %c0_i32_0 = arith.constant 0 : i32
    %c0_i32_1 = arith.constant 0 : i32
    return %c0_i32, %c0_i32_0 : i32, i32
  }
  func.func @transform_11(%arg0: i32) -> (i32, i32) {
    %c0_i32 = arith.constant 0 : i32
    %c0_i32_0 = arith.constant 0 : i32
    %c0_i32_1 = arith.constant 0 : i32
    return %c0_i32, %c0_i32_0 : i32, i32
  }
  func.func @transform_12(%arg0: i32) -> (i32, i32, i32) {
    %c0_i32 = arith.constant 0 : i32
    %c0_i32_0 = arith.constant 0 : i32
    %c0_i32_1 = arith.constant 0 : i32
    %c0_i32_2 = arith.constant 0 : i32
    return %c0_i32, %c0_i32_0, %c0_i32_1 : i32, i32, i32
  }
  func.func @transform_13(%arg0: i32) -> (i32, i32) {
    %c0_i32 = arith.constant 0 : i32
    %c0_i32_0 = arith.constant 0 : i32
    %c0_i32_1 = arith.constant 0 : i32
    return %c0_i32, %c0_i32_0 : i32, i32
  }
  func.func @transform_14(%arg0: i32) -> (i32, i32) {
    %c0_i32 = arith.constant 0 : i32
    %c0_i32_0 = arith.constant 0 : i32
    %c0_i32_1 = arith.constant 0 : i32
    return %c0_i32, %c0_i32_0 : i32, i32
  }
  func.func @transform_15(%arg0: i32) -> (i32, i32, i32) {
    %c0_i32 = arith.constant 0 : i32
    %c0_i32_0 = arith.constant 0 : i32
    %c0_i32_1 = arith.constant 0 : i32
    %c0_i32_2 = arith.constant 0 : i32
    return %c0_i32, %c0_i32_0, %c0_i32_1 : i32, i32, i32
  }
  func.func @transform_16(%arg0: i32) -> (i32, i32, i32) {
    %c0_i32 = arith.constant 0 : i32
    %c0_i32_0 = arith.constant 0 : i32
    %c0_i32_1 = arith.constant 0 : i32
    return %arg0, %c0_i32, %c0_i32_0 : i32, i32, i32
  }
}

</mosaic_0001>

<llo_original>
// kernel: tpu_custom_call.1
$region0: #{tpu_custom_call.1}
  #allocation0 [shape = 'u32[]', space=smem, size = 0x4, offset = 0x4, fixed_abs, tag = 'smem constant byte address 0x4 - core index']
  #allocation1 [shape = 'u32[144,128]{1,0:T(1,128)}', space=vmem, size = 0x12000, scoped, tag = 'internal scratch']
  %s0 = inlined_call_operand.vmem [shape: f32[2,4,256], index: 0, kind: input, shape index: {}]
  %s1 = inlined_call_operand.vmem [shape: f32[2,1,32], index: 1, kind: input, shape index: {}]
  %s2 = inlined_call_operand.vmem [shape: f32[4,32], index: 2, kind: input, shape index: {}]
  %s3 = inlined_call_operand.vmem [shape: f32[4,1], index: 3, kind: input, shape index: {}]
  %s4 = inlined_call_operand.vmem [shape: f32[4,32], index: 4, kind: input, shape index: {}]
  %s5 = inlined_call_operand.vmem [shape: f32[4,1], index: 5, kind: input, shape index: {}]
  %s6 = inlined_call_operand.vmem [shape: f32[9,8,4], index: 6, kind: input, shape index: {}]
  %s7 = inlined_call_operand.vmem [shape: f32[8,1], index: 7, kind: input, shape index: {}]
  %s8 = inlined_call_operand.vmem [shape: f32[8,32], index: 8, kind: input, shape index: {}]
  %s9 = inlined_call_operand.vmem [shape: f32[8,1], index: 9, kind: input, shape index: {}]
  %s10 = inlined_call_operand.vmem [shape: f32[8,32], index: 10, kind: input, shape index: {}]
  %s11 = inlined_call_operand.vmem [shape: f32[8,1], index: 11, kind: input, shape index: {}]
  %s12 = inlined_call_operand.vmem [shape: f32[9,8,8], index: 12, kind: input, shape index: {}]
  %s13 = inlined_call_operand.vmem [shape: f32[8,1], index: 13, kind: input, shape index: {}]
  %s14 = inlined_call_operand.vmem [shape: f32[8,4], index: 14, kind: input, shape index: {}]
  %s15 = inlined_call_operand.vmem [shape: f32[9,1,256], index: 15, kind: input, shape index: {}]
  %s16 = inlined_call_operand.hbm [shape: f32[2,8,256], index: 16, kind: output, shape index: {}]
  %s17 = sld [smem:[#allocation0]]
  $region97: #{tpu_custom_call.1} parent=0
    _
  %s19 = ssub.s32 1, %s17
  %s20 = scalar_select 0, %s19, %s17
  $region1: #{tpu_custom_call.1} parent=0
    #allocation2 [shape = 'u8[16384]{0}', space=vmem, size = 0x4000, scoped, tag = 'output window, operand 0']
    #allocation3 [shape = 's32[2]{0}', space=sflag, size = 0x8, scoped, tag = 'scoped memory for tpu_custom_call.1']
    %21 = vsyncpa [#allocation3], 0
    %s22 = scalar_lea.sflag [#allocation3], 1
    %23 = vsyncpa %s22, 0
    loop: start=0, step=1, limit=4
    $region2: #{tpu_custom_call.1} parent=1 // loop_pre_header
      _
    $region3: #{tpu_custom_call.1} parent=1 // loop_header
      %s25 = sphi 0, %s29
      %p26 = scmp.ge.s32.totalorder %s25, 4
      %s35 = sphi 0, %s37
      %s38 = sphi 0, %s35
      %s39 = sphi 0, %s38
      %s55 = sphi 0, %s39
      %s61 = sphi 0, %s63
      %s64 = sphi 0, %s61
      %s65 = sphi 0, %s64
      %s81 = sphi 0, %s65
      %s85 = sphi 0, %s85
      %s87 = sphi 0, %s85
      %s88 = sphi 0, %s87
      %s102 = sphi 0, %s88
      %s106 = sphi 0, %s106
      %s108 = sphi 0, %s106
      %s109 = sphi 0, %s108
      %s123 = sphi 0, %s109
      %s127 = sphi 0, %s127
      %s129 = sphi 0, %s127
      %s130 = sphi 0, %s129
      %s144 = sphi 0, %s130
      %s148 = sphi 0, %s148
      %s150 = sphi 0, %s148
      %s151 = sphi 0, %s150
      %s165 = sphi 0, %s151
      %s169 = sphi 0, %s169
      %s171 = sphi 0, %s169
      %s172 = sphi 0, %s171
      %s186 = sphi 0, %s172
      %s190 = sphi 0, %s190
      %s192 = sphi 0, %s190
      %s193 = sphi 0, %s192
      %s207 = sphi 0, %s193
      %s211 = sphi 0, %s211
      %s213 = sphi 0, %s211
      %s214 = sphi 0, %s213
      %s228 = sphi 0, %s214
      %s232 = sphi 0, %s232
      %s234 = sphi 0, %s232
      %s235 = sphi 0, %s234
      %s249 = sphi 0, %s235
      %s253 = sphi 0, %s253
      %s255 = sphi 0, %s253
      %s256 = sphi 0, %s255
      %s270 = sphi 0, %s256
      %s274 = sphi 0, %s274
      %s276 = sphi 0, %s274
      %s277 = sphi 0, %s276
      %s291 = sphi 0, %s277
      %s295 = sphi 0, %s295
      %s297 = sphi 0, %s295
      %s298 = sphi 0, %s297
      %s312 = sphi 0, %s298
      %s316 = sphi 0, %s316
      %s318 = sphi 0, %s316
      %s319 = sphi 0, %s318
      %s333 = sphi 0, %s319
      %s337 = sphi 0, %s337
      %s339 = sphi 0, %s337
      %s340 = sphi 0, %s339
      %s354 = sphi 0, %s340
      %s358 = sphi 0, %s358
      %s360 = sphi 0, %s358
      %s361 = sphi 0, %s360
      %s375 = sphi 0, %s361
      %s381 = sphi 0, %s383
      %s384 = sphi 0, %s381
      %s385 = sphi 0, %s384
      %s401 = sphi 0, %s385
    $region4: #{tpu_custom_call.1} parent=1 // loop_header_branch
      %28 = sbr.rel (%p26) target = $region8
    $region5: #{tpu_custom_call.1} parent=1 // loop_body
      %s30 = ssub.s32 %s25, 1
      %s31 = ssub.s32 %s25, 2
      %s32 = sadd.s32 %s25, 1
      %s33 = ssub.s32 %s25, %s32
      %p34 = scmp.eq.s32.totalorder %s33, 0
      %s36 = sadd.s32 %s35, 1
      %s37 = scalar_select %p34, %s35, %s36
      %p40 = pneg %p34
      %p41 = scmp.eq.s32.totalorder %s25, 1
      %p42 = por %p40, %p41
      %p43 = scmp.ne.s32.totalorder %s35, %s38
      %p44 = scmp.eq.s32.totalorder %s25, 0
      %p45 = por %p43, %p44
      %p46 = scmp.ne.s32.totalorder %s35, %s38
      %p47 = scmp.eq.s32.totalorder %s30, 1
      %p48 = por %p46, %p47
      %p49 = scmp.ne.s32.totalorder %s38, %s39
      %p50 = scmp.eq.s32.totalorder %s30, 0
      %p51 = por %p49, %p50
      %p52 = scmp.ne.s32.totalorder %s38, %s39
      %p53 = scmp.eq.s32.totalorder %s31, 1
      %p54 = por %p52, %p53
      %p56 = scmp.ne.s32.totalorder %s39, %s55
      %p57 = scmp.eq.s32.totalorder %s31, 0
      %p58 = por %p56, %p57
      %s59 = ssub.s32 %s25, %s32
      %p60 = scmp.eq.s32.totalorder %s59, 0
      %s62 = sadd.s32 %s61, 1
      %s63 = scalar_select %p60, %s61, %s62
      %p66 = pneg %p60
      %p67 = scmp.eq.s32.totalorder %s25, 1
      %p68 = por %p66, %p67
      %p69 = scmp.ne.s32.totalorder %s61, %s64
      %p70 = scmp.eq.s32.totalorder %s25, 0
      %p71 = por %p69, %p70
      %p72 = scmp.ne.s32.totalorder %s61, %s64
      %p73 = scmp.eq.s32.totalorder %s30, 1
      %p74 = por %p72, %p73
      %p75 = scmp.ne.s32.totalorder %s64, %s65
      %p76 = scmp.eq.s32.totalorder %s30, 0
      %p77 = por %p75, %p76
      %p78 = scmp.ne.s32.totalorder %s64, %s65
      %p79 = scmp.eq.s32.totalorder %s31, 1
      %p80 = por %p78, %p79
      %p82 = scmp.ne.s32.totalorder %s65, %s81
      %p83 = scmp.eq.s32.totalorder %s31, 0
      %p84 = por %p82, %p83
      %s86 = sadd.s32 %s85, 1
      %p89 = scmp.eq.s32.totalorder %s25, 1
      %p90 = scmp.ne.s32.totalorder %s85, %s87
      %p91 = scmp.eq.s32.totalorder %s25, 0
      %p92 = por %p90, %p91
      %p93 = scmp.ne.s32.totalorder %s85, %s87
      %p94 = scmp.eq.s32.totalorder %s30, 1
      %p95 = por %p93, %p94
      %p96 = scmp.ne.s32.totalorder %s87, %s88
      %p97 = scmp.eq.s32.totalorder %s30, 0
      %p98 = por %p96, %p97
      %p99 = scmp.ne.s32.totalorder %s87, %s88
      %p100 = scmp.eq.s32.totalorder %s31, 1
      %p101 = por %p99, %p100
      %p103 = scmp.ne.s32.totalorder %s88, %s102
      %p104 = scmp.eq.s32.totalorder %s31, 0
      %p105 = por %p103, %p104
      %s107 = sadd.s32 %s106, 1
      %p110 = scmp.eq.s32.totalorder %s25, 1
      %p111 = scmp.ne.s32.totalorder %s106, %s108
      %p112 = scmp.eq.s32.totalorder %s25, 0
      %p113 = por %p111, %p112
      %p114 = scmp.ne.s32.totalorder %s106, %s108
      %p115 = scmp.eq.s32.totalorder %s30, 1
      %p116 = por %p114, %p115
      %p117 = scmp.ne.s32.totalorder %s108, %s109
      %p118 = scmp.eq.s32.totalorder %s30, 0
      %p119 = por %p117, %p118
      %p120 = scmp.ne.s32.totalorder %s108, %s109
      %p121 = scmp.eq.s32.totalorder %s31, 1
      %p122 = por %p120, %p121
      %p124 = scmp.ne.s32.totalorder %s109, %s123
      %p125 = scmp.eq.s32.totalorder %s31, 0
      %p126 = por %p124, %p125
      %s128 = sadd.s32 %s127, 1
      %p131 = scmp.eq.s32.totalorder %s25, 1
      %p132 = scmp.ne.s32.totalorder %s127, %s129
      %p133 = scmp.eq.s32.totalorder %s25, 0
      %p134 = por %p132, %p133
      %p135 = scmp.ne.s32.totalorder %s127, %s129
      %p136 = scmp.eq.s32.totalorder %s30, 1
      %p137 = por %p135, %p136
      %p138 = scmp.ne.s32.totalorder %s129, %s130
      %p139 = scmp.eq.s32.totalorder %s30, 0
      %p140 = por %p138, %p139
      %p141 = scmp.ne.s32.totalorder %s129, %s130
      %p142 = scmp.eq.s32.totalorder %s31, 1
      %p143 = por %p141, %p142
      %p145 = scmp.ne.s32.totalorder %s130, %s144
      %p146 = scmp.eq.s32.totalorder %s31, 0
      %p147 = por %p145, %p146
      %s149 = sadd.s32 %s148, 1
      %p152 = scmp.eq.s32.totalorder %s25, 1
      %p153 = scmp.ne.s32.totalorder %s148, %s150
      %p154 = scmp.eq.s32.totalorder %s25, 0
      %p155 = por %p153, %p154
      %p156 = scmp.ne.s32.totalorder %s148, %s150
      %p157 = scmp.eq.s32.totalorder %s30, 1
      %p158 = por %p156, %p157
      %p159 = scmp.ne.s32.totalorder %s150, %s151
      %p160 = scmp.eq.s32.totalorder %s30, 0
      %p161 = por %p159, %p160
      %p162 = scmp.ne.s32.totalorder %s150, %s151
      %p163 = scmp.eq.s32.totalorder %s31, 1
      %p164 = por %p162, %p163
      %p166 = scmp.ne.s32.totalorder %s151, %s165
      %p167 = scmp.eq.s32.totalorder %s31, 0
      %p168 = por %p166, %p167
      %s170 = sadd.s32 %s169, 1
      %p173 = scmp.eq.s32.totalorder %s25, 1
      %p174 = scmp.ne.s32.totalorder %s169, %s171
      %p175 = scmp.eq.s32.totalorder %s25, 0
      %p176 = por %p174, %p175
      %p177 = scmp.ne.s32.totalorder %s169, %s171
      %p178 = scmp.eq.s32.totalorder %s30, 1
      %p179 = por %p177, %p178
      %p180 = scmp.ne.s32.totalorder %s171, %s172
      %p181 = scmp.eq.s32.totalorder %s30, 0
      %p182 = por %p180, %p181
      %p183 = scmp.ne.s32.totalorder %s171, %s172
      %p184 = scmp.eq.s32.totalorder %s31, 1
      %p185 = por %p183, %p184
      %p187 = scmp.ne.s32.totalorder %s172, %s186
      %p188 = scmp.eq.s32.totalorder %s31, 0
      %p189 = por %p187, %p188
      %s191 = sadd.s32 %s190, 1
      %p194 = scmp.eq.s32.totalorder %s25, 1
      %p195 = scmp.ne.s32.totalorder %s190, %s192
      %p196 = scmp.eq.s32.totalorder %s25, 0
      %p197 = por %p195, %p196
      %p198 = scmp.ne.s32.totalorder %s190, %s192
      %p199 = scmp.eq.s32.totalorder %s30, 1
      %p200 = por %p198, %p199
      %p201 = scmp.ne.s32.totalorder %s192, %s193
      %p202 = scmp.eq.s32.totalorder %s30, 0
      %p203 = por %p201, %p202
      %p204 = scmp.ne.s32.totalorder %s192, %s193
      %p205 = scmp.eq.s32.totalorder %s31, 1
      %p206 = por %p204, %p205
      %p208 = scmp.ne.s32.totalorder %s193, %s207
      %p209 = scmp.eq.s32.totalorder %s31, 0
      %p210 = por %p208, %p209
      %s212 = sadd.s32 %s211, 1
      %p215 = scmp.eq.s32.totalorder %s25, 1
      %p216 = scmp.ne.s32.totalorder %s211, %s213
      %p217 = scmp.eq.s32.totalorder %s25, 0
      %p218 = por %p216, %p217
      %p219 = scmp.ne.s32.totalorder %s211, %s213
      %p220 = scmp.eq.s32.totalorder %s30, 1
      %p221 = por %p219, %p220
      %p222 = scmp.ne.s32.totalorder %s213, %s214
      %p223 = scmp.eq.s32.totalorder %s30, 0
      %p224 = por %p222, %p223
      %p225 = scmp.ne.s32.totalorder %s213, %s214
      %p226 = scmp.eq.s32.totalorder %s31, 1
      %p227 = por %p225, %p226
      %p229 = scmp.ne.s32.totalorder %s214, %s228
      %p230 = scmp.eq.s32.totalorder %s31, 0
      %p231 = por %p229, %p230
      %s233 = sadd.s32 %s232, 1
      %p236 = scmp.eq.s32.totalorder %s25, 1
      %p237 = scmp.ne.s32.totalorder %s232, %s234
      %p238 = scmp.eq.s32.totalorder %s25, 0
      %p239 = por %p237, %p238
      %p240 = scmp.ne.s32.totalorder %s232, %s234
      %p241 = scmp.eq.s32.totalorder %s30, 1
      %p242 = por %p240, %p241
      %p243 = scmp.ne.s32.totalorder %s234, %s235
      %p244 = scmp.eq.s32.totalorder %s30, 0
      %p245 = por %p243, %p244
      %p246 = scmp.ne.s32.totalorder %s234, %s235
      %p247 = scmp.eq.s32.totalorder %s31, 1
      %p248 = por %p246, %p247
      %p250 = scmp.ne.s32.totalorder %s235, %s249
      %p251 = scmp.eq.s32.totalorder %s31, 0
      %p252 = por %p250, %p251
      %s254 = sadd.s32 %s253, 1
      %p257 = scmp.eq.s32.totalorder %s25, 1
      %p258 = scmp.ne.s32.totalorder %s253, %s255
      %p259 = scmp.eq.s32.totalorder %s25, 0
      %p260 = por %p258, %p259
      %p261 = scmp.ne.s32.totalorder %s253, %s255
      %p262 = scmp.eq.s32.totalorder %s30, 1
      %p263 = por %p261, %p262
      %p264 = scmp.ne.s32.totalorder %s255, %s256
      %p265 = scmp.eq.s32.totalorder %s30, 0
      %p266 = por %p264, %p265
      %p267 = scmp.ne.s32.totalorder %s255, %s256
      %p268 = scmp.eq.s32.totalorder %s31, 1
      %p269 = por %p267, %p268
      %p271 = scmp.ne.s32.totalorder %s256, %s270
      %p272 = scmp.eq.s32.totalorder %s31, 0
      %p273 = por %p271, %p272
      %s275 = sadd.s32 %s274, 1
      %p278 = scmp.eq.s32.totalorder %s25, 1
      %p279 = scmp.ne.s32.totalorder %s274, %s276
      %p280 = scmp.eq.s32.totalorder %s25, 0
      %p281 = por %p279, %p280
      %p282 = scmp.ne.s32.totalorder %s274, %s276
      %p283 = scmp.eq.s32.totalorder %s30, 1
      %p284 = por %p282, %p283
      %p285 = scmp.ne.s32.totalorder %s276, %s277
      %p286 = scmp.eq.s32.totalorder %s30, 0
      %p287 = por %p285, %p286
      %p288 = scmp.ne.s32.totalorder %s276, %s277
      %p289 = scmp.eq.s32.totalorder %s31, 1
      %p290 = por %p288, %p289
      %p292 = scmp.ne.s32.totalorder %s277, %s291
      %p293 = scmp.eq.s32.totalorder %s31, 0
      %p294 = por %p292, %p293
      %s296 = sadd.s32 %s295, 1
      %p299 = scmp.eq.s32.totalorder %s25, 1
      %p300 = scmp.ne.s32.totalorder %s295, %s297
      %p301 = scmp.eq.s32.totalorder %s25, 0
      %p302 = por %p300, %p301
      %p303 = scmp.ne.s32.totalorder %s295, %s297
      %p304 = scmp.eq.s32.totalorder %s30, 1
      %p305 = por %p303, %p304
      %p306 = scmp.ne.s32.totalorder %s297, %s298
      %p307 = scmp.eq.s32.totalorder %s30, 0
      %p308 = por %p306, %p307
      %p309 = scmp.ne.s32.totalorder %s297, %s298
      %p310 = scmp.eq.s32.totalorder %s31, 1
      %p311 = por %p309, %p310
      %p313 = scmp.ne.s32.totalorder %s298, %s312
      %p314 = scmp.eq.s32.totalorder %s31, 0
      %p315 = por %p313, %p314
      %s317 = sadd.s32 %s316, 1
      %p320 = scmp.eq.s32.totalorder %s25, 1
      %p321 = scmp.ne.s32.totalorder %s316, %s318
      %p322 = scmp.eq.s32.totalorder %s25, 0
      %p323 = por %p321, %p322
      %p324 = scmp.ne.s32.totalorder %s316, %s318
      %p325 = scmp.eq.s32.totalorder %s30, 1
      %p326 = por %p324, %p325
      %p327 = scmp.ne.s32.totalorder %s318, %s319
      %p328 = scmp.eq.s32.totalorder %s30, 0
      %p329 = por %p327, %p328
      %p330 = scmp.ne.s32.totalorder %s318, %s319
      %p331 = scmp.eq.s32.totalorder %s31, 1
      %p332 = por %p330, %p331
      %p334 = scmp.ne.s32.totalorder %s319, %s333
      %p335 = scmp.eq.s32.totalorder %s31, 0
      %p336 = por %p334, %p335
      %s338 = sadd.s32 %s337, 1
      %p341 = scmp.eq.s32.totalorder %s25, 1
      %p342 = scmp.ne.s32.totalorder %s337, %s339
      %p343 = scmp.eq.s32.totalorder %s25, 0
      %p344 = por %p342, %p343
      %p345 = scmp.ne.s32.totalorder %s337, %s339
      %p346 = scmp.eq.s32.totalorder %s30, 1
      %p347 = por %p345, %p346
      %p348 = scmp.ne.s32.totalorder %s339, %s340
      %p349 = scmp.eq.s32.totalorder %s30, 0
      %p350 = por %p348, %p349
      %p351 = scmp.ne.s32.totalorder %s339, %s340
      %p352 = scmp.eq.s32.totalorder %s31, 1
      %p353 = por %p351, %p352
      %p355 = scmp.ne.s32.totalorder %s340, %s354
      %p356 = scmp.eq.s32.totalorder %s31, 0
      %p357 = por %p355, %p356
      %s359 = sadd.s32 %s358, 1
      %p362 = scmp.eq.s32.totalorder %s25, 1
      %p363 = scmp.ne.s32.totalorder %s358, %s360
      %p364 = scmp.eq.s32.totalorder %s25, 0
      %p365 = por %p363, %p364
      %p366 = scmp.ne.s32.totalorder %s358, %s360
      %p367 = scmp.eq.s32.totalorder %s30, 1
      %p368 = por %p366, %p367
      %p369 = scmp.ne.s32.totalorder %s360, %s361
      %p370 = scmp.eq.s32.totalorder %s30, 0
      %p371 = por %p369, %p370
      %p372 = scmp.ne.s32.totalorder %s360, %s361
      %p373 = scmp.eq.s32.totalorder %s31, 1
      %p374 = por %p372, %p373
      %p376 = scmp.ne.s32.totalorder %s361, %s375
      %p377 = scmp.eq.s32.totalorder %s31, 0
      %p378 = por %p376, %p377
      %s379 = ssub.s32 %s25, %s32
      %p380 = scmp.eq.s32.totalorder %s379, 0
      %s382 = sadd.s32 %s381, 1
      %s383 = scalar_select %p380, %s381, %s382
      %p386 = pneg %p380
      %p387 = scmp.eq.s32.totalorder %s25, 1
      %p388 = por %p386, %p387
      %p389 = scmp.ne.s32.totalorder %s381, %s384
      %p390 = scmp.eq.s32.totalorder %s25, 0
      %p391 = por %p389, %p390
      %p392 = scmp.ne.s32.totalorder %s381, %s384
      %p393 = scmp.eq.s32.totalorder %s30, 1
      %p394 = por %p392, %p393
      %p395 = scmp.ne.s32.totalorder %s384, %s385
      %p396 = scmp.eq.s32.totalorder %s30, 0
      %p397 = por %p395, %p396
      %p398 = scmp.ne.s32.totalorder %s384, %s385
      %p399 = scmp.eq.s32.totalorder %s31, 1
      %p400 = por %p398, %p399
      %p402 = scmp.ne.s32.totalorder %s385, %s401
      %p403 = scmp.eq.s32.totalorder %s31, 0
      %p404 = por %p402, %p403
      %p405 = scmp.le.s32.totalorder 1, %s25
      %p406 = scmp.lt.s32.totalorder %s25, 3
      %p407 = pnand %p405, %p406
      %p408 = pneg %p407
      // Predicated region
      $region9: #{tpu_custom_call.1} parent=5 // pred_check
        _
      $region10: #{tpu_custom_call.1} parent=5 // pred_check_branch
        %410 = sbr.rel (%p407) target = $region12
      $region11: #{tpu_custom_call.1} parent=5 // pred_region
        %s411 = ssub.s32 %s25, 1
        // Predicated region
        $region13: #{tpu_custom_call.1} parent=11 // pred_check
          %p412 = pneg %p98
        $region14: #{tpu_custom_call.1} parent=11 // pred_check_branch
          %414 = sbr.rel (%p412) target = $region16
        $region15: #{tpu_custom_call.1} parent=11 // pred_region
          _
        $region16: #{tpu_custom_call.1} parent=11 // pred_fallthru
          _
        // Predicated region
        $region17: #{tpu_custom_call.1} parent=11 // pred_check
          %p415 = pneg %p119
        $region18: #{tpu_custom_call.1} parent=11 // pred_check_branch
          %417 = sbr.rel (%p415) target = $region20
        $region19: #{tpu_custom_call.1} parent=11 // pred_region
          _
        $region20: #{tpu_custom_call.1} parent=11 // pred_fallthru
          _
        // Predicated region
        $region21: #{tpu_custom_call.1} parent=11 // pred_check
          %p418 = pneg %p140
        $region22: #{tpu_custom_call.1} parent=11 // pred_check_branch
          %420 = sbr.rel (%p418) target = $region24
        $region23: #{tpu_custom_call.1} parent=11 // pred_region
          _
        $region24: #{tpu_custom_call.1} parent=11 // pred_fallthru
          _
        // Predicated region
        $region25: #{tpu_custom_call.1} parent=11 // pred_check
          %p421 = pneg %p161
        $region26: #{tpu_custom_call.1} parent=11 // pred_check_branch
          %423 = sbr.rel (%p421) target = $region28
        $region27: #{tpu_custom_call.1} parent=11 // pred_region
          _
        $region28: #{tpu_custom_call.1} parent=11 // pred_fallthru
          _
        // Predicated region
        $region29: #{tpu_custom_call.1} parent=11 // pred_check
          %p424 = pneg %p182
        $region30: #{tpu_custom_call.1} parent=11 // pred_check_branch
          %426 = sbr.rel (%p424) target = $region32
        $region31: #{tpu_custom_call.1} parent=11 // pred_region
          _
        $region32: #{tpu_custom_call.1} parent=11 // pred_fallthru
          _
        // Predicated region
        $region33: #{tpu_custom_call.1} parent=11 // pred_check
          %p427 = pneg %p203
        $region34: #{tpu_custom_call.1} parent=11 // pred_check_branch
          %429 = sbr.rel (%p427) target = $region36
        $region35: #{tpu_custom_call.1} parent=11 // pred_region
          _
        $region36: #{tpu_custom_call.1} parent=11 // pred_fallthru
          _
        // Predicated region
        $region37: #{tpu_custom_call.1} parent=11 // pred_check
          %p430 = pneg %p224
        $region38: #{tpu_custom_call.1} parent=11 // pred_check_branch
          %432 = sbr.rel (%p430) target = $region40
        $region39: #{tpu_custom_call.1} parent=11 // pred_region
          _
        $region40: #{tpu_custom_call.1} parent=11 // pred_fallthru
          _
        // Predicated region
        $region41: #{tpu_custom_call.1} parent=11 // pred_check
          %p433 = pneg %p245
        $region42: #{tpu_custom_call.1} parent=11 // pred_check_branch
          %435 = sbr.rel (%p433) target = $region44
        $region43: #{tpu_custom_call.1} parent=11 // pred_region
          _
        $region44: #{tpu_custom_call.1} parent=11 // pred_fallthru
          _
        // Predicated region
        $region45: #{tpu_custom_call.1} parent=11 // pred_check
          %p436 = pneg %p266
        $region46: #{tpu_custom_call.1} parent=11 // pred_check_branch
          %438 = sbr.rel (%p436) target = $region48
        $region47: #{tpu_custom_call.1} parent=11 // pred_region
          _
        $region48: #{tpu_custom_call.1} parent=11 // pred_fallthru
          _
        // Predicated region
        $region49: #{tpu_custom_call.1} parent=11 // pred_check
          %p439 = pneg %p287
        $region50: #{tpu_custom_call.1} parent=11 // pred_check_branch
          %441 = sbr.rel (%p439) target = $region52
        $region51: #{tpu_custom_call.1} parent=11 // pred_region
          _
        $region52: #{tpu_custom_call.1} parent=11 // pred_fallthru
          _
        // Predicated region
        $region53: #{tpu_custom_call.1} parent=11 // pred_check
          %p442 = pneg %p308
        $region54: #{tpu_custom_call.1} parent=11 // pred_check_branch
          %444 = sbr.rel (%p442) target = $region56
        $region55: #{tpu_custom_call.1} parent=11 // pred_region
          _
        $region56: #{tpu_custom_call.1} parent=11 // pred_fallthru
          _
        // Predicated region
        $region57: #{tpu_custom_call.1} parent=11 // pred_check
          %p445 = pneg %p329
        $region58: #{tpu_custom_call.1} parent=11 // pred_check_branch
          %447 = sbr.rel (%p445) target = $region60
        $region59: #{tpu_custom_call.1} parent=11 // pred_region
          _
        $region60: #{tpu_custom_call.1} parent=11 // pred_fallthru
          _
        // Predicated region
        $region61: #{tpu_custom_call.1} parent=11 // pred_check
          %p448 = pneg %p350
        $region62: #{tpu_custom_call.1} parent=11 // pred_check_branch
          %450 = sbr.rel (%p448) target = $region64
        $region63: #{tpu_custom_call.1} parent=11 // pred_region
          _
        $region64: #{tpu_custom_call.1} parent=11 // pred_fallthru
          _
        // Predicated region
        $region65: #{tpu_custom_call.1} parent=11 // pred_check
          %p451 = pneg %p371
        $region66: #{tpu_custom_call.1} parent=11 // pred_check_branch
          %453 = sbr.rel (%p451) target = $region68
        $region67: #{tpu_custom_call.1} parent=11 // pred_region
          _
        $region68: #{tpu_custom_call.1} parent=11 // pred_fallthru
          _
      $region12: #{tpu_custom_call.1} parent=5 // pred_fallthru
        _
      %p454 = scmp.lt.s32.totalorder %s25, 2
      // Predicated region
      $region69: #{tpu_custom_call.1} parent=5 // pred_check
        %p455 = pneg %p454
      $region70: #{tpu_custom_call.1} parent=5 // pred_check_branch
        %457 = sbr.rel (%p455) target = $region72
      $region71: #{tpu_custom_call.1} parent=5 // pred_region
        // Predicated region
        $region73: #{tpu_custom_call.1} parent=71 // pred_check
          %p458 = pneg %p45
        $region74: #{tpu_custom_call.1} parent=71 // pred_check_branch
          %460 = sbr.rel (%p458) target = $region76
        $region75: #{tpu_custom_call.1} parent=71 // pred_region
          %p461 = scmp.lt.s32.totalorder %s25, 1
          %s462 = scalar_select %p461, %s25, 1
          %s463 = smul.addr %s462, 2
          %s464 = smul.addr %s463, 4
          %s465 = scalar_lea.vmem %s0, %s464
        $region76: #{tpu_custom_call.1} parent=71 // pred_fallthru
          _
        // Predicated region
        $region77: #{tpu_custom_call.1} parent=71 // pred_check
          %p466 = pneg %p71
        $region78: #{tpu_custom_call.1} parent=71 // pred_check_branch
          %468 = sbr.rel (%p466) target = $region80
        $region79: #{tpu_custom_call.1} parent=71 // pred_region
          %p469 = scmp.lt.s32.totalorder %s25, 1
          %s470 = scalar_select %p469, %s25, 1
          %s471 = scalar_lea.vmem %s1, %s470
        $region80: #{tpu_custom_call.1} parent=71 // pred_fallthru
          _
      $region72: #{tpu_custom_call.1} parent=5 // pred_fallthru
        _
      %p472 = scmp.le.s32.totalorder 1, %s25
      %p473 = scmp.lt.s32.totalorder %s25, 3
      %p474 = pnand %p472, %p473
      %p475 = pneg %p474
      // Predicated region
      $region81: #{tpu_custom_call.1} parent=5 // pred_check
        _
      $region82: #{tpu_custom_call.1} parent=5 // pred_check_branch
        %477 = sbr.rel (%p474) target = $region84
      $region83: #{tpu_custom_call.1} parent=5 // pred_region
        %s478 = ssub.s32 %s25, 1
        %p479 = scmp.lt.s32.totalorder %s30, 1
        %s480 = scalar_select %p479, %s30, 1
        %s481 = smul.addr %s480, 2
        %s482 = smul.addr %s481, 4
        %s483 = scalar_lea.vmem %s0, %s482
        %p484 = pneg %p51
        %p485 = pneg %p48
        %p486 = scmp.lt.s32.totalorder %s30, 1
        %s487 = scalar_select %p486, %s30, 1
        %s488 = scalar_lea.vmem %s1, %s487
        %p489 = pneg %p77
        %p490 = pneg %p74
        %p491 = pneg %p98
        %p492 = pneg %p95
        %p493 = pneg %p119
        %p494 = pneg %p116
        %p495 = pneg %p140
        %p496 = pneg %p137
        %p497 = pneg %p161
        %p498 = pneg %p158
        %p499 = pneg %p182
        %p500 = pneg %p179
        %p501 = pneg %p203
        %p502 = pneg %p200
        %p503 = pneg %p224
        %p504 = pneg %p221
        %p505 = pneg %p245
        %p506 = pneg %p242
        %p507 = pneg %p266
        %p508 = pneg %p263
        %p509 = pneg %p287
        %p510 = pneg %p284
        %p511 = pneg %p308
        %p512 = pneg %p305
        %p513 = pneg %p329
        %p514 = pneg %p326
        %p515 = pneg %p350
        %p516 = pneg %p347
        %p517 = pneg %p371
        %p518 = pneg %p368
        %p519 = pneg %p397
        %p520 = pneg %p394
        %s521 = sand.u32 %s384, 1
        %s522 = scalar_lea.sflag [#allocation3], %s521
        %s523 = sand.u32 %s384, 1
        %s524 = smul.addr %s523, 16
        %s525 = scalar_lea.vmem [#allocation2], %s524
        %p526 = scmp.lt.s32.totalorder %s30, 1
        %s527 = scalar_select %p526, %s30, 1
        %s528 = smul.addr %s527, 2
        %s529 = smul.addr %s528, 4
        %s530 = scalar_lea.vmem %s0, %s529
        %p531 = scmp.lt.s32.totalorder %s30, 1
        %s532 = scalar_select %p531, %s30, 1
        %s533 = scalar_lea.vmem %s1, %s532
        %v534 = vld [vmem:[%s530] sm:$0xff]
        %v535 = vld [vmem:[%s533] sm:$0x1]
        %v536 = vld [vmem:[%s2] sm:$0xf]
        %v537 = vld [vmem:[%s3] sm:$0xf]
        %v538 = vld [vmem:[%s4] sm:$0xf]
        %v539 = vld [vmem:[%s5] sm:$0xf]
        %v541 = vlaneseq
        %v542 = vshrl.u32 %v541, 7
        %v543 = vsub.s32 0, %v542
        %v544 = vrot.slane %v535, %v543
        %v546 = vmul.f32 %v536, %v544
        %vm547 = vcmask 257024
        %v548 = vsel %vm547, %v546, 0.0
        %549 = vadd.xlane.f32.xlu0 %v548
        %v550 = vpop.xlane.xlu0 %549
        %v551 = vadd.f32 %v550, %v537
        %v552 = vmul.f32 %v538, %v544
        %v553 = vsel %vm547, %v552, 0.0
        %554 = vadd.xlane.f32.xlu0 %v553
        %v555 = vpop.xlane.xlu0 %554
        %v556 = vadd.f32 %v555, %v539
        %v558 = vcombine.high %v534, %v534
        %vm560 = vcmask 1043456
        %v561 = vsel %vm560, %v534, 0.0
        %v562 = vsel %vm560, %v558, 0.0
        %v563 = vadd.f32 %v561, %v562
        %564 = vadd.xlane.f32.xlu0 %v563
        %v565 = vpop.xlane.xlu0 %564
        %v566 = vrcp.pop 256.0
        %v567 = vmul.f32 %v565, %v566
        %v570 = vunpack.c.l.s4 839922192
        %v571 = vunpack.c.0.s8 %v570
        %v572 = vlaneseq
        %v573 = vshrl.u32 %v572, 7
        %v574 = vsub.s32 %v571, %v573
        %v575 = vrot.slane %v567, %v574
        %v577 = vsub.f32 %v534, %v575
        %v578 = vmul.f32 %v577, %v577
        %v580 = vcombine.high %v578, %v578
        %v582 = vsel %vm560, %v578, 0.0
        %v583 = vsel %vm560, %v580, 0.0
        %v584 = vadd.f32 %v582, %v583
        %585 = vadd.xlane.f32.xlu0 %v584
        %v586 = vpop.xlane.xlu0 %585
        %v587 = vmul.f32 %v586, %v566
        %v588 = vadd.f32 %v587, 1e-05
        %v589 = vrsqrt.pop %v588
        %v592 = vunpack.c.l.s4 839922192
        %v593 = vunpack.c.0.s8 %v592
        %v594 = vlaneseq
        %v595 = vshrl.u32 %v594, 7
        %v596 = vsub.s32 %v593, %v595
        %v597 = vrot.slane %v589, %v596
        %v599 = vmul.f32 %v577, %v597
        %v600 = vadd.f32 %v551, 1.0
        %602 = vset.pattern.permute.xlu0 0
        %603 = vperm.xlu0 %602, %v600
        %v604 = vpop.permute.xlu0 %603
        %v607 = vcombine.high %v599, %v599
        %v609 = vmul.f32 %v604, %v599
        %v610 = vmul.f32 %v604, %v607
        %612 = vset.pattern.permute.xlu0 0
        %613 = vperm.xlu0 %612, %v556
        %v614 = vpop.permute.xlu0 %613
        %v616 = vadd.f32 %v609, %v614
        %v617 = vadd.f32 %v610, %v614
        %vm618 = vcmp.gt.f32.partialorder %v616, 0.0
        %vm619 = vcmp.gt.f32.partialorder %v617, 0.0
        %v620 = vmul.f32 %v616, 0.2
        %v621 = vmul.f32 %v617, 0.2
        %v622 = vsel %vm618, %v616, %v620
        %v623 = vsel %vm619, %v617, %v621
        %v624 = vld [vmem:[%s7] sm:$0xff]
        %625 = vrot.lane.b32.xlu0 %v622, 17
        %v626 = vpop.permute.xlu0 %625
        %627 = vrot.lane.b32.xlu0 %v623, 17
        %v628 = vpop.permute.xlu0 %627
        %v629 = vlaneseq
        %v630 = vand.u32 %v629, 127
        %vm631 = vcmp.lt.s32.totalorder %v630, 17
        %v632 = vsel %vm631, %v626, %v628
        %v633 = vsel %vm631, %v628, %v626
        %v634 = vld [vmem:[%s15] sm:$0x3]
        %v636 = vlaneseq
        %v637 = vshrl.u32 %v636, 7
        %v638 = vsub.s32 0, %v637
        %v639 = vrot.slane %v634, %v638
        %v640 = vlaneseq
        %v641 = vshrl.u32 %v640, 7
        %v642 = vsub.s32 1, %v641
        %v643 = vrot.slane %v634, %v642
        %v646 = vmul.f32 %v633, %v639
        %v647 = vmul.f32 %v632, %v643
        %v648 = vld [vmem:[%s6] sm:$0xff]
        %649 = vrot.lane.b32.xlu0 %v622, 16
        %v650 = vpop.permute.xlu0 %649
        %651 = vrot.lane.b32.xlu0 %v623, 16
        %v652 = vpop.permute.xlu0 %651
        %vm653 = vcmp.lt.s32.totalorder %v630, 16
        %v654 = vsel %vm653, %v650, %v652
        %v655 = vsel %vm653, %v652, %v650
        %s656 = scalar_lea.vmem %s15, 2
        %v657 = vld [vmem:[%s656] sm:$0x3]
        %v659 = vlaneseq
        %v660 = vshrl.u32 %v659, 7
        %v661 = vsub.s32 0, %v660
        %v662 = vrot.slane %v657, %v661
        %v663 = vlaneseq
        %v664 = vshrl.u32 %v663, 7
        %v665 = vsub.s32 1, %v664
        %v666 = vrot.slane %v657, %v665
        %v669 = vmul.f32 %v655, %v662
        %v670 = vmul.f32 %v654, %v666
        %s671 = scalar_lea.vmem %s6, 8
        %v672 = vld [vmem:[%s671] sm:$0xff]
        %vm673 = vcmask 31744
        %v675 = vsel %vm673, %v672, 0
        %v678 = vsel %vm560, %v669, 0
        %v681 = vsel %vm560, %v670, 0
        %683 = vmatprep.subr.mxu0 0.0
        %684 = vmatpush1.msra.mxu0 0.0
        %685 = vmatprep.subr.mxu0 0.0
        %686 = vmatpush1.msra.mxu0 0.0
        %687 = vmatprep.subr.mxu0 0.0
        %688 = vmatpush1.msra.mxu0 0.0
        %689 = vmatprep.subr.mxu0 0.0
        %690 = vmatpush1.msra.mxu0 0.0
        %691 = vmatprep.subr.mxu0 0.0
        %692 = vmatpush1.msra.mxu0 0.0
        %693 = vmatprep.subr.mxu0 0.0
        %694 = vmatpush1.msra.mxu0 0.0
        %695 = vmatprep.subr.mxu0 0.0
        %696 = vmatpush1.msra.mxu0 0.0
        %697 = vmatprep.subr.mxu0 0.0
        %698 = vmatpush1.msra.mxu0 0.0
        %699 = vmatprep.subr.mxu0 0.0
        %700 = vmatpush1.msra.mxu0 0.0
        %701 = vmatprep.subr.mxu0 0.0
        %702 = vmatpush1.msra.mxu0 0.0
        %703 = vmatprep.subr.mxu0 0.0
        %704 = vmatpush1.msra.mxu0 0.0
        %705 = vmatprep.subr.mxu0 0.0
        %706 = vmatpush1.msra.mxu0 0.0
        %707 = vmatprep.subr.mxu0 0.0
        %708 = vmatpush1.msra.mxu0 0.0
        %709 = vmatprep.subr.mxu0 0.0
        %710 = vmatpush1.msra.mxu0 0.0
        %711 = vmatprep.subr.mxu0 0.0
        %712 = vmatpush1.msra.mxu0 0.0
        %713 = vmatprep.subr.mxu0 %v681
        %714 = vmatpush1.msra.mxu0 %v678
        %715 = vmatprep.subr.mxu0 0.0
        %716 = vmatpush2.msra.mxu0 0.0
        %717 = vmatprep.subr.mxu0 0.0
        %718 = vmatpush2.msra.mxu0 0.0
        %719 = vmatprep.subr.mxu0 0.0
        %720 = vmatpush2.msra.mxu0 0.0
        %721 = vmatprep.subr.mxu0 0.0
        %722 = vmatpush2.msra.mxu0 0.0
        %723 = vmatprep.subr.mxu0 0.0
        %724 = vmatpush2.msra.mxu0 0.0
        %725 = vmatprep.subr.mxu0 0.0
        %726 = vmatpush2.msra.mxu0 0.0
        %727 = vmatprep.subr.mxu0 0.0
        %728 = vmatpush2.msra.mxu0 0.0
        %729 = vmatprep.subr.mxu0 0.0
        %730 = vmatpush2.msra.mxu0 0.0
        %731 = vmatprep.subr.mxu0 0.0
        %732 = vmatpush2.msra.mxu0 0.0
        %733 = vmatprep.subr.mxu0 0.0
        %734 = vmatpush2.msra.mxu0 0.0
        %735 = vmatprep.subr.mxu0 0.0
        %736 = vmatpush2.msra.mxu0 0.0
        %737 = vmatprep.subr.mxu0 0.0
        %738 = vmatpush2.msra.mxu0 0.0
        %739 = vmatprep.subr.mxu0 0.0
        %740 = vmatpush2.msra.mxu0 0.0
        %741 = vmatprep.subr.mxu0 0.0
        %742 = vmatpush2.msra.mxu0 0.0
        %743 = vmatprep.subr.mxu0 0.0
        %744 = vmatpush2.msra.mxu0 0.0
        %745 = vmatprep.subr.mxu0 0.0
        %746 = vmatpush2.msra.mxu0 0.0
        %747 = vmatprep.mubr.f32.mxu0 0.0
        %748 = vmatmul.mubr.f32.gmra.mxu0 %v675
        %v749 = vpop.f32.mrf.mxu0
        %v750 = vadd.f32 0.0, %v749
        %v751 = vpop.f32.mrf.mxu0
        %v752 = vadd.f32 0.0, %v751
        %753 = vdwg.mxu0
        %v755 = vsel %vm673, %v648, 0
        %v758 = vsel %vm560, %v646, 0
        %v761 = vsel %vm560, %v647, 0
        %763 = vmatprep.subr.mxu0 0.0
        %764 = vmatpush1.msra.mxu0 0.0
        %765 = vmatprep.subr.mxu0 0.0
        %766 = vmatpush1.msra.mxu0 0.0
        %767 = vmatprep.subr.mxu0 0.0
        %768 = vmatpush1.msra.mxu0 0.0
        %769 = vmatprep.subr.mxu0 0.0
        %770 = vmatpush1.msra.mxu0 0.0
        %771 = vmatprep.subr.mxu0 0.0
        %772 = vmatpush1.msra.mxu0 0.0
        %773 = vmatprep.subr.mxu0 0.0
        %774 = vmatpush1.msra.mxu0 0.0
        %775 = vmatprep.subr.mxu0 0.0
        %776 = vmatpush1.msra.mxu0 0.0
        %777 = vmatprep.subr.mxu0 0.0
        %778 = vmatpush1.msra.mxu0 0.0
        %779 = vmatprep.subr.mxu0 0.0
        %780 = vmatpush1.msra.mxu0 0.0
        %781 = vmatprep.subr.mxu0 0.0
        %782 = vmatpush1.msra.mxu0 0.0
        %783 = vmatprep.subr.mxu0 0.0
        %784 = vmatpush1.msra.mxu0 0.0
        %785 = vmatprep.subr.mxu0 0.0
        %786 = vmatpush1.msra.mxu0 0.0
        %787 = vmatprep.subr.mxu0 0.0
        %788 = vmatpush1.msra.mxu0 0.0
        %789 = vmatprep.subr.mxu0 0.0
        %790 = vmatpush1.msra.mxu0 0.0
        %791 = vmatprep.subr.mxu0 0.0
        %792 = vmatpush1.msra.mxu0 0.0
        %793 = vmatprep.subr.mxu0 %v761
        %794 = vmatpush1.msra.mxu0 %v758
        %795 = vmatprep.subr.mxu0 0.0
        %796 = vmatpush2.msra.mxu0 0.0
        %797 = vmatprep.subr.mxu0 0.0
        %798 = vmatpush2.msra.mxu0 0.0
        %799 = vmatprep.subr.mxu0 0.0
        %800 = vmatpush2.msra.mxu0 0.0
        %801 = vmatprep.subr.mxu0 0.0
        %802 = vmatpush2.msra.mxu0 0.0
        %803 = vmatprep.subr.mxu0 0.0
        %804 = vmatpush2.msra.mxu0 0.0
        %805 = vmatprep.subr.mxu0 0.0
        %806 = vmatpush2.msra.mxu0 0.0
        %807 = vmatprep.subr.mxu0 0.0
        %808 = vmatpush2.msra.mxu0 0.0
        %809 = vmatprep.subr.mxu0 0.0
        %810 = vmatpush2.msra.mxu0 0.0
        %811 = vmatprep.subr.mxu0 0.0
        %812 = vmatpush2.msra.mxu0 0.0
        %813 = vmatprep.subr.mxu0 0.0
        %814 = vmatpush2.msra.mxu0 0.0
        %815 = vmatprep.subr.mxu0 0.0
        %816 = vmatpush2.msra.mxu0 0.0
        %817 = vmatprep.subr.mxu0 0.0
        %818 = vmatpush2.msra.mxu0 0.0
        %819 = vmatprep.subr.mxu0 0.0
        %820 = vmatpush2.msra.mxu0 0.0
        %821 = vmatprep.subr.mxu0 0.0
        %822 = vmatpush2.msra.mxu0 0.0
        %823 = vmatprep.subr.mxu0 0.0
        %824 = vmatpush2.msra.mxu0 0.0
        %825 = vmatprep.subr.mxu0 0.0
        %826 = vmatpush2.msra.mxu0 0.0
        %827 = vmatprep.mubr.f32.mxu0 0.0
        %828 = vmatmul.mubr.f32.gmra.mxu0 %v755
        %v829 = vpop.f32.mrf.mxu0
        %v830 = vadd.f32 %v750, %v829
        %v831 = vpop.f32.mrf.mxu0
        %v832 = vadd.f32 %v752, %v831
        %833 = vdwg.mxu0
        %834 = vrot.lane.b32.xlu0 %v622, 15
        %v835 = vpop.permute.xlu0 %834
        %836 = vrot.lane.b32.xlu0 %v623, 15
        %v837 = vpop.permute.xlu0 %836
        %vm838 = vcmp.lt.s32.totalorder %v630, 15
        %v839 = vsel %vm838, %v835, %v837
        %v840 = vsel %vm838, %v837, %v835
        %s841 = scalar_lea.vmem %s15, 4
        %v842 = vld [vmem:[%s841] sm:$0x3]
        %v844 = vlaneseq
        %v845 = vshrl.u32 %v844, 7
        %v846 = vsub.s32 0, %v845
        %v847 = vrot.slane %v842, %v846
        %v848 = vlaneseq
        %v849 = vshrl.u32 %v848, 7
        %v850 = vsub.s32 1, %v849
        %v851 = vrot.slane %v842, %v850
        %v854 = vmul.f32 %v840, %v847
        %v855 = vmul.f32 %v839, %v851
        %s856 = scalar_lea.vmem %s6, 16
        %v857 = vld [vmem:[%s856] sm:$0xff]
        %v859 = vsel %vm673, %v857, 0
        %v862 = vsel %vm560, %v854, 0
        %v865 = vsel %vm560, %v855, 0
        %867 = vmatprep.subr.mxu0 0.0
        %868 = vmatpush1.msra.mxu0 0.0
        %869 = vmatprep.subr.mxu0 0.0
        %870 = vmatpush1.msra.mxu0 0.0
        %871 = vmatprep.subr.mxu0 0.0
        %872 = vmatpush1.msra.mxu0 0.0
        %873 = vmatprep.subr.mxu0 0.0
        %874 = vmatpush1.msra.mxu0 0.0
        %875 = vmatprep.subr.mxu0 0.0
        %876 = vmatpush1.msra.mxu0 0.0
        %877 = vmatprep.subr.mxu0 0.0
        %878 = vmatpush1.msra.mxu0 0.0
        %879 = vmatprep.subr.mxu0 0.0
        %880 = vmatpush1.msra.mxu0 0.0
        %881 = vmatprep.subr.mxu0 0.0
        %882 = vmatpush1.msra.mxu0 0.0
        %883 = vmatprep.subr.mxu0 0.0
        %884 = vmatpush1.msra.mxu0 0.0
        %885 = vmatprep.subr.mxu0 0.0
        %886 = vmatpush1.msra.mxu0 0.0
        %887 = vmatprep.subr.mxu0 0.0
        %888 = vmatpush1.msra.mxu0 0.0
        %889 = vmatprep.subr.mxu0 0.0
        %890 = vmatpush1.msra.mxu0 0.0
        %891 = vmatprep.subr.mxu0 0.0
        %892 = vmatpush1.msra.mxu0 0.0
        %893 = vmatprep.subr.mxu0 0.0
        %894 = vmatpush1.msra.mxu0 0.0
        %895 = vmatprep.subr.mxu0 0.0
        %896 = vmatpush1.msra.mxu0 0.0
        %897 = vmatprep.subr.mxu0 %v865
        %898 = vmatpush1.msra.mxu0 %v862
        %899 = vmatprep.subr.mxu0 0.0
        %900 = vmatpush2.msra.mxu0 0.0
        %901 = vmatprep.subr.mxu0 0.0
        %902 = vmatpush2.msra.mxu0 0.0
        %903 = vmatprep.subr.mxu0 0.0
        %904 = vmatpush2.msra.mxu0 0.0
        %905 = vmatprep.subr.mxu0 0.0
        %906 = vmatpush2.msra.mxu0 0.0
        %907 = vmatprep.subr.mxu0 0.0
        %908 = vmatpush2.msra.mxu0 0.0
        %909 = vmatprep.subr.mxu0 0.0
        %910 = vmatpush2.msra.mxu0 0.0
        %911 = vmatprep.subr.mxu0 0.0
        %912 = vmatpush2.msra.mxu0 0.0
        %913 = vmatprep.subr.mxu0 0.0
        %914 = vmatpush2.msra.mxu0 0.0
        %915 = vmatprep.subr.mxu0 0.0
        %916 = vmatpush2.msra.mxu0 0.0
        %917 = vmatprep.subr.mxu0 0.0
        %918 = vmatpush2.msra.mxu0 0.0
        %919 = vmatprep.subr.mxu0 0.0
        %920 = vmatpush2.msra.mxu0 0.0
        %921 = vmatprep.subr.mxu0 0.0
        %922 = vmatpush2.msra.mxu0 0.0
        %923 = vmatprep.subr.mxu0 0.0
        %924 = vmatpush2.msra.mxu0 0.0
        %925 = vmatprep.subr.mxu0 0.0
        %926 = vmatpush2.msra.mxu0 0.0
        %927 = vmatprep.subr.mxu0 0.0
        %928 = vmatpush2.msra.mxu0 0.0
        %929 = vmatprep.subr.mxu0 0.0
        %930 = vmatpush2.msra.mxu0 0.0
        %931 = vmatprep.mubr.f32.mxu0 0.0
        %932 = vmatmul.mubr.f32.gmra.mxu0 %v859
        %v933 = vpop.f32.mrf.mxu0
        %v934 = vadd.f32 0.0, %v933
        %v935 = vpop.f32.mrf.mxu0
        %v936 = vadd.f32 0.0, %v935
        %937 = vdwg.mxu0
        %v938 = vadd.f32 %v830, %v934
        %v939 = vadd.f32 %v832, %v936
        %940 = vrot.lane.b32.xlu0 %v622, 1
        %v941 = vpop.permute.xlu0 %940
        %942 = vrot.lane.b32.xlu0 %v623, 1
        %v943 = vpop.permute.xlu0 %942
        %vm944 = vcmp.lt.s32.totalorder %v630, 1
        %v945 = vsel %vm944, %v941, %v943
        %v946 = vsel %vm944, %v943, %v941
        %s947 = scalar_lea.vmem %s15, 6
        %v948 = vld [vmem:[%s947] sm:$0x3]
        %v950 = vlaneseq
        %v951 = vshrl.u32 %v950, 7
        %v952 = vsub.s32 0, %v951
        %v953 = vrot.slane %v948, %v952
        %v954 = vlaneseq
        %v955 = vshrl.u32 %v954, 7
        %v956 = vsub.s32 1, %v955
        %v957 = vrot.slane %v948, %v956
        %v960 = vmul.f32 %v946, %v953
        %v961 = vmul.f32 %v945, %v957
        %s962 = scalar_lea.vmem %s6, 24
        %v963 = vld [vmem:[%s962] sm:$0xff]
        %v965 = vsel %vm673, %v963, 0
        %v968 = vsel %vm560, %v960, 0
        %v971 = vsel %vm560, %v961, 0
        %973 = vmatprep.subr.mxu0 0.0
        %974 = vmatpush1.msra.mxu0 0.0
        %975 = vmatprep.subr.mxu0 0.0
        %976 = vmatpush1.msra.mxu0 0.0
        %977 = vmatprep.subr.mxu0 0.0
        %978 = vmatpush1.msra.mxu0 0.0
        %979 = vmatprep.subr.mxu0 0.0
        %980 = vmatpush1.msra.mxu0 0.0
        %981 = vmatprep.subr.mxu0 0.0
        %982 = vmatpush1.msra.mxu0 0.0
        %983 = vmatprep.subr.mxu0 0.0
        %984 = vmatpush1.msra.mxu0 0.0
        %985 = vmatprep.subr.mxu0 0.0
        %986 = vmatpush1.msra.mxu0 0.0
        %987 = vmatprep.subr.mxu0 0.0
        %988 = vmatpush1.msra.mxu0 0.0
        %989 = vmatprep.subr.mxu0 0.0
        %990 = vmatpush1.msra.mxu0 0.0
        %991 = vmatprep.subr.mxu0 0.0
        %992 = vmatpush1.msra.mxu0 0.0
        %993 = vmatprep.subr.mxu0 0.0
        %994 = vmatpush1.msra.mxu0 0.0
        %995 = vmatprep.subr.mxu0 0.0
        %996 = vmatpush1.msra.mxu0 0.0
        %997 = vmatprep.subr.mxu0 0.0
        %998 = vmatpush1.msra.mxu0 0.0
        %999 = vmatprep.subr.mxu0 0.0
        %1000 = vmatpush1.msra.mxu0 0.0
        %1001 = vmatprep.subr.mxu0 0.0
        %1002 = vmatpush1.msra.mxu0 0.0
        %1003 = vmatprep.subr.mxu0 %v971
        %1004 = vmatpush1.msra.mxu0 %v968
        %1005 = vmatprep.subr.mxu0 0.0
        %1006 = vmatpush2.msra.mxu0 0.0
        %1007 = vmatprep.subr.mxu0 0.0
        %1008 = vmatpush2.msra.mxu0 0.0
        %1009 = vmatprep.subr.mxu0 0.0
        %1010 = vmatpush2.msra.mxu0 0.0
        %1011 = vmatprep.subr.mxu0 0.0
        %1012 = vmatpush2.msra.mxu0 0.0
        %1013 = vmatprep.subr.mxu0 0.0
        %1014 = vmatpush2.msra.mxu0 0.0
        %1015 = vmatprep.subr.mxu0 0.0
        %1016 = vmatpush2.msra.mxu0 0.0
        %1017 = vmatprep.subr.mxu0 0.0
        %1018 = vmatpush2.msra.mxu0 0.0
        %1019 = vmatprep.subr.mxu0 0.0
        %1020 = vmatpush2.msra.mxu0 0.0
        %1021 = vmatprep.subr.mxu0 0.0
        %1022 = vmatpush2.msra.mxu0 0.0
        %1023 = vmatprep.subr.mxu0 0.0
        %1024 = vmatpush2.msra.mxu0 0.0
        %1025 = vmatprep.subr.mxu0 0.0
        %1026 = vmatpush2.msra.mxu0 0.0
        %1027 = vmatprep.subr.mxu0 0.0
        %1028 = vmatpush2.msra.mxu0 0.0
        %1029 = vmatprep.subr.mxu0 0.0
        %1030 = vmatpush2.msra.mxu0 0.0
        %1031 = vmatprep.subr.mxu0 0.0
        %1032 = vmatpush2.msra.mxu0 0.0
        %1033 = vmatprep.subr.mxu0 0.0
        %1034 = vmatpush2.msra.mxu0 0.0
        %1035 = vmatprep.subr.mxu0 0.0
        %1036 = vmatpush2.msra.mxu0 0.0
        %1037 = vmatprep.mubr.f32.mxu0 0.0
        %1038 = vmatmul.mubr.f32.gmra.mxu0 %v965
        %v1039 = vpop.f32.mrf.mxu0
        %v1040 = vadd.f32 0.0, %v1039
        %v1041 = vpop.f32.mrf.mxu0
        %v1042 = vadd.f32 0.0, %v1041
        %1043 = vdwg.mxu0
        %v1044 = vadd.f32 %v938, %v1040
        %v1045 = vadd.f32 %v939, %v1042
        %s1046 = scalar_lea.vmem %s15, 8
        %v1047 = vld [vmem:[%s1046] sm:$0x3]
        %v1049 = vlaneseq
        %v1050 = vshrl.u32 %v1049, 7
        %v1051 = vsub.s32 0, %v1050
        %v1052 = vrot.slane %v1047, %v1051
        %v1053 = vlaneseq
        %v1054 = vshrl.u32 %v1053, 7
        %v1055 = vsub.s32 1, %v1054
        %v1056 = vrot.slane %v1047, %v1055
        %v1059 = vmul.f32 %v622, %v1052
        %v1060 = vmul.f32 %v623, %v1056
        %s1061 = scalar_lea.vmem %s6, 32
        %v1062 = vld [vmem:[%s1061] sm:$0xff]
        %v1064 = vsel %vm673, %v1062, 0
        %v1067 = vsel %vm560, %v1059, 0
        %v1070 = vsel %vm560, %v1060, 0
        %1072 = vmatprep.subr.mxu0 0.0
        %1073 = vmatpush1.msra.mxu0 0.0
        %1074 = vmatprep.subr.mxu0 0.0
        %1075 = vmatpush1.msra.mxu0 0.0
        %1076 = vmatprep.subr.mxu0 0.0
        %1077 = vmatpush1.msra.mxu0 0.0
        %1078 = vmatprep.subr.mxu0 0.0
        %1079 = vmatpush1.msra.mxu0 0.0
        %1080 = vmatprep.subr.mxu0 0.0
        %1081 = vmatpush1.msra.mxu0 0.0
        %1082 = vmatprep.subr.mxu0 0.0
        %1083 = vmatpush1.msra.mxu0 0.0
        %1084 = vmatprep.subr.mxu0 0.0
        %1085 = vmatpush1.msra.mxu0 0.0
        %1086 = vmatprep.subr.mxu0 0.0
        %1087 = vmatpush1.msra.mxu0 0.0
        %1088 = vmatprep.subr.mxu0 0.0
        %1089 = vmatpush1.msra.mxu0 0.0
        %1090 = vmatprep.subr.mxu0 0.0
        %1091 = vmatpush1.msra.mxu0 0.0
        %1092 = vmatprep.subr.mxu0 0.0
        %1093 = vmatpush1.msra.mxu0 0.0
        %1094 = vmatprep.subr.mxu0 0.0
        %1095 = vmatpush1.msra.mxu0 0.0
        %1096 = vmatprep.subr.mxu0 0.0
        %1097 = vmatpush1.msra.mxu0 0.0
        %1098 = vmatprep.subr.mxu0 0.0
        %1099 = vmatpush1.msra.mxu0 0.0
        %1100 = vmatprep.subr.mxu0 0.0
        %1101 = vmatpush1.msra.mxu0 0.0
        %1102 = vmatprep.subr.mxu0 %v1070
        %1103 = vmatpush1.msra.mxu0 %v1067
        %1104 = vmatprep.subr.mxu0 0.0
        %1105 = vmatpush2.msra.mxu0 0.0
        %1106 = vmatprep.subr.mxu0 0.0
        %1107 = vmatpush2.msra.mxu0 0.0
        %1108 = vmatprep.subr.mxu0 0.0
        %1109 = vmatpush2.msra.mxu0 0.0
        %1110 = vmatprep.subr.mxu0 0.0
        %1111 = vmatpush2.msra.mxu0 0.0
        %1112 = vmatprep.subr.mxu0 0.0
        %1113 = vmatpush2.msra.mxu0 0.0
        %1114 = vmatprep.subr.mxu0 0.0
        %1115 = vmatpush2.msra.mxu0 0.0
        %1116 = vmatprep.subr.mxu0 0.0
        %1117 = vmatpush2.msra.mxu0 0.0
        %1118 = vmatprep.subr.mxu0 0.0
        %1119 = vmatpush2.msra.mxu0 0.0
        %1120 = vmatprep.subr.mxu0 0.0
        %1121 = vmatpush2.msra.mxu0 0.0
        %1122 = vmatprep.subr.mxu0 0.0
        %1123 = vmatpush2.msra.mxu0 0.0
        %1124 = vmatprep.subr.mxu0 0.0
        %1125 = vmatpush2.msra.mxu0 0.0
        %1126 = vmatprep.subr.mxu0 0.0
        %1127 = vmatpush2.msra.mxu0 0.0
        %1128 = vmatprep.subr.mxu0 0.0
        %1129 = vmatpush2.msra.mxu0 0.0
        %1130 = vmatprep.subr.mxu0 0.0
        %1131 = vmatpush2.msra.mxu0 0.0
        %1132 = vmatprep.subr.mxu0 0.0
        %1133 = vmatpush2.msra.mxu0 0.0
        %1134 = vmatprep.subr.mxu0 0.0
        %1135 = vmatpush2.msra.mxu0 0.0
        %1136 = vmatprep.mubr.f32.mxu0 0.0
        %1137 = vmatmul.mubr.f32.gmra.mxu0 %v1064
        %v1138 = vpop.f32.mrf.mxu0
        %v1139 = vadd.f32 0.0, %v1138
        %v1140 = vpop.f32.mrf.mxu0
        %v1141 = vadd.f32 0.0, %v1140
        %1142 = vdwg.mxu0
        %v1143 = vadd.f32 %v1044, %v1139
        %v1144 = vadd.f32 %v1045, %v1141
        %1145 = vrot.lane.b32.xlu0 %v622, 127
        %v1146 = vpop.permute.xlu0 %1145
        %1147 = vrot.lane.b32.xlu0 %v623, 127
        %v1148 = vpop.permute.xlu0 %1147
        %vm1149 = vcmp.lt.s32.totalorder %v630, 127
        %v1150 = vsel %vm1149, %v1146, %v1148
        %v1151 = vsel %vm1149, %v1148, %v1146
        %s1152 = scalar_lea.vmem %s15, 10
        %v1153 = vld [vmem:[%s1152] sm:$0x3]
        %v1155 = vlaneseq
        %v1156 = vshrl.u32 %v1155, 7
        %v1157 = vsub.s32 0, %v1156
        %v1158 = vrot.slane %v1153, %v1157
        %v1159 = vlaneseq
        %v1160 = vshrl.u32 %v1159, 7
        %v1161 = vsub.s32 1, %v1160
        %v1162 = vrot.slane %v1153, %v1161
        %v1165 = vmul.f32 %v1150, %v1158
        %v1166 = vmul.f32 %v1151, %v1162
        %s1167 = scalar_lea.vmem %s6, 40
        %v1168 = vld [vmem:[%s1167] sm:$0xff]
        %v1170 = vsel %vm673, %v1168, 0
        %v1173 = vsel %vm560, %v1165, 0
        %v1176 = vsel %vm560, %v1166, 0
        %1178 = vmatprep.subr.mxu0 0.0
        %1179 = vmatpush1.msra.mxu0 0.0
        %1180 = vmatprep.subr.mxu0 0.0
        %1181 = vmatpush1.msra.mxu0 0.0
        %1182 = vmatprep.subr.mxu0 0.0
        %1183 = vmatpush1.msra.mxu0 0.0
        %1184 = vmatprep.subr.mxu0 0.0
        %1185 = vmatpush1.msra.mxu0 0.0
        %1186 = vmatprep.subr.mxu0 0.0
        %1187 = vmatpush1.msra.mxu0 0.0
        %1188 = vmatprep.subr.mxu0 0.0
        %1189 = vmatpush1.msra.mxu0 0.0
        %1190 = vmatprep.subr.mxu0 0.0
        %1191 = vmatpush1.msra.mxu0 0.0
        %1192 = vmatprep.subr.mxu0 0.0
        %1193 = vmatpush1.msra.mxu0 0.0
        %1194 = vmatprep.subr.mxu0 0.0
        %1195 = vmatpush1.msra.mxu0 0.0
        %1196 = vmatprep.subr.mxu0 0.0
        %1197 = vmatpush1.msra.mxu0 0.0
        %1198 = vmatprep.subr.mxu0 0.0
        %1199 = vmatpush1.msra.mxu0 0.0
        %1200 = vmatprep.subr.mxu0 0.0
        %1201 = vmatpush1.msra.mxu0 0.0
        %1202 = vmatprep.subr.mxu0 0.0
        %1203 = vmatpush1.msra.mxu0 0.0
        %1204 = vmatprep.subr.mxu0 0.0
        %1205 = vmatpush1.msra.mxu0 0.0
        %1206 = vmatprep.subr.mxu0 0.0
        %1207 = vmatpush1.msra.mxu0 0.0
        %1208 = vmatprep.subr.mxu0 %v1176
        %1209 = vmatpush1.msra.mxu0 %v1173
        %1210 = vmatprep.subr.mxu0 0.0
        %1211 = vmatpush2.msra.mxu0 0.0
        %1212 = vmatprep.subr.mxu0 0.0
        %1213 = vmatpush2.msra.mxu0 0.0
        %1214 = vmatprep.subr.mxu0 0.0
        %1215 = vmatpush2.msra.mxu0 0.0
        %1216 = vmatprep.subr.mxu0 0.0
        %1217 = vmatpush2.msra.mxu0 0.0
        %1218 = vmatprep.subr.mxu0 0.0
        %1219 = vmatpush2.msra.mxu0 0.0
        %1220 = vmatprep.subr.mxu0 0.0
        %1221 = vmatpush2.msra.mxu0 0.0
        %1222 = vmatprep.subr.mxu0 0.0
        %1223 = vmatpush2.msra.mxu0 0.0
        %1224 = vmatprep.subr.mxu0 0.0
        %1225 = vmatpush2.msra.mxu0 0.0
        %1226 = vmatprep.subr.mxu0 0.0
        %1227 = vmatpush2.msra.mxu0 0.0
        %1228 = vmatprep.subr.mxu0 0.0
        %1229 = vmatpush2.msra.mxu0 0.0
        %1230 = vmatprep.subr.mxu0 0.0
        %1231 = vmatpush2.msra.mxu0 0.0
        %1232 = vmatprep.subr.mxu0 0.0
        %1233 = vmatpush2.msra.mxu0 0.0
        %1234 = vmatprep.subr.mxu0 0.0
        %1235 = vmatpush2.msra.mxu0 0.0
        %1236 = vmatprep.subr.mxu0 0.0
        %1237 = vmatpush2.msra.mxu0 0.0
        %1238 = vmatprep.subr.mxu0 0.0
        %1239 = vmatpush2.msra.mxu0 0.0
        %1240 = vmatprep.subr.mxu0 0.0
        %1241 = vmatpush2.msra.mxu0 0.0
        %1242 = vmatprep.mubr.f32.mxu0 0.0
        %1243 = vmatmul.mubr.f32.gmra.mxu0 %v1170
        %v1244 = vpop.f32.mrf.mxu0
        %v1245 = vadd.f32 0.0, %v1244
        %v1246 = vpop.f32.mrf.mxu0
        %v1247 = vadd.f32 0.0, %v1246
        %1248 = vdwg.mxu0
        %v1249 = vadd.f32 %v1143, %v1245
        %v1250 = vadd.f32 %v1144, %v1247
        %1251 = vrot.lane.b32.xlu0 %v622, 113
        %v1252 = vpop.permute.xlu0 %1251
        %1253 = vrot.lane.b32.xlu0 %v623, 113
        %v1254 = vpop.permute.xlu0 %1253
        %vm1255 = vcmp.lt.s32.totalorder %v630, 113
        %v1256 = vsel %vm1255, %v1252, %v1254
        %v1257 = vsel %vm1255, %v1254, %v1252
        %s1258 = scalar_lea.vmem %s15, 12
        %v1259 = vld [vmem:[%s1258] sm:$0x3]
        %v1261 = vlaneseq
        %v1262 = vshrl.u32 %v1261, 7
        %v1263 = vsub.s32 0, %v1262
        %v1264 = vrot.slane %v1259, %v1263
        %v1265 = vlaneseq
        %v1266 = vshrl.u32 %v1265, 7
        %v1267 = vsub.s32 1, %v1266
        %v1268 = vrot.slane %v1259, %v1267
        %v1271 = vmul.f32 %v1256, %v1264
        %v1272 = vmul.f32 %v1257, %v1268
        %s1273 = scalar_lea.vmem %s6, 48
        %v1274 = vld [vmem:[%s1273] sm:$0xff]
        %v1276 = vsel %vm673, %v1274, 0
        %v1279 = vsel %vm560, %v1271, 0
        %v1282 = vsel %vm560, %v1272, 0
        %1284 = vmatprep.subr.mxu0 0.0
        %1285 = vmatpush1.msra.mxu0 0.0
        %1286 = vmatprep.subr.mxu0 0.0
        %1287 = vmatpush1.msra.mxu0 0.0
        %1288 = vmatprep.subr.mxu0 0.0
        %1289 = vmatpush1.msra.mxu0 0.0
        %1290 = vmatprep.subr.mxu0 0.0
        %1291 = vmatpush1.msra.mxu0 0.0
        %1292 = vmatprep.subr.mxu0 0.0
        %1293 = vmatpush1.msra.mxu0 0.0
        %1294 = vmatprep.subr.mxu0 0.0
        %1295 = vmatpush1.msra.mxu0 0.0
        %1296 = vmatprep.subr.mxu0 0.0
        %1297 = vmatpush1.msra.mxu0 0.0
        %1298 = vmatprep.subr.mxu0 0.0
        %1299 = vmatpush1.msra.mxu0 0.0
        %1300 = vmatprep.subr.mxu0 0.0
        %1301 = vmatpush1.msra.mxu0 0.0
        %1302 = vmatprep.subr.mxu0 0.0
        %1303 = vmatpush1.msra.mxu0 0.0
        %1304 = vmatprep.subr.mxu0 0.0
        %1305 = vmatpush1.msra.mxu0 0.0
        %1306 = vmatprep.subr.mxu0 0.0
        %1307 = vmatpush1.msra.mxu0 0.0
        %1308 = vmatprep.subr.mxu0 0.0
        %1309 = vmatpush1.msra.mxu0 0.0
        %1310 = vmatprep.subr.mxu0 0.0
        %1311 = vmatpush1.msra.mxu0 0.0
        %1312 = vmatprep.subr.mxu0 0.0
        %1313 = vmatpush1.msra.mxu0 0.0
        %1314 = vmatprep.subr.mxu0 %v1282
        %1315 = vmatpush1.msra.mxu0 %v1279
        %1316 = vmatprep.subr.mxu0 0.0
        %1317 = vmatpush2.msra.mxu0 0.0
        %1318 = vmatprep.subr.mxu0 0.0
        %1319 = vmatpush2.msra.mxu0 0.0
        %1320 = vmatprep.subr.mxu0 0.0
        %1321 = vmatpush2.msra.mxu0 0.0
        %1322 = vmatprep.subr.mxu0 0.0
        %1323 = vmatpush2.msra.mxu0 0.0
        %1324 = vmatprep.subr.mxu0 0.0
        %1325 = vmatpush2.msra.mxu0 0.0
        %1326 = vmatprep.subr.mxu0 0.0
        %1327 = vmatpush2.msra.mxu0 0.0
        %1328 = vmatprep.subr.mxu0 0.0
        %1329 = vmatpush2.msra.mxu0 0.0
        %1330 = vmatprep.subr.mxu0 0.0
        %1331 = vmatpush2.msra.mxu0 0.0
        %1332 = vmatprep.subr.mxu0 0.0
        %1333 = vmatpush2.msra.mxu0 0.0
        %1334 = vmatprep.subr.mxu0 0.0
        %1335 = vmatpush2.msra.mxu0 0.0
        %1336 = vmatprep.subr.mxu0 0.0
        %1337 = vmatpush2.msra.mxu0 0.0
        %1338 = vmatprep.subr.mxu0 0.0
        %1339 = vmatpush2.msra.mxu0 0.0
        %1340 = vmatprep.subr.mxu0 0.0
        %1341 = vmatpush2.msra.mxu0 0.0
        %1342 = vmatprep.subr.mxu0 0.0
        %1343 = vmatpush2.msra.mxu0 0.0
        %1344 = vmatprep.subr.mxu0 0.0
        %1345 = vmatpush2.msra.mxu0 0.0
        %1346 = vmatprep.subr.mxu0 0.0
        %1347 = vmatpush2.msra.mxu0 0.0
        %1348 = vmatprep.mubr.f32.mxu0 0.0
        %1349 = vmatmul.mubr.f32.gmra.mxu0 %v1276
        %v1350 = vpop.f32.mrf.mxu0
        %v1351 = vadd.f32 0.0, %v1350
        %v1352 = vpop.f32.mrf.mxu0
        %v1353 = vadd.f32 0.0, %v1352
        %1354 = vdwg.mxu0
        %v1355 = vadd.f32 %v1249, %v1351
        %v1356 = vadd.f32 %v1250, %v1353
        %1357 = vrot.lane.b32.xlu0 %v622, 112
        %v1358 = vpop.permute.xlu0 %1357
        %1359 = vrot.lane.b32.xlu0 %v623, 112
        %v1360 = vpop.permute.xlu0 %1359
        %vm1361 = vcmp.lt.s32.totalorder %v630, 112
        %v1362 = vsel %vm1361, %v1358, %v1360
        %v1363 = vsel %vm1361, %v1360, %v1358
        %s1364 = scalar_lea.vmem %s15, 14
        %v1365 = vld [vmem:[%s1364] sm:$0x3]
        %v1367 = vlaneseq
        %v1368 = vshrl.u32 %v1367, 7
        %v1369 = vsub.s32 0, %v1368
        %v1370 = vrot.slane %v1365, %v1369
        %v1371 = vlaneseq
        %v1372 = vshrl.u32 %v1371, 7
        %v1373 = vsub.s32 1, %v1372
        %v1374 = vrot.slane %v1365, %v1373
        %v1377 = vmul.f32 %v1362, %v1370
        %v1378 = vmul.f32 %v1363, %v1374
        %s1379 = scalar_lea.vmem %s6, 56
        %v1380 = vld [vmem:[%s1379] sm:$0xff]
        %v1382 = vsel %vm673, %v1380, 0
        %v1385 = vsel %vm560, %v1377, 0
        %v1388 = vsel %vm560, %v1378, 0
        %1390 = vmatprep.subr.mxu0 0.0
        %1391 = vmatpush1.msra.mxu0 0.0
        %1392 = vmatprep.subr.mxu0 0.0
        %1393 = vmatpush1.msra.mxu0 0.0
        %1394 = vmatprep.subr.mxu0 0.0
        %1395 = vmatpush1.msra.mxu0 0.0
        %1396 = vmatprep.subr.mxu0 0.0
        %1397 = vmatpush1.msra.mxu0 0.0
        %1398 = vmatprep.subr.mxu0 0.0
        %1399 = vmatpush1.msra.mxu0 0.0
        %1400 = vmatprep.subr.mxu0 0.0
        %1401 = vmatpush1.msra.mxu0 0.0
        %1402 = vmatprep.subr.mxu0 0.0
        %1403 = vmatpush1.msra.mxu0 0.0
        %1404 = vmatprep.subr.mxu0 0.0
        %1405 = vmatpush1.msra.mxu0 0.0
        %1406 = vmatprep.subr.mxu0 0.0
        %1407 = vmatpush1.msra.mxu0 0.0
        %1408 = vmatprep.subr.mxu0 0.0
        %1409 = vmatpush1.msra.mxu0 0.0
        %1410 = vmatprep.subr.mxu0 0.0
        %1411 = vmatpush1.msra.mxu0 0.0
        %1412 = vmatprep.subr.mxu0 0.0
        %1413 = vmatpush1.msra.mxu0 0.0
        %1414 = vmatprep.subr.mxu0 0.0
        %1415 = vmatpush1.msra.mxu0 0.0
        %1416 = vmatprep.subr.mxu0 0.0
        %1417 = vmatpush1.msra.mxu0 0.0
        %1418 = vmatprep.subr.mxu0 0.0
        %1419 = vmatpush1.msra.mxu0 0.0
        %1420 = vmatprep.subr.mxu0 %v1388
        %1421 = vmatpush1.msra.mxu0 %v1385
        %1422 = vmatprep.subr.mxu0 0.0
        %1423 = vmatpush2.msra.mxu0 0.0
        %1424 = vmatprep.subr.mxu0 0.0
        %1425 = vmatpush2.msra.mxu0 0.0
        %1426 = vmatprep.subr.mxu0 0.0
        %1427 = vmatpush2.msra.mxu0 0.0
        %1428 = vmatprep.subr.mxu0 0.0
        %1429 = vmatpush2.msra.mxu0 0.0
        %1430 = vmatprep.subr.mxu0 0.0
        %1431 = vmatpush2.msra.mxu0 0.0
        %1432 = vmatprep.subr.mxu0 0.0
        %1433 = vmatpush2.msra.mxu0 0.0
        %1434 = vmatprep.subr.mxu0 0.0
        %1435 = vmatpush2.msra.mxu0 0.0
        %1436 = vmatprep.subr.mxu0 0.0
        %1437 = vmatpush2.msra.mxu0 0.0
        %1438 = vmatprep.subr.mxu0 0.0
        %1439 = vmatpush2.msra.mxu0 0.0
        %1440 = vmatprep.subr.mxu0 0.0
        %1441 = vmatpush2.msra.mxu0 0.0
        %1442 = vmatprep.subr.mxu0 0.0
        %1443 = vmatpush2.msra.mxu0 0.0
        %1444 = vmatprep.subr.mxu0 0.0
        %1445 = vmatpush2.msra.mxu0 0.0
        %1446 = vmatprep.subr.mxu0 0.0
        %1447 = vmatpush2.msra.mxu0 0.0
        %1448 = vmatprep.subr.mxu0 0.0
        %1449 = vmatpush2.msra.mxu0 0.0
        %1450 = vmatprep.subr.mxu0 0.0
        %1451 = vmatpush2.msra.mxu0 0.0
        %1452 = vmatprep.subr.mxu0 0.0
        %1453 = vmatpush2.msra.mxu0 0.0
        %1454 = vmatprep.mubr.f32.mxu0 0.0
        %1455 = vmatmul.mubr.f32.gmra.mxu0 %v1382
        %v1456 = vpop.f32.mrf.mxu0
        %v1457 = vadd.f32 0.0, %v1456
        %v1458 = vpop.f32.mrf.mxu0
        %v1459 = vadd.f32 0.0, %v1458
        %1460 = vdwg.mxu0
        %v1461 = vadd.f32 %v1355, %v1457
        %v1462 = vadd.f32 %v1356, %v1459
        %1463 = vrot.lane.b32.xlu0 %v622, 111
        %v1464 = vpop.permute.xlu0 %1463
        %1465 = vrot.lane.b32.xlu0 %v623, 111
        %v1466 = vpop.permute.xlu0 %1465
        %vm1467 = vcmp.lt.s32.totalorder %v630, 111
        %v1468 = vsel %vm1467, %v1464, %v1466
        %v1469 = vsel %vm1467, %v1466, %v1464
        %s1470 = scalar_lea.vmem %s15, 16
        %v1471 = vld [vmem:[%s1470] sm:$0x3]
        %v1473 = vlaneseq
        %v1474 = vshrl.u32 %v1473, 7
        %v1475 = vsub.s32 0, %v1474
        %v1476 = vrot.slane %v1471, %v1475
        %v1477 = vlaneseq
        %v1478 = vshrl.u32 %v1477, 7
        %v1479 = vsub.s32 1, %v1478
        %v1480 = vrot.slane %v1471, %v1479
        %v1483 = vmul.f32 %v1468, %v1476
        %v1484 = vmul.f32 %v1469, %v1480
        %s1485 = scalar_lea.vmem %s6, 64
        %v1486 = vld [vmem:[%s1485] sm:$0xff]
        %v1488 = vsel %vm673, %v1486, 0
        %v1491 = vsel %vm560, %v1483, 0
        %v1494 = vsel %vm560, %v1484, 0
        %1496 = vmatprep.subr.mxu0 0.0
        %1497 = vmatpush1.msra.mxu0 0.0
        %1498 = vmatprep.subr.mxu0 0.0
        %1499 = vmatpush1.msra.mxu0 0.0
        %1500 = vmatprep.subr.mxu0 0.0
        %1501 = vmatpush1.msra.mxu0 0.0
        %1502 = vmatprep.subr.mxu0 0.0
        %1503 = vmatpush1.msra.mxu0 0.0
        %1504 = vmatprep.subr.mxu0 0.0
        %1505 = vmatpush1.msra.mxu0 0.0
        %1506 = vmatprep.subr.mxu0 0.0
        %1507 = vmatpush1.msra.mxu0 0.0
        %1508 = vmatprep.subr.mxu0 0.0
        %1509 = vmatpush1.msra.mxu0 0.0
        %1510 = vmatprep.subr.mxu0 0.0
        %1511 = vmatpush1.msra.mxu0 0.0
        %1512 = vmatprep.subr.mxu0 0.0
        %1513 = vmatpush1.msra.mxu0 0.0
        %1514 = vmatprep.subr.mxu0 0.0
        %1515 = vmatpush1.msra.mxu0 0.0
        %1516 = vmatprep.subr.mxu0 0.0
        %1517 = vmatpush1.msra.mxu0 0.0
        %1518 = vmatprep.subr.mxu0 0.0
        %1519 = vmatpush1.msra.mxu0 0.0
        %1520 = vmatprep.subr.mxu0 0.0
        %1521 = vmatpush1.msra.mxu0 0.0
        %1522 = vmatprep.subr.mxu0 0.0
        %1523 = vmatpush1.msra.mxu0 0.0
        %1524 = vmatprep.subr.mxu0 0.0
        %1525 = vmatpush1.msra.mxu0 0.0
        %1526 = vmatprep.subr.mxu0 %v1494
        %1527 = vmatpush1.msra.mxu0 %v1491
        %1528 = vmatprep.subr.mxu0 0.0
        %1529 = vmatpush2.msra.mxu0 0.0
        %1530 = vmatprep.subr.mxu0 0.0
        %1531 = vmatpush2.msra.mxu0 0.0
        %1532 = vmatprep.subr.mxu0 0.0
        %1533 = vmatpush2.msra.mxu0 0.0
        %1534 = vmatprep.subr.mxu0 0.0
        %1535 = vmatpush2.msra.mxu0 0.0
        %1536 = vmatprep.subr.mxu0 0.0
        %1537 = vmatpush2.msra.mxu0 0.0
        %1538 = vmatprep.subr.mxu0 0.0
        %1539 = vmatpush2.msra.mxu0 0.0
        %1540 = vmatprep.subr.mxu0 0.0
        %1541 = vmatpush2.msra.mxu0 0.0
        %1542 = vmatprep.subr.mxu0 0.0
        %1543 = vmatpush2.msra.mxu0 0.0
        %1544 = vmatprep.subr.mxu0 0.0
        %1545 = vmatpush2.msra.mxu0 0.0
        %1546 = vmatprep.subr.mxu0 0.0
        %1547 = vmatpush2.msra.mxu0 0.0
        %1548 = vmatprep.subr.mxu0 0.0
        %1549 = vmatpush2.msra.mxu0 0.0
        %1550 = vmatprep.subr.mxu0 0.0
        %1551 = vmatpush2.msra.mxu0 0.0
        %1552 = vmatprep.subr.mxu0 0.0
        %1553 = vmatpush2.msra.mxu0 0.0
        %1554 = vmatprep.subr.mxu0 0.0
        %1555 = vmatpush2.msra.mxu0 0.0
        %1556 = vmatprep.subr.mxu0 0.0
        %1557 = vmatpush2.msra.mxu0 0.0
        %1558 = vmatprep.subr.mxu0 0.0
        %1559 = vmatpush2.msra.mxu0 0.0
        %1560 = vmatprep.mubr.f32.mxu0 0.0
        %1561 = vmatmul.mubr.f32.gmra.mxu0 %v1488
        %v1562 = vpop.f32.mrf.mxu0
        %v1563 = vadd.f32 0.0, %v1562
        %v1564 = vpop.f32.mrf.mxu0
        %v1565 = vadd.f32 0.0, %v1564
        %1566 = vdwg.mxu0
        %v1567 = vadd.f32 %v1461, %v1563
        %v1568 = vadd.f32 %v1462, %v1565
        %1570 = vset.pattern.permute.xlu0 0
        %1571 = vperm.xlu0 %1570, %v624
        %v1572 = vpop.permute.xlu0 %1571
        %v1574 = vadd.f32 %v1567, %v1572
        %v1575 = vadd.f32 %v1568, %v1572
        %v1576 = vld [vmem:[%s8] sm:$0xff]
        %v1577 = vld [vmem:[%s9] sm:$0xff]
        %v1578 = vld [vmem:[%s10] sm:$0xff]
        %v1579 = vld [vmem:[%s11] sm:$0xff]
        %v1580 = vmul.f32 %v1576, %v544
        %vm1581 = vcmask 261120
        %v1582 = vsel %vm1581, %v1580, 0.0
        %1583 = vadd.xlane.f32.xlu0 %v1582
        %v1584 = vpop.xlane.xlu0 %1583
        %v1585 = vadd.f32 %v1584, %v1577
        %v1586 = vmul.f32 %v1578, %v544
        %v1587 = vsel %vm1581, %v1586, 0.0
        %1588 = vadd.xlane.f32.xlu0 %v1587
        %v1589 = vpop.xlane.xlu0 %1588
        %v1590 = vadd.f32 %v1589, %v1579
        %v1591 = vadd.f32 %v1574, %v1575
        %1592 = vadd.xlane.f32.xlu0 %v1591
        %v1593 = vpop.xlane.xlu0 %1592
        %v1594 = vmul.f32 %v1593, %v566
        %v1595 = vsub.f32 %v1574, %v1594
        %v1596 = vsub.f32 %v1575, %v1594
        %v1597 = vmul.f32 %v1595, %v1595
        %v1598 = vmul.f32 %v1596, %v1596
        %v1599 = vadd.f32 %v1597, %v1598
        %1600 = vadd.xlane.f32.xlu0 %v1599
        %v1601 = vpop.xlane.xlu0 %1600
        %v1602 = vmul.f32 %v1601, %v566
        %v1603 = vadd.f32 %v1602, 1e-05
        %v1604 = vrsqrt.pop %v1603
        %v1605 = vmul.f32 %v1595, %v1604
        %v1606 = vmul.f32 %v1596, %v1604
        %v1607 = vadd.f32 %v1585, 1.0
        %1609 = vset.pattern.permute.xlu0 0
        %1610 = vperm.xlu0 %1609, %v1607
        %v1611 = vpop.permute.xlu0 %1610
        %v1613 = vmul.f32 %v1611, %v1605
        %v1614 = vmul.f32 %v1611, %v1606
        %1616 = vset.pattern.permute.xlu0 0
        %1617 = vperm.xlu0 %1616, %v1590
        %v1618 = vpop.permute.xlu0 %1617
        %v1620 = vadd.f32 %v1613, %v1618
        %v1621 = vadd.f32 %v1614, %v1618
        %vm1622 = vcmp.gt.f32.partialorder %v1620, 0.0
        %vm1623 = vcmp.gt.f32.partialorder %v1621, 0.0
        %v1624 = vmul.f32 %v1620, 0.2
        %v1625 = vmul.f32 %v1621, 0.2
        %v1626 = vsel %vm1622, %v1620, %v1624
        %v1627 = vsel %vm1623, %v1621, %v1625
        %v1628 = vld [vmem:[%s13] sm:$0xff]
        %1629 = vrot.lane.b32.xlu0 %v1626, 17
        %v1630 = vpop.permute.xlu0 %1629
        %1631 = vrot.lane.b32.xlu0 %v1627, 17
        %v1632 = vpop.permute.xlu0 %1631
        %v1633 = vsel %vm631, %v1630, %v1632
        %v1634 = vsel %vm631, %v1632, %v1630
        %v1635 = vmul.f32 %v1634, %v639
        %v1636 = vmul.f32 %v1633, %v643
        %v1637 = vld [vmem:[%s12] sm:$0xff]
        %1638 = vrot.lane.b32.xlu0 %v1626, 16
        %v1639 = vpop.permute.xlu0 %1638
        %1640 = vrot.lane.b32.xlu0 %v1627, 16
        %v1641 = vpop.permute.xlu0 %1640
        %v1642 = vsel %vm653, %v1639, %v1641
        %v1643 = vsel %vm653, %v1641, %v1639
        %v1644 = vmul.f32 %v1643, %v662
        %v1645 = vmul.f32 %v1642, %v666
        %s1646 = scalar_lea.vmem %s12, 8
        %v1647 = vld [vmem:[%s1646] sm:$0xff]
        %vm1648 = vcmask 64512
        %v1650 = vsel %vm1648, %v1647, 0
        %1652 = vmatprep.subr.mxu0 0.0
        %1653 = vmatpush1.msra.mxu0 0.0
        %1654 = vmatprep.subr.mxu0 0.0
        %1655 = vmatpush1.msra.mxu0 0.0
        %1656 = vmatprep.subr.mxu0 0.0
        %1657 = vmatpush1.msra.mxu0 0.0
        %1658 = vmatprep.subr.mxu0 0.0
        %1659 = vmatpush1.msra.mxu0 0.0
        %1660 = vmatprep.subr.mxu0 0.0
        %1661 = vmatpush1.msra.mxu0 0.0
        %1662 = vmatprep.subr.mxu0 0.0
        %1663 = vmatpush1.msra.mxu0 0.0
        %1664 = vmatprep.subr.mxu0 0.0
        %1665 = vmatpush1.msra.mxu0 0.0
        %1666 = vmatprep.subr.mxu0 0.0
        %1667 = vmatpush1.msra.mxu0 0.0
        %1668 = vmatprep.subr.mxu0 0.0
        %1669 = vmatpush1.msra.mxu0 0.0
        %1670 = vmatprep.subr.mxu0 0.0
        %1671 = vmatpush1.msra.mxu0 0.0
        %1672 = vmatprep.subr.mxu0 0.0
        %1673 = vmatpush1.msra.mxu0 0.0
        %1674 = vmatprep.subr.mxu0 0.0
        %1675 = vmatpush1.msra.mxu0 0.0
        %1676 = vmatprep.subr.mxu0 0.0
        %1677 = vmatpush1.msra.mxu0 0.0
        %1678 = vmatprep.subr.mxu0 0.0
        %1679 = vmatpush1.msra.mxu0 0.0
        %1680 = vmatprep.subr.mxu0 0.0
        %1681 = vmatpush1.msra.mxu0 0.0
        %1682 = vmatprep.subr.mxu0 %v1645
        %1683 = vmatpush1.msra.mxu0 %v1644
        %1684 = vmatprep.subr.mxu0 0.0
        %1685 = vmatpush2.msra.mxu0 0.0
        %1686 = vmatprep.subr.mxu0 0.0
        %1687 = vmatpush2.msra.mxu0 0.0
        %1688 = vmatprep.subr.mxu0 0.0
        %1689 = vmatpush2.msra.mxu0 0.0
        %1690 = vmatprep.subr.mxu0 0.0
        %1691 = vmatpush2.msra.mxu0 0.0
        %1692 = vmatprep.subr.mxu0 0.0
        %1693 = vmatpush2.msra.mxu0 0.0
        %1694 = vmatprep.subr.mxu0 0.0
        %1695 = vmatpush2.msra.mxu0 0.0
        %1696 = vmatprep.subr.mxu0 0.0
        %1697 = vmatpush2.msra.mxu0 0.0
        %1698 = vmatprep.subr.mxu0 0.0
        %1699 = vmatpush2.msra.mxu0 0.0
        %1700 = vmatprep.subr.mxu0 0.0
        %1701 = vmatpush2.msra.mxu0 0.0
        %1702 = vmatprep.subr.mxu0 0.0
        %1703 = vmatpush2.msra.mxu0 0.0
        %1704 = vmatprep.subr.mxu0 0.0
        %1705 = vmatpush2.msra.mxu0 0.0
        %1706 = vmatprep.subr.mxu0 0.0
        %1707 = vmatpush2.msra.mxu0 0.0
        %1708 = vmatprep.subr.mxu0 0.0
        %1709 = vmatpush2.msra.mxu0 0.0
        %1710 = vmatprep.subr.mxu0 0.0
        %1711 = vmatpush2.msra.mxu0 0.0
        %1712 = vmatprep.subr.mxu0 0.0
        %1713 = vmatpush2.msra.mxu0 0.0
        %1714 = vmatprep.subr.mxu0 0.0
        %1715 = vmatpush2.msra.mxu0 0.0
        %1716 = vmatprep.mubr.f32.mxu0 0.0
        %1717 = vmatmul.mubr.f32.gmra.mxu0 %v1650
        %v1718 = vpop.f32.mrf.mxu0
        %v1719 = vadd.f32 0.0, %v1718
        %v1720 = vpop.f32.mrf.mxu0
        %v1721 = vadd.f32 0.0, %v1720
        %1722 = vdwg.mxu0
        %v1724 = vsel %vm1648, %v1637, 0
        %1726 = vmatprep.subr.mxu0 0.0
        %1727 = vmatpush1.msra.mxu0 0.0
        %1728 = vmatprep.subr.mxu0 0.0
        %1729 = vmatpush1.msra.mxu0 0.0
        %1730 = vmatprep.subr.mxu0 0.0
        %1731 = vmatpush1.msra.mxu0 0.0
        %1732 = vmatprep.subr.mxu0 0.0
        %1733 = vmatpush1.msra.mxu0 0.0
        %1734 = vmatprep.subr.mxu0 0.0
        %1735 = vmatpush1.msra.mxu0 0.0
        %1736 = vmatprep.subr.mxu0 0.0
        %1737 = vmatpush1.msra.mxu0 0.0
        %1738 = vmatprep.subr.mxu0 0.0
        %1739 = vmatpush1.msra.mxu0 0.0
        %1740 = vmatprep.subr.mxu0 0.0
        %1741 = vmatpush1.msra.mxu0 0.0
        %1742 = vmatprep.subr.mxu0 0.0
        %1743 = vmatpush1.msra.mxu0 0.0
        %1744 = vmatprep.subr.mxu0 0.0
        %1745 = vmatpush1.msra.mxu0 0.0
        %1746 = vmatprep.subr.mxu0 0.0
        %1747 = vmatpush1.msra.mxu0 0.0
        %1748 = vmatprep.subr.mxu0 0.0
        %1749 = vmatpush1.msra.mxu0 0.0
        %1750 = vmatprep.subr.mxu0 0.0
        %1751 = vmatpush1.msra.mxu0 0.0
        %1752 = vmatprep.subr.mxu0 0.0
        %1753 = vmatpush1.msra.mxu0 0.0
        %1754 = vmatprep.subr.mxu0 0.0
        %1755 = vmatpush1.msra.mxu0 0.0
        %1756 = vmatprep.subr.mxu0 %v1636
        %1757 = vmatpush1.msra.mxu0 %v1635
        %1758 = vmatprep.subr.mxu0 0.0
        %1759 = vmatpush2.msra.mxu0 0.0
        %1760 = vmatprep.subr.mxu0 0.0
        %1761 = vmatpush2.msra.mxu0 0.0
        %1762 = vmatprep.subr.mxu0 0.0
        %1763 = vmatpush2.msra.mxu0 0.0
        %1764 = vmatprep.subr.mxu0 0.0
        %1765 = vmatpush2.msra.mxu0 0.0
        %1766 = vmatprep.subr.mxu0 0.0
        %1767 = vmatpush2.msra.mxu0 0.0
        %1768 = vmatprep.subr.mxu0 0.0
        %1769 = vmatpush2.msra.mxu0 0.0
        %1770 = vmatprep.subr.mxu0 0.0
        %1771 = vmatpush2.msra.mxu0 0.0
        %1772 = vmatprep.subr.mxu0 0.0
        %1773 = vmatpush2.msra.mxu0 0.0
        %1774 = vmatprep.subr.mxu0 0.0
        %1775 = vmatpush2.msra.mxu0 0.0
        %1776 = vmatprep.subr.mxu0 0.0
        %1777 = vmatpush2.msra.mxu0 0.0
        %1778 = vmatprep.subr.mxu0 0.0
        %1779 = vmatpush2.msra.mxu0 0.0
        %1780 = vmatprep.subr.mxu0 0.0
        %1781 = vmatpush2.msra.mxu0 0.0
        %1782 = vmatprep.subr.mxu0 0.0
        %1783 = vmatpush2.msra.mxu0 0.0
        %1784 = vmatprep.subr.mxu0 0.0
        %1785 = vmatpush2.msra.mxu0 0.0
        %1786 = vmatprep.subr.mxu0 0.0
        %1787 = vmatpush2.msra.mxu0 0.0
        %1788 = vmatprep.subr.mxu0 0.0
        %1789 = vmatpush2.msra.mxu0 0.0
        %1790 = vmatprep.mubr.f32.mxu0 0.0
        %1791 = vmatmul.mubr.f32.gmra.mxu0 %v1724
        %v1792 = vpop.f32.mrf.mxu0
        %v1793 = vadd.f32 %v1719, %v1792
        %v1794 = vpop.f32.mrf.mxu0
        %v1795 = vadd.f32 %v1721, %v1794
        %1796 = vdwg.mxu0
        %1797 = vrot.lane.b32.xlu0 %v1626, 15
        %v1798 = vpop.permute.xlu0 %1797
        %1799 = vrot.lane.b32.xlu0 %v1627, 15
        %v1800 = vpop.permute.xlu0 %1799
        %v1801 = vsel %vm838, %v1798, %v1800
        %v1802 = vsel %vm838, %v1800, %v1798
        %v1803 = vmul.f32 %v1802, %v847
        %v1804 = vmul.f32 %v1801, %v851
        %s1805 = scalar_lea.vmem %s12, 16
        %v1806 = vld [vmem:[%s1805] sm:$0xff]
        %v1808 = vsel %vm1648, %v1806, 0
        %1810 = vmatprep.subr.mxu0 0.0
        %1811 = vmatpush1.msra.mxu0 0.0
        %1812 = vmatprep.subr.mxu0 0.0
        %1813 = vmatpush1.msra.mxu0 0.0
        %1814 = vmatprep.subr.mxu0 0.0
        %1815 = vmatpush1.msra.mxu0 0.0
        %1816 = vmatprep.subr.mxu0 0.0
        %1817 = vmatpush1.msra.mxu0 0.0
        %1818 = vmatprep.subr.mxu0 0.0
        %1819 = vmatpush1.msra.mxu0 0.0
        %1820 = vmatprep.subr.mxu0 0.0
        %1821 = vmatpush1.msra.mxu0 0.0
        %1822 = vmatprep.subr.mxu0 0.0
        %1823 = vmatpush1.msra.mxu0 0.0
        %1824 = vmatprep.subr.mxu0 0.0
        %1825 = vmatpush1.msra.mxu0 0.0
        %1826 = vmatprep.subr.mxu0 0.0
        %1827 = vmatpush1.msra.mxu0 0.0
        %1828 = vmatprep.subr.mxu0 0.0
        %1829 = vmatpush1.msra.mxu0 0.0
        %1830 = vmatprep.subr.mxu0 0.0
        %1831 = vmatpush1.msra.mxu0 0.0
        %1832 = vmatprep.subr.mxu0 0.0
        %1833 = vmatpush1.msra.mxu0 0.0
        %1834 = vmatprep.subr.mxu0 0.0
        %1835 = vmatpush1.msra.mxu0 0.0
        %1836 = vmatprep.subr.mxu0 0.0
        %1837 = vmatpush1.msra.mxu0 0.0
        %1838 = vmatprep.subr.mxu0 0.0
        %1839 = vmatpush1.msra.mxu0 0.0
        %1840 = vmatprep.subr.mxu0 %v1804
        %1841 = vmatpush1.msra.mxu0 %v1803
        %1842 = vmatprep.subr.mxu0 0.0
        %1843 = vmatpush2.msra.mxu0 0.0
        %1844 = vmatprep.subr.mxu0 0.0
        %1845 = vmatpush2.msra.mxu0 0.0
        %1846 = vmatprep.subr.mxu0 0.0
        %1847 = vmatpush2.msra.mxu0 0.0
        %1848 = vmatprep.subr.mxu0 0.0
        %1849 = vmatpush2.msra.mxu0 0.0
        %1850 = vmatprep.subr.mxu0 0.0
        %1851 = vmatpush2.msra.mxu0 0.0
        %1852 = vmatprep.subr.mxu0 0.0
        %1853 = vmatpush2.msra.mxu0 0.0
        %1854 = vmatprep.subr.mxu0 0.0
        %1855 = vmatpush2.msra.mxu0 0.0
        %1856 = vmatprep.subr.mxu0 0.0
        %1857 = vmatpush2.msra.mxu0 0.0
        %1858 = vmatprep.subr.mxu0 0.0
        %1859 = vmatpush2.msra.mxu0 0.0
        %1860 = vmatprep.subr.mxu0 0.0
        %1861 = vmatpush2.msra.mxu0 0.0
        %1862 = vmatprep.subr.mxu0 0.0
        %1863 = vmatpush2.msra.mxu0 0.0
        %1864 = vmatprep.subr.mxu0 0.0
        %1865 = vmatpush2.msra.mxu0 0.0
        %1866 = vmatprep.subr.mxu0 0.0
        %1867 = vmatpush2.msra.mxu0 0.0
        %1868 = vmatprep.subr.mxu0 0.0
        %1869 = vmatpush2.msra.mxu0 0.0
        %1870 = vmatprep.subr.mxu0 0.0
        %1871 = vmatpush2.msra.mxu0 0.0
        %1872 = vmatprep.subr.mxu0 0.0
        %1873 = vmatpush2.msra.mxu0 0.0
        %1874 = vmatprep.mubr.f32.mxu0 0.0
        %1875 = vmatmul.mubr.f32.gmra.mxu0 %v1808
        %v1876 = vpop.f32.mrf.mxu0
        %v1877 = vadd.f32 0.0, %v1876
        %v1878 = vpop.f32.mrf.mxu0
        %v1879 = vadd.f32 0.0, %v1878
        %1880 = vdwg.mxu0
        %v1881 = vadd.f32 %v1793, %v1877
        %v1882 = vadd.f32 %v1795, %v1879
        %1883 = vrot.lane.b32.xlu0 %v1626, 1
        %v1884 = vpop.permute.xlu0 %1883
        %1885 = vrot.lane.b32.xlu0 %v1627, 1
        %v1886 = vpop.permute.xlu0 %1885
        %v1887 = vsel %vm944, %v1884, %v1886
        %v1888 = vsel %vm944, %v1886, %v1884
        %v1889 = vmul.f32 %v1888, %v953
        %v1890 = vmul.f32 %v1887, %v957
        %s1891 = scalar_lea.vmem %s12, 24
        %v1892 = vld [vmem:[%s1891] sm:$0xff]
        %v1894 = vsel %vm1648, %v1892, 0
        %1896 = vmatprep.subr.mxu0 0.0
        %1897 = vmatpush1.msra.mxu0 0.0
        %1898 = vmatprep.subr.mxu0 0.0
        %1899 = vmatpush1.msra.mxu0 0.0
        %1900 = vmatprep.subr.mxu0 0.0
        %1901 = vmatpush1.msra.mxu0 0.0
        %1902 = vmatprep.subr.mxu0 0.0
        %1903 = vmatpush1.msra.mxu0 0.0
        %1904 = vmatprep.subr.mxu0 0.0
        %1905 = vmatpush1.msra.mxu0 0.0
        %1906 = vmatprep.subr.mxu0 0.0
        %1907 = vmatpush1.msra.mxu0 0.0
        %1908 = vmatprep.subr.mxu0 0.0
        %1909 = vmatpush1.msra.mxu0 0.0
        %1910 = vmatprep.subr.mxu0 0.0
        %1911 = vmatpush1.msra.mxu0 0.0
        %1912 = vmatprep.subr.mxu0 0.0
        %1913 = vmatpush1.msra.mxu0 0.0
        %1914 = vmatprep.subr.mxu0 0.0
        %1915 = vmatpush1.msra.mxu0 0.0
        %1916 = vmatprep.subr.mxu0 0.0
        %1917 = vmatpush1.msra.mxu0 0.0
        %1918 = vmatprep.subr.mxu0 0.0
        %1919 = vmatpush1.msra.mxu0 0.0
        %1920 = vmatprep.subr.mxu0 0.0
        %1921 = vmatpush1.msra.mxu0 0.0
        %1922 = vmatprep.subr.mxu0 0.0
        %1923 = vmatpush1.msra.mxu0 0.0
        %1924 = vmatprep.subr.mxu0 0.0
        %1925 = vmatpush1.msra.mxu0 0.0
        %1926 = vmatprep.subr.mxu0 %v1890
        %1927 = vmatpush1.msra.mxu0 %v1889
        %1928 = vmatprep.subr.mxu0 0.0
        %1929 = vmatpush2.msra.mxu0 0.0
        %1930 = vmatprep.subr.mxu0 0.0
        %1931 = vmatpush2.msra.mxu0 0.0
        %1932 = vmatprep.subr.mxu0 0.0
        %1933 = vmatpush2.msra.mxu0 0.0
        %1934 = vmatprep.subr.mxu0 0.0
        %1935 = vmatpush2.msra.mxu0 0.0
        %1936 = vmatprep.subr.mxu0 0.0
        %1937 = vmatpush2.msra.mxu0 0.0
        %1938 = vmatprep.subr.mxu0 0.0
        %1939 = vmatpush2.msra.mxu0 0.0
        %1940 = vmatprep.subr.mxu0 0.0
        %1941 = vmatpush2.msra.mxu0 0.0
        %1942 = vmatprep.subr.mxu0 0.0
        %1943 = vmatpush2.msra.mxu0 0.0
        %1944 = vmatprep.subr.mxu0 0.0
        %1945 = vmatpush2.msra.mxu0 0.0
        %1946 = vmatprep.subr.mxu0 0.0
        %1947 = vmatpush2.msra.mxu0 0.0
        %1948 = vmatprep.subr.mxu0 0.0
        %1949 = vmatpush2.msra.mxu0 0.0
        %1950 = vmatprep.subr.mxu0 0.0
        %1951 = vmatpush2.msra.mxu0 0.0
        %1952 = vmatprep.subr.mxu0 0.0
        %1953 = vmatpush2.msra.mxu0 0.0
        %1954 = vmatprep.subr.mxu0 0.0
        %1955 = vmatpush2.msra.mxu0 0.0
        %1956 = vmatprep.subr.mxu0 0.0
        %1957 = vmatpush2.msra.mxu0 0.0
        %1958 = vmatprep.subr.mxu0 0.0
        %1959 = vmatpush2.msra.mxu0 0.0
        %1960 = vmatprep.mubr.f32.mxu0 0.0
        %1961 = vmatmul.mubr.f32.gmra.mxu0 %v1894
        %v1962 = vpop.f32.mrf.mxu0
        %v1963 = vadd.f32 0.0, %v1962
        %v1964 = vpop.f32.mrf.mxu0
        %v1965 = vadd.f32 0.0, %v1964
        %1966 = vdwg.mxu0
        %v1967 = vadd.f32 %v1881, %v1963
        %v1968 = vadd.f32 %v1882, %v1965
        %v1969 = vmul.f32 %v1626, %v1052
        %v1970 = vmul.f32 %v1627, %v1056
        %s1971 = scalar_lea.vmem %s12, 32
        %v1972 = vld [vmem:[%s1971] sm:$0xff]
        %v1974 = vsel %vm1648, %v1972, 0
        %1976 = vmatprep.subr.mxu0 0.0
        %1977 = vmatpush1.msra.mxu0 0.0
        %1978 = vmatprep.subr.mxu0 0.0
        %1979 = vmatpush1.msra.mxu0 0.0
        %1980 = vmatprep.subr.mxu0 0.0
        %1981 = vmatpush1.msra.mxu0 0.0
        %1982 = vmatprep.subr.mxu0 0.0
        %1983 = vmatpush1.msra.mxu0 0.0
        %1984 = vmatprep.subr.mxu0 0.0
        %1985 = vmatpush1.msra.mxu0 0.0
        %1986 = vmatprep.subr.mxu0 0.0
        %1987 = vmatpush1.msra.mxu0 0.0
        %1988 = vmatprep.subr.mxu0 0.0
        %1989 = vmatpush1.msra.mxu0 0.0
        %1990 = vmatprep.subr.mxu0 0.0
        %1991 = vmatpush1.msra.mxu0 0.0
        %1992 = vmatprep.subr.mxu0 0.0
        %1993 = vmatpush1.msra.mxu0 0.0
        %1994 = vmatprep.subr.mxu0 0.0
        %1995 = vmatpush1.msra.mxu0 0.0
        %1996 = vmatprep.subr.mxu0 0.0
        %1997 = vmatpush1.msra.mxu0 0.0
        %1998 = vmatprep.subr.mxu0 0.0
        %1999 = vmatpush1.msra.mxu0 0.0
        %2000 = vmatprep.subr.mxu0 0.0
        %2001 = vmatpush1.msra.mxu0 0.0
        %2002 = vmatprep.subr.mxu0 0.0
        %2003 = vmatpush1.msra.mxu0 0.0
        %2004 = vmatprep.subr.mxu0 0.0
        %2005 = vmatpush1.msra.mxu0 0.0
        %2006 = vmatprep.subr.mxu0 %v1970
        %2007 = vmatpush1.msra.mxu0 %v1969
        %2008 = vmatprep.subr.mxu0 0.0
        %2009 = vmatpush2.msra.mxu0 0.0
        %2010 = vmatprep.subr.mxu0 0.0
        %2011 = vmatpush2.msra.mxu0 0.0
        %2012 = vmatprep.subr.mxu0 0.0
        %2013 = vmatpush2.msra.mxu0 0.0
        %2014 = vmatprep.subr.mxu0 0.0
        %2015 = vmatpush2.msra.mxu0 0.0
        %2016 = vmatprep.subr.mxu0 0.0
        %2017 = vmatpush2.msra.mxu0 0.0
        %2018 = vmatprep.subr.mxu0 0.0
        %2019 = vmatpush2.msra.mxu0 0.0
        %2020 = vmatprep.subr.mxu0 0.0
        %2021 = vmatpush2.msra.mxu0 0.0
        %2022 = vmatprep.subr.mxu0 0.0
        %2023 = vmatpush2.msra.mxu0 0.0
        %2024 = vmatprep.subr.mxu0 0.0
        %2025 = vmatpush2.msra.mxu0 0.0
        %2026 = vmatprep.subr.mxu0 0.0
        %2027 = vmatpush2.msra.mxu0 0.0
        %2028 = vmatprep.subr.mxu0 0.0
        %2029 = vmatpush2.msra.mxu0 0.0
        %2030 = vmatprep.subr.mxu0 0.0
        %2031 = vmatpush2.msra.mxu0 0.0
        %2032 = vmatprep.subr.mxu0 0.0
        %2033 = vmatpush2.msra.mxu0 0.0
        %2034 = vmatprep.subr.mxu0 0.0
        %2035 = vmatpush2.msra.mxu0 0.0
        %2036 = vmatprep.subr.mxu0 0.0
        %2037 = vmatpush2.msra.mxu0 0.0
        %2038 = vmatprep.subr.mxu0 0.0
        %2039 = vmatpush2.msra.mxu0 0.0
        %2040 = vmatprep.mubr.f32.mxu0 0.0
        %2041 = vmatmul.mubr.f32.gmra.mxu0 %v1974
        %v2042 = vpop.f32.mrf.mxu0
        %v2043 = vadd.f32 0.0, %v2042
        %v2044 = vpop.f32.mrf.mxu0
        %v2045 = vadd.f32 0.0, %v2044
        %2046 = vdwg.mxu0
        %v2047 = vadd.f32 %v1967, %v2043
        %v2048 = vadd.f32 %v1968, %v2045
        %2049 = vrot.lane.b32.xlu0 %v1626, 127
        %v2050 = vpop.permute.xlu0 %2049
        %2051 = vrot.lane.b32.xlu0 %v1627, 127
        %v2052 = vpop.permute.xlu0 %2051
        %v2053 = vsel %vm1149, %v2050, %v2052
        %v2054 = vsel %vm1149, %v2052, %v2050
        %v2055 = vmul.f32 %v2053, %v1158
        %v2056 = vmul.f32 %v2054, %v1162
        %s2057 = scalar_lea.vmem %s12, 40
        %v2058 = vld [vmem:[%s2057] sm:$0xff]
        %v2060 = vsel %vm1648, %v2058, 0
        %2062 = vmatprep.subr.mxu0 0.0
        %2063 = vmatpush1.msra.mxu0 0.0
        %2064 = vmatprep.subr.mxu0 0.0
        %2065 = vmatpush1.msra.mxu0 0.0
        %2066 = vmatprep.subr.mxu0 0.0
        %2067 = vmatpush1.msra.mxu0 0.0
        %2068 = vmatprep.subr.mxu0 0.0
        %2069 = vmatpush1.msra.mxu0 0.0
        %2070 = vmatprep.subr.mxu0 0.0
        %2071 = vmatpush1.msra.mxu0 0.0
        %2072 = vmatprep.subr.mxu0 0.0
        %2073 = vmatpush1.msra.mxu0 0.0
        %2074 = vmatprep.subr.mxu0 0.0
        %2075 = vmatpush1.msra.mxu0 0.0
        %2076 = vmatprep.subr.mxu0 0.0
        %2077 = vmatpush1.msra.mxu0 0.0
        %2078 = vmatprep.subr.mxu0 0.0
        %2079 = vmatpush1.msra.mxu0 0.0
        %2080 = vmatprep.subr.mxu0 0.0
        %2081 = vmatpush1.msra.mxu0 0.0
        %2082 = vmatprep.subr.mxu0 0.0
        %2083 = vmatpush1.msra.mxu0 0.0
        %2084 = vmatprep.subr.mxu0 0.0
        %2085 = vmatpush1.msra.mxu0 0.0
        %2086 = vmatprep.subr.mxu0 0.0
        %2087 = vmatpush1.msra.mxu0 0.0
        %2088 = vmatprep.subr.mxu0 0.0
        %2089 = vmatpush1.msra.mxu0 0.0
        %2090 = vmatprep.subr.mxu0 0.0
        %2091 = vmatpush1.msra.mxu0 0.0
        %2092 = vmatprep.subr.mxu0 %v2056
        %2093 = vmatpush1.msra.mxu0 %v2055
        %2094 = vmatprep.subr.mxu0 0.0
        %2095 = vmatpush2.msra.mxu0 0.0
        %2096 = vmatprep.subr.mxu0 0.0
        %2097 = vmatpush2.msra.mxu0 0.0
        %2098 = vmatprep.subr.mxu0 0.0
        %2099 = vmatpush2.msra.mxu0 0.0
        %2100 = vmatprep.subr.mxu0 0.0
        %2101 = vmatpush2.msra.mxu0 0.0
        %2102 = vmatprep.subr.mxu0 0.0
        %2103 = vmatpush2.msra.mxu0 0.0
        %2104 = vmatprep.subr.mxu0 0.0
        %2105 = vmatpush2.msra.mxu0 0.0
        %2106 = vmatprep.subr.mxu0 0.0
        %2107 = vmatpush2.msra.mxu0 0.0
        %2108 = vmatprep.subr.mxu0 0.0
        %2109 = vmatpush2.msra.mxu0 0.0
        %2110 = vmatprep.subr.mxu0 0.0
        %2111 = vmatpush2.msra.mxu0 0.0
        %2112 = vmatprep.subr.mxu0 0.0
        %2113 = vmatpush2.msra.mxu0 0.0
        %2114 = vmatprep.subr.mxu0 0.0
        %2115 = vmatpush2.msra.mxu0 0.0
        %2116 = vmatprep.subr.mxu0 0.0
        %2117 = vmatpush2.msra.mxu0 0.0
        %2118 = vmatprep.subr.mxu0 0.0
        %2119 = vmatpush2.msra.mxu0 0.0
        %2120 = vmatprep.subr.mxu0 0.0
        %2121 = vmatpush2.msra.mxu0 0.0
        %2122 = vmatprep.subr.mxu0 0.0
        %2123 = vmatpush2.msra.mxu0 0.0
        %2124 = vmatprep.subr.mxu0 0.0
        %2125 = vmatpush2.msra.mxu0 0.0
        %2126 = vmatprep.mubr.f32.mxu0 0.0
        %2127 = vmatmul.mubr.f32.gmra.mxu0 %v2060
        %v2128 = vpop.f32.mrf.mxu0
        %v2129 = vadd.f32 0.0, %v2128
        %v2130 = vpop.f32.mrf.mxu0
        %v2131 = vadd.f32 0.0, %v2130
        %2132 = vdwg.mxu0
        %v2133 = vadd.f32 %v2047, %v2129
        %v2134 = vadd.f32 %v2048, %v2131
        %2135 = vrot.lane.b32.xlu0 %v1626, 113
        %v2136 = vpop.permute.xlu0 %2135
        %2137 = vrot.lane.b32.xlu0 %v1627, 113
        %v2138 = vpop.permute.xlu0 %2137
        %v2139 = vsel %vm1255, %v2136, %v2138
        %v2140 = vsel %vm1255, %v2138, %v2136
        %v2141 = vmul.f32 %v2139, %v1264
        %v2142 = vmul.f32 %v2140, %v1268
        %s2143 = scalar_lea.vmem %s12, 48
        %v2144 = vld [vmem:[%s2143] sm:$0xff]
        %v2146 = vsel %vm1648, %v2144, 0
        %2148 = vmatprep.subr.mxu0 0.0
        %2149 = vmatpush1.msra.mxu0 0.0
        %2150 = vmatprep.subr.mxu0 0.0
        %2151 = vmatpush1.msra.mxu0 0.0
        %2152 = vmatprep.subr.mxu0 0.0
        %2153 = vmatpush1.msra.mxu0 0.0
        %2154 = vmatprep.subr.mxu0 0.0
        %2155 = vmatpush1.msra.mxu0 0.0
        %2156 = vmatprep.subr.mxu0 0.0
        %2157 = vmatpush1.msra.mxu0 0.0
        %2158 = vmatprep.subr.mxu0 0.0
        %2159 = vmatpush1.msra.mxu0 0.0
        %2160 = vmatprep.subr.mxu0 0.0
        %2161 = vmatpush1.msra.mxu0 0.0
        %2162 = vmatprep.subr.mxu0 0.0
        %2163 = vmatpush1.msra.mxu0 0.0
        %2164 = vmatprep.subr.mxu0 0.0
        %2165 = vmatpush1.msra.mxu0 0.0
        %2166 = vmatprep.subr.mxu0 0.0
        %2167 = vmatpush1.msra.mxu0 0.0
        %2168 = vmatprep.subr.mxu0 0.0
        %2169 = vmatpush1.msra.mxu0 0.0
        %2170 = vmatprep.subr.mxu0 0.0
        %2171 = vmatpush1.msra.mxu0 0.0
        %2172 = vmatprep.subr.mxu0 0.0
        %2173 = vmatpush1.msra.mxu0 0.0
        %2174 = vmatprep.subr.mxu0 0.0
        %2175 = vmatpush1.msra.mxu0 0.0
        %2176 = vmatprep.subr.mxu0 0.0
        %2177 = vmatpush1.msra.mxu0 0.0
        %2178 = vmatprep.subr.mxu0 %v2142
        %2179 = vmatpush1.msra.mxu0 %v2141
        %2180 = vmatprep.subr.mxu0 0.0
        %2181 = vmatpush2.msra.mxu0 0.0
        %2182 = vmatprep.subr.mxu0 0.0
        %2183 = vmatpush2.msra.mxu0 0.0
        %2184 = vmatprep.subr.mxu0 0.0
        %2185 = vmatpush2.msra.mxu0 0.0
        %2186 = vmatprep.subr.mxu0 0.0
        %2187 = vmatpush2.msra.mxu0 0.0
        %2188 = vmatprep.subr.mxu0 0.0
        %2189 = vmatpush2.msra.mxu0 0.0
        %2190 = vmatprep.subr.mxu0 0.0
        %2191 = vmatpush2.msra.mxu0 0.0
        %2192 = vmatprep.subr.mxu0 0.0
        %2193 = vmatpush2.msra.mxu0 0.0
        %2194 = vmatprep.subr.mxu0 0.0
        %2195 = vmatpush2.msra.mxu0 0.0
        %2196 = vmatprep.subr.mxu0 0.0
        %2197 = vmatpush2.msra.mxu0 0.0
        %2198 = vmatprep.subr.mxu0 0.0
        %2199 = vmatpush2.msra.mxu0 0.0
        %2200 = vmatprep.subr.mxu0 0.0
        %2201 = vmatpush2.msra.mxu0 0.0
        %2202 = vmatprep.subr.mxu0 0.0
        %2203 = vmatpush2.msra.mxu0 0.0
        %2204 = vmatprep.subr.mxu0 0.0
        %2205 = vmatpush2.msra.mxu0 0.0
        %2206 = vmatprep.subr.mxu0 0.0
        %2207 = vmatpush2.msra.mxu0 0.0
        %2208 = vmatprep.subr.mxu0 0.0
        %2209 = vmatpush2.msra.mxu0 0.0
        %2210 = vmatprep.subr.mxu0 0.0
        %2211 = vmatpush2.msra.mxu0 0.0
        %2212 = vmatprep.mubr.f32.mxu0 0.0
        %2213 = vmatmul.mubr.f32.gmra.mxu0 %v2146
        %v2214 = vpop.f32.mrf.mxu0
        %v2215 = vadd.f32 0.0, %v2214
        %v2216 = vpop.f32.mrf.mxu0
        %v2217 = vadd.f32 0.0, %v2216
        %2218 = vdwg.mxu0
        %v2219 = vadd.f32 %v2133, %v2215
        %v2220 = vadd.f32 %v2134, %v2217
        %2221 = vrot.lane.b32.xlu0 %v1626, 112
        %v2222 = vpop.permute.xlu0 %2221
        %2223 = vrot.lane.b32.xlu0 %v1627, 112
        %v2224 = vpop.permute.xlu0 %2223
        %v2225 = vsel %vm1361, %v2222, %v2224
        %v2226 = vsel %vm1361, %v2224, %v2222
        %v2227 = vmul.f32 %v2225, %v1370
        %v2228 = vmul.f32 %v2226, %v1374
        %s2229 = scalar_lea.vmem %s12, 56
        %v2230 = vld [vmem:[%s2229] sm:$0xff]
        %v2232 = vsel %vm1648, %v2230, 0
        %2234 = vmatprep.subr.mxu0 0.0
        %2235 = vmatpush1.msra.mxu0 0.0
        %2236 = vmatprep.subr.mxu0 0.0
        %2237 = vmatpush1.msra.mxu0 0.0
        %2238 = vmatprep.subr.mxu0 0.0
        %2239 = vmatpush1.msra.mxu0 0.0
        %2240 = vmatprep.subr.mxu0 0.0
        %2241 = vmatpush1.msra.mxu0 0.0
        %2242 = vmatprep.subr.mxu0 0.0
        %2243 = vmatpush1.msra.mxu0 0.0
        %2244 = vmatprep.subr.mxu0 0.0
        %2245 = vmatpush1.msra.mxu0 0.0
        %2246 = vmatprep.subr.mxu0 0.0
        %2247 = vmatpush1.msra.mxu0 0.0
        %2248 = vmatprep.subr.mxu0 0.0
        %2249 = vmatpush1.msra.mxu0 0.0
        %2250 = vmatprep.subr.mxu0 0.0
        %2251 = vmatpush1.msra.mxu0 0.0
        %2252 = vmatprep.subr.mxu0 0.0
        %2253 = vmatpush1.msra.mxu0 0.0
        %2254 = vmatprep.subr.mxu0 0.0
        %2255 = vmatpush1.msra.mxu0 0.0
        %2256 = vmatprep.subr.mxu0 0.0
        %2257 = vmatpush1.msra.mxu0 0.0
        %2258 = vmatprep.subr.mxu0 0.0
        %2259 = vmatpush1.msra.mxu0 0.0
        %2260 = vmatprep.subr.mxu0 0.0
        %2261 = vmatpush1.msra.mxu0 0.0
        %2262 = vmatprep.subr.mxu0 0.0
        %2263 = vmatpush1.msra.mxu0 0.0
        %2264 = vmatprep.subr.mxu0 %v2228
        %2265 = vmatpush1.msra.mxu0 %v2227
        %2266 = vmatprep.subr.mxu0 0.0
        %2267 = vmatpush2.msra.mxu0 0.0
        %2268 = vmatprep.subr.mxu0 0.0
        %2269 = vmatpush2.msra.mxu0 0.0
        %2270 = vmatprep.subr.mxu0 0.0
        %2271 = vmatpush2.msra.mxu0 0.0
        %2272 = vmatprep.subr.mxu0 0.0
        %2273 = vmatpush2.msra.mxu0 0.0
        %2274 = vmatprep.subr.mxu0 0.0
        %2275 = vmatpush2.msra.mxu0 0.0
        %2276 = vmatprep.subr.mxu0 0.0
        %2277 = vmatpush2.msra.mxu0 0.0
        %2278 = vmatprep.subr.mxu0 0.0
        %2279 = vmatpush2.msra.mxu0 0.0
        %2280 = vmatprep.subr.mxu0 0.0
        %2281 = vmatpush2.msra.mxu0 0.0
        %2282 = vmatprep.subr.mxu0 0.0
        %2283 = vmatpush2.msra.mxu0 0.0
        %2284 = vmatprep.subr.mxu0 0.0
        %2285 = vmatpush2.msra.mxu0 0.0
        %2286 = vmatprep.subr.mxu0 0.0
        %2287 = vmatpush2.msra.mxu0 0.0
        %2288 = vmatprep.subr.mxu0 0.0
        %2289 = vmatpush2.msra.mxu0 0.0
        %2290 = vmatprep.subr.mxu0 0.0
        %2291 = vmatpush2.msra.mxu0 0.0
        %2292 = vmatprep.subr.mxu0 0.0
        %2293 = vmatpush2.msra.mxu0 0.0
        %2294 = vmatprep.subr.mxu0 0.0
        %2295 = vmatpush2.msra.mxu0 0.0
        %2296 = vmatprep.subr.mxu0 0.0
        %2297 = vmatpush2.msra.mxu0 0.0
        %2298 = vmatprep.mubr.f32.mxu0 0.0
        %2299 = vmatmul.mubr.f32.gmra.mxu0 %v2232
        %v2300 = vpop.f32.mrf.mxu0
        %v2301 = vadd.f32 0.0, %v2300
        %v2302 = vpop.f32.mrf.mxu0
        %v2303 = vadd.f32 0.0, %v2302
        %2304 = vdwg.mxu0
        %v2305 = vadd.f32 %v2219, %v2301
        %v2306 = vadd.f32 %v2220, %v2303
        %2307 = vrot.lane.b32.xlu0 %v1626, 111
        %v2308 = vpop.permute.xlu0 %2307
        %2309 = vrot.lane.b32.xlu0 %v1627, 111
        %v2310 = vpop.permute.xlu0 %2309
        %v2311 = vsel %vm1467, %v2308, %v2310
        %v2312 = vsel %vm1467, %v2310, %v2308
        %v2313 = vmul.f32 %v2311, %v1476
        %v2314 = vmul.f32 %v2312, %v1480
        %s2315 = scalar_lea.vmem %s12, 64
        %v2316 = vld [vmem:[%s2315] sm:$0xff]
        %v2318 = vsel %vm1648, %v2316, 0
        %2320 = vmatprep.subr.mxu0 0.0
        %2321 = vmatpush1.msra.mxu0 0.0
        %2322 = vmatprep.subr.mxu0 0.0
        %2323 = vmatpush1.msra.mxu0 0.0
        %2324 = vmatprep.subr.mxu0 0.0
        %2325 = vmatpush1.msra.mxu0 0.0
        %2326 = vmatprep.subr.mxu0 0.0
        %2327 = vmatpush1.msra.mxu0 0.0
        %2328 = vmatprep.subr.mxu0 0.0
        %2329 = vmatpush1.msra.mxu0 0.0
        %2330 = vmatprep.subr.mxu0 0.0
        %2331 = vmatpush1.msra.mxu0 0.0
        %2332 = vmatprep.subr.mxu0 0.0
        %2333 = vmatpush1.msra.mxu0 0.0
        %2334 = vmatprep.subr.mxu0 0.0
        %2335 = vmatpush1.msra.mxu0 0.0
        %2336 = vmatprep.subr.mxu0 0.0
        %2337 = vmatpush1.msra.mxu0 0.0
        %2338 = vmatprep.subr.mxu0 0.0
        %2339 = vmatpush1.msra.mxu0 0.0
        %2340 = vmatprep.subr.mxu0 0.0
        %2341 = vmatpush1.msra.mxu0 0.0
        %2342 = vmatprep.subr.mxu0 0.0
        %2343 = vmatpush1.msra.mxu0 0.0
        %2344 = vmatprep.subr.mxu0 0.0
        %2345 = vmatpush1.msra.mxu0 0.0
        %2346 = vmatprep.subr.mxu0 0.0
        %2347 = vmatpush1.msra.mxu0 0.0
        %2348 = vmatprep.subr.mxu0 0.0
        %2349 = vmatpush1.msra.mxu0 0.0
        %2350 = vmatprep.subr.mxu0 %v2314
        %2351 = vmatpush1.msra.mxu0 %v2313
        %2352 = vmatprep.subr.mxu0 0.0
        %2353 = vmatpush2.msra.mxu0 0.0
        %2354 = vmatprep.subr.mxu0 0.0
        %2355 = vmatpush2.msra.mxu0 0.0
        %2356 = vmatprep.subr.mxu0 0.0
        %2357 = vmatpush2.msra.mxu0 0.0
        %2358 = vmatprep.subr.mxu0 0.0
        %2359 = vmatpush2.msra.mxu0 0.0
        %2360 = vmatprep.subr.mxu0 0.0
        %2361 = vmatpush2.msra.mxu0 0.0
        %2362 = vmatprep.subr.mxu0 0.0
        %2363 = vmatpush2.msra.mxu0 0.0
        %2364 = vmatprep.subr.mxu0 0.0
        %2365 = vmatpush2.msra.mxu0 0.0
        %2366 = vmatprep.subr.mxu0 0.0
        %2367 = vmatpush2.msra.mxu0 0.0
        %2368 = vmatprep.subr.mxu0 0.0
        %2369 = vmatpush2.msra.mxu0 0.0
        %2370 = vmatprep.subr.mxu0 0.0
        %2371 = vmatpush2.msra.mxu0 0.0
        %2372 = vmatprep.subr.mxu0 0.0
        %2373 = vmatpush2.msra.mxu0 0.0
        %2374 = vmatprep.subr.mxu0 0.0
        %2375 = vmatpush2.msra.mxu0 0.0
        %2376 = vmatprep.subr.mxu0 0.0
        %2377 = vmatpush2.msra.mxu0 0.0
        %2378 = vmatprep.subr.mxu0 0.0
        %2379 = vmatpush2.msra.mxu0 0.0
        %2380 = vmatprep.subr.mxu0 0.0
        %2381 = vmatpush2.msra.mxu0 0.0
        %2382 = vmatprep.subr.mxu0 0.0
        %2383 = vmatpush2.msra.mxu0 0.0
        %2384 = vmatprep.mubr.f32.mxu0 0.0
        %2385 = vmatmul.mubr.f32.gmra.mxu0 %v2318
        %v2386 = vpop.f32.mrf.mxu0
        %v2387 = vadd.f32 0.0, %v2386
        %v2388 = vpop.f32.mrf.mxu0
        %v2389 = vadd.f32 0.0, %v2388
        %2390 = vdwg.mxu0
        %v2391 = vadd.f32 %v2305, %v2387
        %v2392 = vadd.f32 %v2306, %v2389
        %2394 = vset.pattern.permute.xlu0 0
        %2395 = vperm.xlu0 %2394, %v1628
        %v2396 = vpop.permute.xlu0 %2395
        %v2398 = vadd.f32 %v2391, %v2396
        %v2399 = vadd.f32 %v2392, %v2396
        %v2400 = vld [vmem:[%s14] sm:$0xff]
        %v2402 = vsel %vm673, %v2400, 0
        %v2404 = vsel %vm560, %v534, 0
        %v2406 = vsel %vm560, %v558, 0
        %2408 = vmatprep.subr.mxu0 0.0
        %2409 = vmatpush1.msra.mxu0 0.0
        %2410 = vmatprep.subr.mxu0 0.0
        %2411 = vmatpush1.msra.mxu0 0.0
        %2412 = vmatprep.subr.mxu0 0.0
        %2413 = vmatpush1.msra.mxu0 0.0
        %2414 = vmatprep.subr.mxu0 0.0
        %2415 = vmatpush1.msra.mxu0 0.0
        %2416 = vmatprep.subr.mxu0 0.0
        %2417 = vmatpush1.msra.mxu0 0.0
        %2418 = vmatprep.subr.mxu0 0.0
        %2419 = vmatpush1.msra.mxu0 0.0
        %2420 = vmatprep.subr.mxu0 0.0
        %2421 = vmatpush1.msra.mxu0 0.0
        %2422 = vmatprep.subr.mxu0 0.0
        %2423 = vmatpush1.msra.mxu0 0.0
        %2424 = vmatprep.subr.mxu0 0.0
        %2425 = vmatpush1.msra.mxu0 0.0
        %2426 = vmatprep.subr.mxu0 0.0
        %2427 = vmatpush1.msra.mxu0 0.0
        %2428 = vmatprep.subr.mxu0 0.0
        %2429 = vmatpush1.msra.mxu0 0.0
        %2430 = vmatprep.subr.mxu0 0.0
        %2431 = vmatpush1.msra.mxu0 0.0
        %2432 = vmatprep.subr.mxu0 0.0
        %2433 = vmatpush1.msra.mxu0 0.0
        %2434 = vmatprep.subr.mxu0 0.0
        %2435 = vmatpush1.msra.mxu0 0.0
        %2436 = vmatprep.subr.mxu0 0.0
        %2437 = vmatpush1.msra.mxu0 0.0
        %2438 = vmatprep.subr.mxu0 %v2406
        %2439 = vmatpush1.msra.mxu0 %v2404
        %2440 = vmatprep.subr.mxu0 0.0
        %2441 = vmatpush2.msra.mxu0 0.0
        %2442 = vmatprep.subr.mxu0 0.0
        %2443 = vmatpush2.msra.mxu0 0.0
        %2444 = vmatprep.subr.mxu0 0.0
        %2445 = vmatpush2.msra.mxu0 0.0
        %2446 = vmatprep.subr.mxu0 0.0
        %2447 = vmatpush2.msra.mxu0 0.0
        %2448 = vmatprep.subr.mxu0 0.0
        %2449 = vmatpush2.msra.mxu0 0.0
        %2450 = vmatprep.subr.mxu0 0.0
        %2451 = vmatpush2.msra.mxu0 0.0
        %2452 = vmatprep.subr.mxu0 0.0
        %2453 = vmatpush2.msra.mxu0 0.0
        %2454 = vmatprep.subr.mxu0 0.0
        %2455 = vmatpush2.msra.mxu0 0.0
        %2456 = vmatprep.subr.mxu0 0.0
        %2457 = vmatpush2.msra.mxu0 0.0
        %2458 = vmatprep.subr.mxu0 0.0
        %2459 = vmatpush2.msra.mxu0 0.0
        %2460 = vmatprep.subr.mxu0 0.0
        %2461 = vmatpush2.msra.mxu0 0.0
        %2462 = vmatprep.subr.mxu0 0.0
        %2463 = vmatpush2.msra.mxu0 0.0
        %2464 = vmatprep.subr.mxu0 0.0
        %2465 = vmatpush2.msra.mxu0 0.0
        %2466 = vmatprep.subr.mxu0 0.0
        %2467 = vmatpush2.msra.mxu0 0.0
        %2468 = vmatprep.subr.mxu0 0.0
        %2469 = vmatpush2.msra.mxu0 0.0
        %2470 = vmatprep.subr.mxu0 0.0
        %2471 = vmatpush2.msra.mxu0 0.0
        %2472 = vmatprep.mubr.f32.mxu0 0.0
        %2473 = vmatmul.mubr.f32.gmra.mxu0 %v2402
        %v2474 = vpop.f32.mrf.mxu0
        %v2475 = vadd.f32 0.0, %v2474
        %v2476 = vpop.f32.mrf.mxu0
        %v2477 = vadd.f32 0.0, %v2476
        %2478 = vdwg.mxu0
        %v2479 = vadd.f32 %v2398, %v2475
        %v2480 = vadd.f32 %v2399, %v2477
        %v2481 = vmul.f32 %v2479, 0.70710677
        %v2482 = vmul.f32 %v2480, 0.70710677
        %2483 = vst [vmem:[%s525] sm:$0xff] %v2481
        %2484 = vst [vmem:[%s525 + $0x8] sm:$0xff] %v2482
        %s2485 = sand.u32 %s384, 1
        %s2486 = scalar_lea.sflag [#allocation3], %s2485
        %s2487 = sand.u32 %s384, 1
        %s2488 = smul.addr %s2487, 16
        %s2489 = scalar_lea.vmem [#allocation2], %s2488
        // Predicated region
        $region85: #{tpu_custom_call.1} parent=83 // pred_check
          %p2490 = pneg %p394
        $region86: #{tpu_custom_call.1} parent=83 // pred_check_branch
          %2492 = sbr.rel (%p2490) target = $region88
        $region87: #{tpu_custom_call.1} parent=83 // pred_region
          %s2494 = ssub.s32 256, 256
          %2495 = vsyncadd %s2486, %s2494
          %s2496 = smul.addr %s30, 2
          %s2497 = smul.addr %s2496, 128
          %s2498 = scalar_lea.hbm %s16, %s2497
          %s2500 = sshll.u32 %s2489, 4
          %s2501 = int_to_ptr.vmem [resolvable:$true] %s2500
          %2503 = dma.vmem_to_hbm [thread:$0]  %s2501, 256, %s2498, %s2486
        $region88: #{tpu_custom_call.1} parent=83 // pred_fallthru
          _
      $region84: #{tpu_custom_call.1} parent=5 // pred_fallthru
        _
      %p2504 = scmp.le.s32.totalorder 2, %s25
      // Predicated region
      $region89: #{tpu_custom_call.1} parent=5 // pred_check
        %p2505 = pneg %p2504
      $region90: #{tpu_custom_call.1} parent=5 // pred_check_branch
        %2507 = sbr.rel (%p2505) target = $region92
      $region91: #{tpu_custom_call.1} parent=5 // pred_region
        %s2508 = ssub.s32 %s25, 2
        // Predicated region
        $region93: #{tpu_custom_call.1} parent=91 // pred_check
          %p2509 = pneg %p400
        $region94: #{tpu_custom_call.1} parent=91 // pred_check_branch
          %2511 = sbr.rel (%p2509) target = $region96
        $region95: #{tpu_custom_call.1} parent=91 // pred_region
          %s2512 = sand.u32 %s385, 1
          %s2513 = scalar_lea.sflag [#allocation3], %s2512
          %s2514 = sand.u32 %s385, 1
          %s2515 = smul.addr %s2514, 16
          %s2516 = scalar_lea.vmem [#allocation2], %s2515
          %2517 = dma.done %s2513, 256
        $region96: #{tpu_custom_call.1} parent=91 // pred_fallthru
          _
      $region92: #{tpu_custom_call.1} parent=5 // pred_fallthru
        _
    $region6: #{tpu_custom_call.1} parent=1 // loop_footer
      %s29 = sadd.s32 1, %s25
    $region7: #{tpu_custom_call.1} parent=1 // loop_footer_branch
      %24 = sbr.rel target = $region3
    $region8: #{tpu_custom_call.1} parent=1 // loop_exit
      _
    %2518 = vsyncpa [#allocation3], 1
    %s2519 = scalar_lea.sflag [#allocation3], 1
    %2520 = vsyncpa %s2519, 1

</llo_original>
